<compile_context>
chip_gen: v7x
topology: tpu7x:2x2x1
jax: 0.10.0
libtpu: 0.0.40
codegen_flags: <defaults>
</compile_context>

<pallas_src>
import jax
import jax.numpy as jnp
import numpy as np
from jax.experimental import pallas as pl
from jax.experimental.pallas import tpu as pltpu

D_IN = 1024
D_HID = 1024
D_OUT = 702
D_OUT_PAD = 768          # 6 * 128 -> lane-aligned output / MXU-aligned N
BN_EPS = 1e-5
LEAKY_SLOPE = 0.01


def _round_up(n, m):
    return (n + m - 1) // m * m


def _make_single_pass_kernel(batch_size, bm):
    """Whole batch in one tile: one matmul-1 pass, fused BN + LeakyReLU + matmul-2."""
    need_mask = bm != batch_size   # static: only if the batch was padded to a mult of 8

    def kernel(x_ref, w1_ref, w2_ref, b2_ref, o_ref):
        # ---- Linear 1 (bias dropped: cancelled exactly by train-mode BN) ----
        raw = jnp.dot(x_ref[...].astype(jnp.bfloat16), w1_ref[...],
                      preferred_element_type=jnp.float32)

        # ---- BatchNorm1d statistics over the true batch rows ----
        if need_mask:
            row = jax.lax.broadcasted_iota(jnp.int32, (bm, 1), 0)
            raw_m = jnp.where(row < batch_size, raw, 0.0)
        else:
            raw_m = raw
        inv_n = 1.0 / batch_size
        mean = jnp.sum(raw_m, axis=0, keepdims=True) * inv_n
        var = jnp.sum(raw_m * raw_m, axis=0, keepdims=True) * inv_n - mean * mean

        hn = (raw - mean) * jax.lax.rsqrt(var + BN_EPS)   # gamma = 1, beta = 0
        hn = jnp.maximum(hn, LEAKY_SLOPE * hn)            # LeakyReLU(0.01)

        # ---- Linear 2 into the 768-wide (zero-padded) output ----
        out = jnp.dot(hn.astype(jnp.bfloat16), w2_ref[...],
                      preferred_element_type=jnp.float32) + b2_ref[...]
        o_ref[...] = out.astype(o_ref.dtype)

    return kernel


def _make_two_phase_kernel(batch_size, bm):
    """Batch-tiled fallback. batch_size = true (unpadded) batch, bm = tile rows."""

    def kernel(x_ref, w1_ref, w2_ref, b2_ref, o_ref, sum_ref, sumsq_ref):
        p = pl.program_id(0)   # 0: accumulate BN batch statistics, 1: produce output
        i = pl.program_id(1)   # batch tile index

        # ---- Linear 1 (bias dropped: cancelled exactly by train-mode BN) ----
        raw = jnp.dot(x_ref[...].astype(jnp.bfloat16), w1_ref[...],
                      preferred_element_type=jnp.float32)

        @pl.when(p == 0)
        def _stats():
            @pl.when(i == 0)
            def _init():
                sum_ref[...] = jnp.zeros_like(sum_ref)
                sumsq_ref[...] = jnp.zeros_like(sumsq_ref)

            # Mask batch-padding rows out of the statistics (BN must see only the
            # true batch).
            row = jax.lax.broadcasted_iota(jnp.int32, (bm, 1), 0) + i * bm
            raw_m = jnp.where(row < batch_size, raw, 0.0)
            sum_ref[...] += jnp.sum(raw_m, axis=0, keepdims=True)
            sumsq_ref[...] += jnp.sum(raw_m * raw_m, axis=0, keepdims=True)

        @pl.when(p == 1)
        def _emit():
            inv_n = 1.0 / batch_size
            mean = sum_ref[...] * inv_n
            var = sumsq_ref[...] * inv_n - mean * mean       # biased (train-mode) var
            hn = (raw - mean) * jax.lax.rsqrt(var + BN_EPS)  # gamma = 1, beta = 0
            hn = jnp.maximum(hn, LEAKY_SLOPE * hn)           # LeakyReLU(0.01)
            out = jnp.dot(hn.astype(jnp.bfloat16), w2_ref[...],
                          preferred_element_type=jnp.float32) + b2_ref[...]
            o_ref[...] = out.astype(o_ref.dtype)

    return kernel


def discriminator_for_difference(x, w1, b1, w2, b2, *, block_batch=1024):
    """x: (B, 1024) f32; w1: (1024, 1024); b1: (1024,); w2: (1024, 702); b2: (702,).

    Returns (B, 702) f32 matching the PyTorch module's train-mode forward pass.
    b1 is accepted for interface parity but is algebraically cancelled by the
    train-mode BatchNorm (gamma=1, beta=0) that immediately follows the Linear.
    """
    B = x.shape[0]
    assert x.shape[1] == D_IN
    assert w1.shape == (D_IN, D_HID) and w2.shape == (D_HID, D_OUT)
    del b1   # exactly cancelled by BN: (h+b)-mean(h+b) == h-mean(h), var unchanged

    BM = min(_round_up(block_batch, 8), _round_up(B, 8))     # rows per batch tile
    B_pad = _round_up(B, BM)
    nbt = B_pad // BM

    x_pad = jnp.pad(x, ((0, B_pad - B), (0, 0))) if B_pad != B else x

    # bf16 weights: halve HBM weight traffic and feed the MXU at its bf16 rate.
    # (In a real pipeline these would be converted/padded once, outside the hot path.)
    w1_bf = w1.astype(jnp.bfloat16)
    w2_bf = jnp.pad(w2, ((0, 0), (0, D_OUT_PAD - D_OUT))).astype(jnp.bfloat16)
    b2_2d = jnp.pad(b2, (0, D_OUT_PAD - D_OUT)).reshape(1, D_OUT_PAD).astype(jnp.float32)

    # VMEM budget: actual buffers (+double-buffer where applicable) + headroom,
    # capped below v7x's 64 MiB physical VMEM.
    vmem_bytes = (
        2 * BM * D_IN * 4              # x tile (double-buffered), f32
        + 2 * D_IN * D_HID * 2         # w1 bf16 (counted double-buffered, conservative)
        + 2 * D_HID * D_OUT_PAD * 2    # w2 bf16
        + 2 * BM * D_OUT_PAD * 4       # output tile (double-buffered), f32
        + 2 * D_OUT_PAD * 4            # bias
        + BM * D_HID * 4               # f32 intermediate (raw / hn)
        + 2 * D_HID * 4                # sum / sum-of-squares scratch
    )
    vmem_limit = int(min(max(vmem_bytes + (8 << 20), 32 << 20), 56 << 20))

    if nbt == 1:
        # -------- single-pass fast path: whole batch in one tile --------
        kernel = _make_single_pass_kernel(batch_size=B, bm=BM)
        out_pad = pl.pallas_call(
            kernel,
            out_shape=jax.ShapeDtypeStruct((B_pad, D_OUT_PAD), jnp.float32),
            grid=(1,),
            in_specs=[
                pl.BlockSpec((BM, D_IN), lambda i: (0, 0)),         # x
                pl.BlockSpec((D_IN, D_HID), lambda i: (0, 0)),      # w1
                pl.BlockSpec((D_HID, D_OUT_PAD), lambda i: (0, 0)),  # w2
                pl.BlockSpec((1, D_OUT_PAD), lambda i: (0, 0)),     # b2
            ],
            out_specs=pl.BlockSpec((BM, D_OUT_PAD), lambda i: (0, 0)),
            compiler_params=pltpu.CompilerParams(
                dimension_semantics=("arbitrary",),
                vmem_limit_bytes=vmem_limit,
            ),
        )(x_pad, w1_bf, w2_bf, b2_2d)
    else:
        # -------- two-phase batch-tiled path for large batches --------
        kernel = _make_two_phase_kernel(batch_size=B, bm=BM)
        out_pad = pl.pallas_call(
            kernel,
            out_shape=jax.ShapeDtypeStruct((B_pad, D_OUT_PAD), jnp.float32),
            grid=(2, nbt),
            in_specs=[
                pl.BlockSpec((BM, D_IN), lambda p, i: (i, 0)),        # x tile
                pl.BlockSpec((D_IN, D_HID), lambda p, i: (0, 0)),     # w1: resident
                pl.BlockSpec((D_HID, D_OUT_PAD), lambda p, i: (0, 0)),  # w2: resident
                pl.BlockSpec((1, D_OUT_PAD), lambda p, i: (0, 0)),    # b2: resident
            ],
            # Phase 0 never stores; parking the output window on block 0 during
            # phase 0 avoids flushing un-written blocks to HBM. Phase 1 writes tile i.
            out_specs=pl.BlockSpec((BM, D_OUT_PAD), lambda p, i: (p * i, 0)),
            scratch_shapes=[
                pltpu.VMEM((1, D_HID), jnp.float32),   # per-feature sum
                pltpu.VMEM((1, D_HID), jnp.float32),   # per-feature sum of squares
            ],
            compiler_params=pltpu.CompilerParams(
                # Both axes sequential: phase 1 consumes the full-batch statistics
                # that phase 0 accumulates into shared VMEM scratch.
                dimension_semantics=("arbitrary", "arbitrary"),
                vmem_limit_bytes=vmem_limit,
            ),
        )(x_pad, w1_bf, w2_bf, b2_2d)

    return out_pad[:B, :D_OUT]


# ----------------------------- references -----------------------------------

def _reference_f32(x, w1, b1, w2, b2):
    """Pure f32 reference of the PyTorch module's train-mode forward pass."""
    h = x @ w1 + b1
    mean = jnp.mean(h, axis=0, keepdims=True)
    var = jnp.mean((h - mean) ** 2, axis=0, keepdims=True)
    h = (h - mean) * jax.lax.rsqrt(var + BN_EPS)
    h = jnp.where(h >= 0.0, h, LEAKY_SLOPE * h)
    return h @ w2 + b2


def _reference_mixed(x, w1, b1, w2, b2):
    """Reference matching the kernel's mixed-precision arithmetic (b1 cancelled by BN)."""
    del b1
    raw = jnp.dot(x.astype(jnp.bfloat16), w1.astype(jnp.bfloat16),
                  preferred_element_type=jnp.float32)
    n = x.shape[0]
    mean = jnp.sum(raw, axis=0, keepdims=True) / n
    var = jnp.sum(raw * raw, axis=0, keepdims=True) / n - mean * mean
    hn = (raw - mean) * jax.lax.rsqrt(var + BN_EPS)
    hn = jnp.maximum(hn, LEAKY_SLOPE * hn)
    return jnp.dot(hn.astype(jnp.bfloat16), w2.astype(jnp.bfloat16),
                   preferred_element_type=jnp.float32) + b2


# ------------------------------ self-test ------------------------------------

if __name__ == "__main__":
    key = jax.random.PRNGKey(0)
    k_x, k_w1, k_b1, k_w2, k_b2, k_x2, k_x3 = jax.random.split(key, 7)

    # PyTorch Linear-style uniform init bounds (deterministic).
    bound1 = 1.0 / np.sqrt(D_IN)
    w1 = jax.random.uniform(k_w1, (D_IN, D_HID), jnp.float32, -bound1, bound1)
    b1 = jax.random.uniform(k_b1, (D_HID,), jnp.float32, -bound1, bound1)
    bound2 = 1.0 / np.sqrt(D_HID)
    w2 = jax.random.uniform(k_w2, (D_HID, D_OUT), jnp.float32, -bound2, bound2)
    b2 = jax.random.uniform(k_b2, (D_OUT,), jnp.float32, -bound2, bound2)

    # Case 1: small batch (multiple of 8) -> single-pass kernel, no padding mask.
    B = 8
    x = jax.random.normal(k_x, (B, D_IN), dtype=jnp.float32)
    out = jax.block_until_ready(discriminator_for_difference(x, w1, b1, w2, b2))
    assert out.shape == (B, D_OUT)
    np.testing.assert_allclose(
        np.asarray(out), np.asarray(_reference_mixed(x, w1, b1, w2, b2)),
        rtol=5e-3, atol=5e-3)
    np.testing.assert_allclose(
        np.asarray(out), np.asarray(_reference_f32(x, w1, b1, w2, b2)),
        rtol=5e-2, atol=5e-2)

    # Case 2: batch not a multiple of 8 -> single-pass kernel with padding mask.
    B2 = 12
    x2 = jax.random.normal(k_x2, (B2, D_IN), dtype=jnp.float32)
    out2 = jax.block_until_ready(discriminator_for_difference(x2, w1, b1, w2, b2))
    assert out2.shape == (B2, D_OUT)
    np.testing.assert_allclose(
        np.asarray(out2), np.asarray(_reference_mixed(x2, w1, b1, w2, b2)),
        rtol=5e-3, atol=5e-3)
    np.testing.assert_allclose(
        np.asarray(out2), np.asarray(_reference_f32(x2, w1, b1, w2, b2)),
        rtol=5e-2, atol=5e-2)

    # Case 3: multi-tile batch with ragged padding (exercises the two-phase BN path,
    # cross-tile statistics and the masked padding rows).
    B3 = 40
    x3 = jax.random.normal(k_x3, (B3, D_IN), dtype=jnp.float32)
    out3 = jax.block_until_ready(
        discriminator_for_difference(x3, w1, b1, w2, b2, block_batch=16))
    assert out3.shape == (B3, D_OUT)
    np.testing.assert_allclose(
        np.asarray(out3), np.asarray(_reference_mixed(x3, w1, b1, w2, b2)),
        rtol=5e-3, atol=5e-3)
    np.testing.assert_allclose(
        np.asarray(out3), np.asarray(_reference_f32(x3, w1, b1, w2, b2)),
        rtol=5e-2, atol=5e-2)

    print("KERNEL_OK")
</pallas_src>

<mosaic_0001>
module attributes {stable_mosaic.version = 11 : i64} {
  func.func @kernel(%arg0: i32, %arg1: memref<8x1024xf32, #tpu.memory_space<vmem>>, %arg2: memref<1024x1024xbf16, #tpu.memory_space<vmem>>, %arg3: memref<1024x768xbf16, #tpu.memory_space<vmem>>, %arg4: memref<1x768xf32, #tpu.memory_space<vmem>>, %arg5: memref<8x768xf32, #tpu.memory_space<vmem>>) attributes {dimension_semantics = [#tpu.dimension_semantics<arbitrary>], iteration_bounds = array<i64: 1>, scalar_prefetch = 0 : i64, scratch_operands = 0 : i64, tpu.core_type = #tpu.core_type<tc>, window_params = [{pipeline_mode = #tpu.pipeline_mode<synchronous>, transform_indices = @transform_0, window_bounds = array<i64: 8, 1024>}, {pipeline_mode = #tpu.pipeline_mode<synchronous>, transform_indices = @transform_1, window_bounds = array<i64: 1024, 1024>}, {pipeline_mode = #tpu.pipeline_mode<synchronous>, transform_indices = @transform_2, window_bounds = array<i64: 1024, 768>}, {pipeline_mode = #tpu.pipeline_mode<synchronous>, transform_indices = @transform_3, window_bounds = array<i64: 1, 768>}, {pipeline_mode = #tpu.pipeline_mode<synchronous>, transform_indices = @transform_4, window_bounds = array<i64: 8, 768>}]} {
    %c0 = arith.constant 0 : index
    %c0_0 = arith.constant 0 : index
    %0 = vector.load %arg1[%c0, %c0_0] : memref<8x1024xf32, #tpu.memory_space<vmem>>, vector<8x1024xf32>
    %1 = arith.truncf %0 : vector<8x1024xf32> to vector<8x1024xbf16>
    %c0_1 = arith.constant 0 : index
    %c0_2 = arith.constant 0 : index
    %2 = vector.load %arg2[%c0_1, %c0_2] : memref<1024x1024xbf16, #tpu.memory_space<vmem>>, vector<1024x1024xbf16>
    %cst = arith.constant dense<0.000000e+00> : vector<8x1024xf32>
    %3 = tpu.matmul %1, %2, %cst {dimension_numbers = #tpu.dot_dimension_numbers<[1], [0], [0], [1], [0, 0, 1, 1], [], []>} : vector<8x1024xbf16>, vector<1024x1024xbf16>, vector<8x1024xf32> -> vector<8x1024xf32>
    %cst_3 = arith.constant dense<0.000000e+00> : vector<1024xf32>
    %4 = vector.multi_reduction <add>, %3, %cst_3 [0] : vector<8x1024xf32> to vector<1024xf32>
    %5 = vector.shape_cast %4 : vector<1024xf32> to vector<1x1024xf32>
    %cst_4 = arith.constant 1.250000e-01 : f32
    %6 = vector.broadcast %cst_4 : f32 to vector<1x1024xf32>
    %7 = arith.mulf %5, %6 : vector<1x1024xf32>
    %8 = arith.mulf %3, %3 : vector<8x1024xf32>
    %cst_5 = arith.constant dense<0.000000e+00> : vector<1024xf32>
    %9 = vector.multi_reduction <add>, %8, %cst_5 [0] : vector<8x1024xf32> to vector<1024xf32>
    %10 = vector.shape_cast %9 : vector<1024xf32> to vector<1x1024xf32>
    %cst_6 = arith.constant 1.250000e-01 : f32
    %11 = vector.broadcast %cst_6 : f32 to vector<1x1024xf32>
    %12 = arith.mulf %10, %11 : vector<1x1024xf32>
    %13 = arith.mulf %7, %7 : vector<1x1024xf32>
    %14 = arith.subf %12, %13 : vector<1x1024xf32>
    %15 = vector.broadcast %7 : vector<1x1024xf32> to vector<8x1024xf32>
    %16 = arith.subf %3, %15 : vector<8x1024xf32>
    %cst_7 = arith.constant 9.99999974E-6 : f32
    %17 = vector.broadcast %cst_7 : f32 to vector<1x1024xf32>
    %18 = arith.addf %14, %17 : vector<1x1024xf32>
    %19 = math.rsqrt %18 : vector<1x1024xf32>
    %20 = vector.broadcast %19 : vector<1x1024xf32> to vector<8x1024xf32>
    %21 = arith.mulf %16, %20 : vector<8x1024xf32>
    %cst_8 = arith.constant 0.00999999977 : f32
    %22 = vector.broadcast %cst_8 : f32 to vector<8x1024xf32>
    %23 = arith.mulf %22, %21 : vector<8x1024xf32>
    %24 = arith.maximumf %21, %23 : vector<8x1024xf32>
    %25 = arith.truncf %24 : vector<8x1024xf32> to vector<8x1024xbf16>
    %c0_9 = arith.constant 0 : index
    %c0_10 = arith.constant 0 : index
    %26 = vector.load %arg3[%c0_9, %c0_10] : memref<1024x768xbf16, #tpu.memory_space<vmem>>, vector<1024x768xbf16>
    %cst_11 = arith.constant dense<0.000000e+00> : vector<8x768xf32>
    %27 = tpu.matmul %25, %26, %cst_11 {dimension_numbers = #tpu.dot_dimension_numbers<[1], [0], [0], [1], [0, 0, 1, 1], [], []>} : vector<8x1024xbf16>, vector<1024x768xbf16>, vector<8x768xf32> -> vector<8x768xf32>
    %c0_12 = arith.constant 0 : index
    %c0_13 = arith.constant 0 : index
    %28 = vector.load %arg4[%c0_12, %c0_13] : memref<1x768xf32, #tpu.memory_space<vmem>>, vector<1x768xf32>
    %29 = vector.broadcast %28 : vector<1x768xf32> to vector<8x768xf32>
    %30 = arith.addf %27, %29 : vector<8x768xf32>
    %c0_14 = arith.constant 0 : index
    %c0_15 = arith.constant 0 : index
    %31 = vector.load %arg5[%c0_14, %c0_15] : memref<8x768xf32, #tpu.memory_space<vmem>>, vector<8x768xf32>
    tpu.vector_store %arg5[%c0_14, %c0_15], %30 {strides = array<i32>} : memref<8x768xf32, #tpu.memory_space<vmem>>, vector<8x768xf32>,
    return
  }
  func.func @transform_0(%arg0: i32) -> (i32, i32) {
    %c0_i32 = arith.constant 0 : i32
    %c0_i32_0 = arith.constant 0 : i32
    %c0_i32_1 = arith.constant 0 : i32
    return %c0_i32, %c0_i32_0 : i32, i32
  }
  func.func @transform_1(%arg0: i32) -> (i32, i32) {
    %c0_i32 = arith.constant 0 : i32
    %c0_i32_0 = arith.constant 0 : i32
    %c0_i32_1 = arith.constant 0 : i32
    return %c0_i32, %c0_i32_0 : i32, i32
  }
  func.func @transform_2(%arg0: i32) -> (i32, i32) {
    %c0_i32 = arith.constant 0 : i32
    %c0_i32_0 = arith.constant 0 : i32
    %c0_i32_1 = arith.constant 0 : i32
    return %c0_i32, %c0_i32_0 : i32, i32
  }
  func.func @transform_3(%arg0: i32) -> (i32, i32) {
    %c0_i32 = arith.constant 0 : i32
    %c0_i32_0 = arith.constant 0 : i32
    %c0_i32_1 = arith.constant 0 : i32
    return %c0_i32, %c0_i32_0 : i32, i32
  }
  func.func @transform_4(%arg0: i32) -> (i32, i32) {
    %c0_i32 = arith.constant 0 : i32
    %c0_i32_0 = arith.constant 0 : i32
    %c0_i32_1 = arith.constant 0 : i32
    return %c0_i32, %c0_i32_0 : i32, i32
  }
}

</mosaic_0001>

<llo_original>
// kernel: tpu_custom_call.1
$region0: #{tpu_custom_call.1}
  #allocation0 [shape = 'u32[]', space=smem, size = 0x4, offset = 0x4, fixed_abs, tag = 'smem constant byte address 0x4 - core index']
  #allocation1 [shape = 'u32[144,128]{1,0:T(1,128)}', space=vmem, size = 0x12000, scoped, tag = 'internal scratch']
  %s0 = inlined_call_operand.hbm [shape: f32[8,1024], index: 0, kind: input, shape index: {}]
  %s1 = inlined_call_operand.hbm [shape: bf16[1024,1024], index: 1, kind: input, shape index: {}]
  %s2 = inlined_call_operand.hbm [shape: bf16[1024,768], index: 2, kind: input, shape index: {}]
  %s3 = inlined_call_operand.hbm [shape: f32[1,768], index: 3, kind: input, shape index: {}]
  %s4 = inlined_call_operand.hbm [shape: f32[8,768], index: 4, kind: output, shape index: {}]
  %s5 = sld [smem:[#allocation0]]
  $region42: #{tpu_custom_call.1} parent=0
    _
  %s7 = ssub.s32 1, %s5
  %s8 = scalar_select 0, %s7, %s5
  $region1: #{tpu_custom_call.1} parent=0
    #allocation2 [shape = 'u8[32768]{0}', space=vmem, size = 0x8000, scoped, tag = 'input window, operand 0, single buffered']
    #allocation3 [shape = 's32[1]{0}', space=sflag, size = 0x4, scoped, tag = 'scoped memory for tpu_custom_call.1']
    #allocation4 [shape = 's32[1]{0}', space=sflag, size = 0x4, scoped, tag = 'scoped memory for tpu_custom_call.1']
    #allocation5 [shape = 'u8[2097152]{0}', space=vmem, size = 0x200000, scoped, tag = 'input window, operand 1, single buffered']
    #allocation6 [shape = 's32[1]{0}', space=sflag, size = 0x4, scoped, tag = 'scoped memory for tpu_custom_call.1']
    #allocation7 [shape = 'u8[1572864]{0}', space=vmem, size = 0x180000, scoped, tag = 'input window, operand 2, single buffered']
    #allocation8 [shape = 'u8[3072]{0}', space=vmem, size = 0xc00, scoped, tag = 'input window, operand 3, single buffered']
    #allocation9 [shape = 's32[1]{0}', space=sflag, size = 0x4, scoped, tag = 'scoped memory for tpu_custom_call.1']
    #allocation10 [shape = 'u8[24576]{0}', space=vmem, size = 0x6000, scoped, tag = 'output window, operand 0, single buffered']
    %9 = vsyncpa [#allocation3], 0
    %10 = vsyncpa [#allocation6], 0
    %11 = vsyncpa [#allocation9], 0
    %12 = vsyncpa [#allocation4], 0
    // Predicated region
    $region2: #{tpu_custom_call.1} parent=1 // pred_check
      _
    $region3: #{tpu_custom_call.1} parent=1 // pred_check_branch
      %14 = sbr.rel (0) target = $region5
    $region4: #{tpu_custom_call.1} parent=1 // pred_region
      %s16 = ssub.s32 1024, 1024
      %17 = vsyncadd [#allocation3], %s16
      %s19 = sshll.u32 [#allocation2], 4
      %s20 = int_to_ptr.vmem [resolvable:$true] %s19
      %22 = dma.hbm_to_vmem [thread:$0]  %s0, 1024, %s20, [#allocation3]
    $region5: #{tpu_custom_call.1} parent=1 // pred_fallthru
      _
    // Predicated region
    $region6: #{tpu_custom_call.1} parent=1 // pred_check
      _
    $region7: #{tpu_custom_call.1} parent=1 // pred_check_branch
      %24 = sbr.rel (0) target = $region9
    $region8: #{tpu_custom_call.1} parent=1 // pred_region
      %s26 = ssub.s32 65536, 65536
      %27 = vsyncadd [#allocation6], %s26
      %s28 = sshll.u32 [#allocation5], 4
      %s29 = int_to_ptr.vmem [resolvable:$true] %s28
      %34 = dma.hbm_to_vmem [thread:$0]  %s1, 65536, %s29, [#allocation6], 512, 512, 32
    $region9: #{tpu_custom_call.1} parent=1 // pred_fallthru
      _
    // Predicated region
    $region10: #{tpu_custom_call.1} parent=1 // pred_check
      _
    $region11: #{tpu_custom_call.1} parent=1 // pred_check_branch
      %36 = sbr.rel (0) target = $region13
    $region12: #{tpu_custom_call.1} parent=1 // pred_region
      %s38 = ssub.s32 49152, 49152
      %39 = vsyncadd [#allocation6], %s38
      %s40 = sshll.u32 [#allocation7], 4
      %s41 = int_to_ptr.vmem [resolvable:$true] %s40
      %46 = dma.hbm_to_vmem [thread:$0]  %s2, 49152, %s41, [#allocation6], 384, 384, 24
    $region13: #{tpu_custom_call.1} parent=1 // pred_fallthru
      _
    // Predicated region
    $region14: #{tpu_custom_call.1} parent=1 // pred_check
      _
    $region15: #{tpu_custom_call.1} parent=1 // pred_check_branch
      %48 = sbr.rel (0) target = $region17
    $region16: #{tpu_custom_call.1} parent=1 // pred_region
      %s50 = ssub.s32 96, 96
      %51 = vsyncadd [#allocation9], %s50
      %s53 = sshll.u32 [#allocation8], 4
      %s54 = int_to_ptr.vmem [resolvable:$true] %s53
      %56 = dma.hbm_to_vmem [thread:$0]  %s3, 96, %s54, [#allocation9]
    $region17: #{tpu_custom_call.1} parent=1 // pred_fallthru
      _
    // Predicated region
    $region18: #{tpu_custom_call.1} parent=1 // pred_check
      _
    $region19: #{tpu_custom_call.1} parent=1 // pred_check_branch
      %58 = sbr.rel (0) target = $region21
    $region20: #{tpu_custom_call.1} parent=1 // pred_region
      %59 = dma.done [#allocation3], 1024
    $region21: #{tpu_custom_call.1} parent=1 // pred_fallthru
      _
    // Predicated region
    $region22: #{tpu_custom_call.1} parent=1 // pred_check
      _
    $region23: #{tpu_custom_call.1} parent=1 // pred_check_branch
      %61 = sbr.rel (0) target = $region25
    $region24: #{tpu_custom_call.1} parent=1 // pred_region
      %62 = dma.done [#allocation6], 65536
    $region25: #{tpu_custom_call.1} parent=1 // pred_fallthru
      _
    // Predicated region
    $region26: #{tpu_custom_call.1} parent=1 // pred_check
      _
    $region27: #{tpu_custom_call.1} parent=1 // pred_check_branch
      %64 = sbr.rel (0) target = $region29
    $region28: #{tpu_custom_call.1} parent=1 // pred_region
      %65 = dma.done [#allocation6], 49152
    $region29: #{tpu_custom_call.1} parent=1 // pred_fallthru
      _
    // Predicated region
    $region30: #{tpu_custom_call.1} parent=1 // pred_check
      _
    $region31: #{tpu_custom_call.1} parent=1 // pred_check_branch
      %67 = sbr.rel (0) target = $region33
    $region32: #{tpu_custom_call.1} parent=1 // pred_region
      %68 = dma.done [#allocation9], 96
    $region33: #{tpu_custom_call.1} parent=1 // pred_fallthru
      _
    %v69 = vld [vmem:[#allocation2] sm:$0xff]
    %v70 = vld [vmem:[#allocation2 + $0x8] sm:$0xff]
    %v71 = vld [vmem:[#allocation2 + $0x10] sm:$0xff]
    %v72 = vld [vmem:[#allocation2 + $0x18] sm:$0xff]
    %v73 = vld [vmem:[#allocation2 + $0x20] sm:$0xff]
    %v74 = vld [vmem:[#allocation2 + $0x28] sm:$0xff]
    %v75 = vld [vmem:[#allocation2 + $0x30] sm:$0xff]
    %v76 = vld [vmem:[#allocation2 + $0x38] sm:$0xff]
    %v77 = vpack.c.bf16 %v69, %v69
    %v78 = vpack.c.bf16 %v70, %v70
    %v79 = vpack.c.bf16 %v71, %v71
    %v80 = vpack.c.bf16 %v72, %v72
    %v81 = vpack.c.bf16 %v73, %v73
    %v82 = vpack.c.bf16 %v74, %v74
    %v83 = vpack.c.bf16 %v75, %v75
    %v84 = vpack.c.bf16 %v76, %v76
    %v85 = vld [vmem:[#allocation5] sm:$0xff]
    %v86 = vld [vmem:[#allocation5 + $0x8] sm:$0xff]
    %v87 = vld [vmem:[#allocation5 + $0x10] sm:$0xff]
    %v88 = vld [vmem:[#allocation5 + $0x18] sm:$0xff]
    %v89 = vld [vmem:[#allocation5 + $0x20] sm:$0xff]
    %v90 = vld [vmem:[#allocation5 + $0x28] sm:$0xff]
    %v91 = vld [vmem:[#allocation5 + $0x30] sm:$0xff]
    %v92 = vld [vmem:[#allocation5 + $0x38] sm:$0xff]
    %v93 = vld [vmem:[#allocation5 + $0x40] sm:$0xff]
    %v94 = vld [vmem:[#allocation5 + $0x48] sm:$0xff]
    %v95 = vld [vmem:[#allocation5 + $0x50] sm:$0xff]
    %v96 = vld [vmem:[#allocation5 + $0x58] sm:$0xff]
    %v97 = vld [vmem:[#allocation5 + $0x60] sm:$0xff]
    %v98 = vld [vmem:[#allocation5 + $0x68] sm:$0xff]
    %v99 = vld [vmem:[#allocation5 + $0x70] sm:$0xff]
    %v100 = vld [vmem:[#allocation5 + $0x78] sm:$0xff]
    %v101 = vld [vmem:[#allocation5 + $0x80] sm:$0xff]
    %v102 = vld [vmem:[#allocation5 + $0x88] sm:$0xff]
    %v103 = vld [vmem:[#allocation5 + $0x90] sm:$0xff]
    %v104 = vld [vmem:[#allocation5 + $0x98] sm:$0xff]
    %v105 = vld [vmem:[#allocation5 + $0xa0] sm:$0xff]
    %v106 = vld [vmem:[#allocation5 + $0xa8] sm:$0xff]
    %v107 = vld [vmem:[#allocation5 + $0xb0] sm:$0xff]
    %v108 = vld [vmem:[#allocation5 + $0xb8] sm:$0xff]
    %v109 = vld [vmem:[#allocation5 + $0xc0] sm:$0xff]
    %v110 = vld [vmem:[#allocation5 + $0xc8] sm:$0xff]
    %v111 = vld [vmem:[#allocation5 + $0xd0] sm:$0xff]
    %v112 = vld [vmem:[#allocation5 + $0xd8] sm:$0xff]
    %v113 = vld [vmem:[#allocation5 + $0xe0] sm:$0xff]
    %v114 = vld [vmem:[#allocation5 + $0xe8] sm:$0xff]
    %v115 = vld [vmem:[#allocation5 + $0xf0] sm:$0xff]
    %v116 = vld [vmem:[#allocation5 + $0xf8] sm:$0xff]
    %v117 = vld [vmem:[#allocation5 + $0x100] sm:$0xff]
    %v118 = vld [vmem:[#allocation5 + $0x108] sm:$0xff]
    %v119 = vld [vmem:[#allocation5 + $0x110] sm:$0xff]
    %v120 = vld [vmem:[#allocation5 + $0x118] sm:$0xff]
    %v121 = vld [vmem:[#allocation5 + $0x120] sm:$0xff]
    %v122 = vld [vmem:[#allocation5 + $0x128] sm:$0xff]
    %v123 = vld [vmem:[#allocation5 + $0x130] sm:$0xff]
    %v124 = vld [vmem:[#allocation5 + $0x138] sm:$0xff]
    %v125 = vld [vmem:[#allocation5 + $0x140] sm:$0xff]
    %v126 = vld [vmem:[#allocation5 + $0x148] sm:$0xff]
    %v127 = vld [vmem:[#allocation5 + $0x150] sm:$0xff]
    %v128 = vld [vmem:[#allocation5 + $0x158] sm:$0xff]
    %v129 = vld [vmem:[#allocation5 + $0x160] sm:$0xff]
    %v130 = vld [vmem:[#allocation5 + $0x168] sm:$0xff]
    %v131 = vld [vmem:[#allocation5 + $0x170] sm:$0xff]
    %v132 = vld [vmem:[#allocation5 + $0x178] sm:$0xff]
    %v133 = vld [vmem:[#allocation5 + $0x180] sm:$0xff]
    %v134 = vld [vmem:[#allocation5 + $0x188] sm:$0xff]
    %v135 = vld [vmem:[#allocation5 + $0x190] sm:$0xff]
    %v136 = vld [vmem:[#allocation5 + $0x198] sm:$0xff]
    %v137 = vld [vmem:[#allocation5 + $0x1a0] sm:$0xff]
    %v138 = vld [vmem:[#allocation5 + $0x1a8] sm:$0xff]
    %v139 = vld [vmem:[#allocation5 + $0x1b0] sm:$0xff]
    %v140 = vld [vmem:[#allocation5 + $0x1b8] sm:$0xff]
    %v141 = vld [vmem:[#allocation5 + $0x1c0] sm:$0xff]
    %v142 = vld [vmem:[#allocation5 + $0x1c8] sm:$0xff]
    %v143 = vld [vmem:[#allocation5 + $0x1d0] sm:$0xff]
    %v144 = vld [vmem:[#allocation5 + $0x1d8] sm:$0xff]
    %v145 = vld [vmem:[#allocation5 + $0x1e0] sm:$0xff]
    %v146 = vld [vmem:[#allocation5 + $0x1e8] sm:$0xff]
    %v147 = vld [vmem:[#allocation5 + $0x1f0] sm:$0xff]
    %v148 = vld [vmem:[#allocation5 + $0x1f8] sm:$0xff]
    %v149 = vld [vmem:[#allocation5 + $0x200] sm:$0xff]
    %v150 = vld [vmem:[#allocation5 + $0x208] sm:$0xff]
    %v151 = vld [vmem:[#allocation5 + $0x210] sm:$0xff]
    %v152 = vld [vmem:[#allocation5 + $0x218] sm:$0xff]
    %v153 = vld [vmem:[#allocation5 + $0x220] sm:$0xff]
    %v154 = vld [vmem:[#allocation5 + $0x228] sm:$0xff]
    %v155 = vld [vmem:[#allocation5 + $0x230] sm:$0xff]
    %v156 = vld [vmem:[#allocation5 + $0x238] sm:$0xff]
    %v157 = vld [vmem:[#allocation5 + $0x240] sm:$0xff]
    %v158 = vld [vmem:[#allocation5 + $0x248] sm:$0xff]
    %v159 = vld [vmem:[#allocation5 + $0x250] sm:$0xff]
    %v160 = vld [vmem:[#allocation5 + $0x258] sm:$0xff]
    %v161 = vld [vmem:[#allocation5 + $0x260] sm:$0xff]
    %v162 = vld [vmem:[#allocation5 + $0x268] sm:$0xff]
    %v163 = vld [vmem:[#allocation5 + $0x270] sm:$0xff]
    %v164 = vld [vmem:[#allocation5 + $0x278] sm:$0xff]
    %v165 = vld [vmem:[#allocation5 + $0x280] sm:$0xff]
    %v166 = vld [vmem:[#allocation5 + $0x288] sm:$0xff]
    %v167 = vld [vmem:[#allocation5 + $0x290] sm:$0xff]
    %v168 = vld [vmem:[#allocation5 + $0x298] sm:$0xff]
    %v169 = vld [vmem:[#allocation5 + $0x2a0] sm:$0xff]
    %v170 = vld [vmem:[#allocation5 + $0x2a8] sm:$0xff]
    %v171 = vld [vmem:[#allocation5 + $0x2b0] sm:$0xff]
    %v172 = vld [vmem:[#allocation5 + $0x2b8] sm:$0xff]
    %v173 = vld [vmem:[#allocation5 + $0x2c0] sm:$0xff]
    %v174 = vld [vmem:[#allocation5 + $0x2c8] sm:$0xff]
    %v175 = vld [vmem:[#allocation5 + $0x2d0] sm:$0xff]
    %v176 = vld [vmem:[#allocation5 + $0x2d8] sm:$0xff]
    %v177 = vld [vmem:[#allocation5 + $0x2e0] sm:$0xff]
    %v178 = vld [vmem:[#allocation5 + $0x2e8] sm:$0xff]
    %v179 = vld [vmem:[#allocation5 + $0x2f0] sm:$0xff]
    %v180 = vld [vmem:[#allocation5 + $0x2f8] sm:$0xff]
    %v181 = vld [vmem:[#allocation5 + $0x300] sm:$0xff]
    %v182 = vld [vmem:[#allocation5 + $0x308] sm:$0xff]
    %v183 = vld [vmem:[#allocation5 + $0x310] sm:$0xff]
    %v184 = vld [vmem:[#allocation5 + $0x318] sm:$0xff]
    %v185 = vld [vmem:[#allocation5 + $0x320] sm:$0xff]
    %v186 = vld [vmem:[#allocation5 + $0x328] sm:$0xff]
    %v187 = vld [vmem:[#allocation5 + $0x330] sm:$0xff]
    %v188 = vld [vmem:[#allocation5 + $0x338] sm:$0xff]
    %v189 = vld [vmem:[#allocation5 + $0x340] sm:$0xff]
    %v190 = vld [vmem:[#allocation5 + $0x348] sm:$0xff]
    %v191 = vld [vmem:[#allocation5 + $0x350] sm:$0xff]
    %v192 = vld [vmem:[#allocation5 + $0x358] sm:$0xff]
    %v193 = vld [vmem:[#allocation5 + $0x360] sm:$0xff]
    %v194 = vld [vmem:[#allocation5 + $0x368] sm:$0xff]
    %v195 = vld [vmem:[#allocation5 + $0x370] sm:$0xff]
    %v196 = vld [vmem:[#allocation5 + $0x378] sm:$0xff]
    %v197 = vld [vmem:[#allocation5 + $0x380] sm:$0xff]
    %v198 = vld [vmem:[#allocation5 + $0x388] sm:$0xff]
    %v199 = vld [vmem:[#allocation5 + $0x390] sm:$0xff]
    %v200 = vld [vmem:[#allocation5 + $0x398] sm:$0xff]
    %v201 = vld [vmem:[#allocation5 + $0x3a0] sm:$0xff]
    %v202 = vld [vmem:[#allocation5 + $0x3a8] sm:$0xff]
    %v203 = vld [vmem:[#allocation5 + $0x3b0] sm:$0xff]
    %v204 = vld [vmem:[#allocation5 + $0x3b8] sm:$0xff]
    %v205 = vld [vmem:[#allocation5 + $0x3c0] sm:$0xff]
    %v206 = vld [vmem:[#allocation5 + $0x3c8] sm:$0xff]
    %v207 = vld [vmem:[#allocation5 + $0x3d0] sm:$0xff]
    %v208 = vld [vmem:[#allocation5 + $0x3d8] sm:$0xff]
    %v209 = vld [vmem:[#allocation5 + $0x3e0] sm:$0xff]
    %v210 = vld [vmem:[#allocation5 + $0x3e8] sm:$0xff]
    %v211 = vld [vmem:[#allocation5 + $0x3f0] sm:$0xff]
    %v212 = vld [vmem:[#allocation5 + $0x3f8] sm:$0xff]
    %v213 = vld [vmem:[#allocation5 + $0x400] sm:$0xff]
    %v214 = vld [vmem:[#allocation5 + $0x408] sm:$0xff]
    %v215 = vld [vmem:[#allocation5 + $0x410] sm:$0xff]
    %v216 = vld [vmem:[#allocation5 + $0x418] sm:$0xff]
    %v217 = vld [vmem:[#allocation5 + $0x420] sm:$0xff]
    %v218 = vld [vmem:[#allocation5 + $0x428] sm:$0xff]
    %v219 = vld [vmem:[#allocation5 + $0x430] sm:$0xff]
    %v220 = vld [vmem:[#allocation5 + $0x438] sm:$0xff]
    %v221 = vld [vmem:[#allocation5 + $0x440] sm:$0xff]
    %v222 = vld [vmem:[#allocation5 + $0x448] sm:$0xff]
    %v223 = vld [vmem:[#allocation5 + $0x450] sm:$0xff]
    %v224 = vld [vmem:[#allocation5 + $0x458] sm:$0xff]
    %v225 = vld [vmem:[#allocation5 + $0x460] sm:$0xff]
    %v226 = vld [vmem:[#allocation5 + $0x468] sm:$0xff]
    %v227 = vld [vmem:[#allocation5 + $0x470] sm:$0xff]
    %v228 = vld [vmem:[#allocation5 + $0x478] sm:$0xff]
    %v229 = vld [vmem:[#allocation5 + $0x480] sm:$0xff]
    %v230 = vld [vmem:[#allocation5 + $0x488] sm:$0xff]
    %v231 = vld [vmem:[#allocation5 + $0x490] sm:$0xff]
    %v232 = vld [vmem:[#allocation5 + $0x498] sm:$0xff]
    %v233 = vld [vmem:[#allocation5 + $0x4a0] sm:$0xff]
    %v234 = vld [vmem:[#allocation5 + $0x4a8] sm:$0xff]
    %v235 = vld [vmem:[#allocation5 + $0x4b0] sm:$0xff]
    %v236 = vld [vmem:[#allocation5 + $0x4b8] sm:$0xff]
    %v237 = vld [vmem:[#allocation5 + $0x4c0] sm:$0xff]
    %v238 = vld [vmem:[#allocation5 + $0x4c8] sm:$0xff]
    %v239 = vld [vmem:[#allocation5 + $0x4d0] sm:$0xff]
    %v240 = vld [vmem:[#allocation5 + $0x4d8] sm:$0xff]
    %v241 = vld [vmem:[#allocation5 + $0x4e0] sm:$0xff]
    %v242 = vld [vmem:[#allocation5 + $0x4e8] sm:$0xff]
    %v243 = vld [vmem:[#allocation5 + $0x4f0] sm:$0xff]
    %v244 = vld [vmem:[#allocation5 + $0x4f8] sm:$0xff]
    %v245 = vld [vmem:[#allocation5 + $0x500] sm:$0xff]
    %v246 = vld [vmem:[#allocation5 + $0x508] sm:$0xff]
    %v247 = vld [vmem:[#allocation5 + $0x510] sm:$0xff]
    %v248 = vld [vmem:[#allocation5 + $0x518] sm:$0xff]
    %v249 = vld [vmem:[#allocation5 + $0x520] sm:$0xff]
    %v250 = vld [vmem:[#allocation5 + $0x528] sm:$0xff]
    %v251 = vld [vmem:[#allocation5 + $0x530] sm:$0xff]
    %v252 = vld [vmem:[#allocation5 + $0x538] sm:$0xff]
    %v253 = vld [vmem:[#allocation5 + $0x540] sm:$0xff]
    %v254 = vld [vmem:[#allocation5 + $0x548] sm:$0xff]
    %v255 = vld [vmem:[#allocation5 + $0x550] sm:$0xff]
    %v256 = vld [vmem:[#allocation5 + $0x558] sm:$0xff]
    %v257 = vld [vmem:[#allocation5 + $0x560] sm:$0xff]
    %v258 = vld [vmem:[#allocation5 + $0x568] sm:$0xff]
    %v259 = vld [vmem:[#allocation5 + $0x570] sm:$0xff]
    %v260 = vld [vmem:[#allocation5 + $0x578] sm:$0xff]
    %v261 = vld [vmem:[#allocation5 + $0x580] sm:$0xff]
    %v262 = vld [vmem:[#allocation5 + $0x588] sm:$0xff]
    %v263 = vld [vmem:[#allocation5 + $0x590] sm:$0xff]
    %v264 = vld [vmem:[#allocation5 + $0x598] sm:$0xff]
    %v265 = vld [vmem:[#allocation5 + $0x5a0] sm:$0xff]
    %v266 = vld [vmem:[#allocation5 + $0x5a8] sm:$0xff]
    %v267 = vld [vmem:[#allocation5 + $0x5b0] sm:$0xff]
    %v268 = vld [vmem:[#allocation5 + $0x5b8] sm:$0xff]
    %v269 = vld [vmem:[#allocation5 + $0x5c0] sm:$0xff]
    %v270 = vld [vmem:[#allocation5 + $0x5c8] sm:$0xff]
    %v271 = vld [vmem:[#allocation5 + $0x5d0] sm:$0xff]
    %v272 = vld [vmem:[#allocation5 + $0x5d8] sm:$0xff]
    %v273 = vld [vmem:[#allocation5 + $0x5e0] sm:$0xff]
    %v274 = vld [vmem:[#allocation5 + $0x5e8] sm:$0xff]
    %v275 = vld [vmem:[#allocation5 + $0x5f0] sm:$0xff]
    %v276 = vld [vmem:[#allocation5 + $0x5f8] sm:$0xff]
    %v277 = vld [vmem:[#allocation5 + $0x600] sm:$0xff]
    %v278 = vld [vmem:[#allocation5 + $0x608] sm:$0xff]
    %v279 = vld [vmem:[#allocation5 + $0x610] sm:$0xff]
    %v280 = vld [vmem:[#allocation5 + $0x618] sm:$0xff]
    %v281 = vld [vmem:[#allocation5 + $0x620] sm:$0xff]
    %v282 = vld [vmem:[#allocation5 + $0x628] sm:$0xff]
    %v283 = vld [vmem:[#allocation5 + $0x630] sm:$0xff]
    %v284 = vld [vmem:[#allocation5 + $0x638] sm:$0xff]
    %v285 = vld [vmem:[#allocation5 + $0x640] sm:$0xff]
    %v286 = vld [vmem:[#allocation5 + $0x648] sm:$0xff]
    %v287 = vld [vmem:[#allocation5 + $0x650] sm:$0xff]
    %v288 = vld [vmem:[#allocation5 + $0x658] sm:$0xff]
    %v289 = vld [vmem:[#allocation5 + $0x660] sm:$0xff]
    %v290 = vld [vmem:[#allocation5 + $0x668] sm:$0xff]
    %v291 = vld [vmem:[#allocation5 + $0x670] sm:$0xff]
    %v292 = vld [vmem:[#allocation5 + $0x678] sm:$0xff]
    %v293 = vld [vmem:[#allocation5 + $0x680] sm:$0xff]
    %v294 = vld [vmem:[#allocation5 + $0x688] sm:$0xff]
    %v295 = vld [vmem:[#allocation5 + $0x690] sm:$0xff]
    %v296 = vld [vmem:[#allocation5 + $0x698] sm:$0xff]
    %v297 = vld [vmem:[#allocation5 + $0x6a0] sm:$0xff]
    %v298 = vld [vmem:[#allocation5 + $0x6a8] sm:$0xff]
    %v299 = vld [vmem:[#allocation5 + $0x6b0] sm:$0xff]
    %v300 = vld [vmem:[#allocation5 + $0x6b8] sm:$0xff]
    %v301 = vld [vmem:[#allocation5 + $0x6c0] sm:$0xff]
    %v302 = vld [vmem:[#allocation5 + $0x6c8] sm:$0xff]
    %v303 = vld [vmem:[#allocation5 + $0x6d0] sm:$0xff]
    %v304 = vld [vmem:[#allocation5 + $0x6d8] sm:$0xff]
    %v305 = vld [vmem:[#allocation5 + $0x6e0] sm:$0xff]
    %v306 = vld [vmem:[#allocation5 + $0x6e8] sm:$0xff]
    %v307 = vld [vmem:[#allocation5 + $0x6f0] sm:$0xff]
    %v308 = vld [vmem:[#allocation5 + $0x6f8] sm:$0xff]
    %v309 = vld [vmem:[#allocation5 + $0x700] sm:$0xff]
    %v310 = vld [vmem:[#allocation5 + $0x708] sm:$0xff]
    %v311 = vld [vmem:[#allocation5 + $0x710] sm:$0xff]
    %v312 = vld [vmem:[#allocation5 + $0x718] sm:$0xff]
    %v313 = vld [vmem:[#allocation5 + $0x720] sm:$0xff]
    %v314 = vld [vmem:[#allocation5 + $0x728] sm:$0xff]
    %v315 = vld [vmem:[#allocation5 + $0x730] sm:$0xff]
    %v316 = vld [vmem:[#allocation5 + $0x738] sm:$0xff]
    %v317 = vld [vmem:[#allocation5 + $0x740] sm:$0xff]
    %v318 = vld [vmem:[#allocation5 + $0x748] sm:$0xff]
    %v319 = vld [vmem:[#allocation5 + $0x750] sm:$0xff]
    %v320 = vld [vmem:[#allocation5 + $0x758] sm:$0xff]
    %v321 = vld [vmem:[#allocation5 + $0x760] sm:$0xff]
    %v322 = vld [vmem:[#allocation5 + $0x768] sm:$0xff]
    %v323 = vld [vmem:[#allocation5 + $0x770] sm:$0xff]
    %v324 = vld [vmem:[#allocation5 + $0x778] sm:$0xff]
    %v325 = vld [vmem:[#allocation5 + $0x780] sm:$0xff]
    %v326 = vld [vmem:[#allocation5 + $0x788] sm:$0xff]
    %v327 = vld [vmem:[#allocation5 + $0x790] sm:$0xff]
    %v328 = vld [vmem:[#allocation5 + $0x798] sm:$0xff]
    %v329 = vld [vmem:[#allocation5 + $0x7a0] sm:$0xff]
    %v330 = vld [vmem:[#allocation5 + $0x7a8] sm:$0xff]
    %v331 = vld [vmem:[#allocation5 + $0x7b0] sm:$0xff]
    %v332 = vld [vmem:[#allocation5 + $0x7b8] sm:$0xff]
    %v333 = vld [vmem:[#allocation5 + $0x7c0] sm:$0xff]
    %v334 = vld [vmem:[#allocation5 + $0x7c8] sm:$0xff]
    %v335 = vld [vmem:[#allocation5 + $0x7d0] sm:$0xff]
    %v336 = vld [vmem:[#allocation5 + $0x7d8] sm:$0xff]
    %v337 = vld [vmem:[#allocation5 + $0x7e0] sm:$0xff]
    %v338 = vld [vmem:[#allocation5 + $0x7e8] sm:$0xff]
    %v339 = vld [vmem:[#allocation5 + $0x7f0] sm:$0xff]
    %v340 = vld [vmem:[#allocation5 + $0x7f8] sm:$0xff]
    %v341 = vld [vmem:[#allocation5 + $0x800] sm:$0xff]
    %v342 = vld [vmem:[#allocation5 + $0x808] sm:$0xff]
    %v343 = vld [vmem:[#allocation5 + $0x810] sm:$0xff]
    %v344 = vld [vmem:[#allocation5 + $0x818] sm:$0xff]
    %v345 = vld [vmem:[#allocation5 + $0x820] sm:$0xff]
    %v346 = vld [vmem:[#allocation5 + $0x828] sm:$0xff]
    %v347 = vld [vmem:[#allocation5 + $0x830] sm:$0xff]
    %v348 = vld [vmem:[#allocation5 + $0x838] sm:$0xff]
    %v349 = vld [vmem:[#allocation5 + $0x840] sm:$0xff]
    %v350 = vld [vmem:[#allocation5 + $0x848] sm:$0xff]
    %v351 = vld [vmem:[#allocation5 + $0x850] sm:$0xff]
    %v352 = vld [vmem:[#allocation5 + $0x858] sm:$0xff]
    %v353 = vld [vmem:[#allocation5 + $0x860] sm:$0xff]
    %v354 = vld [vmem:[#allocation5 + $0x868] sm:$0xff]
    %v355 = vld [vmem:[#allocation5 + $0x870] sm:$0xff]
    %v356 = vld [vmem:[#allocation5 + $0x878] sm:$0xff]
    %v357 = vld [vmem:[#allocation5 + $0x880] sm:$0xff]
    %v358 = vld [vmem:[#allocation5 + $0x888] sm:$0xff]
    %v359 = vld [vmem:[#allocation5 + $0x890] sm:$0xff]
    %v360 = vld [vmem:[#allocation5 + $0x898] sm:$0xff]
    %v361 = vld [vmem:[#allocation5 + $0x8a0] sm:$0xff]
    %v362 = vld [vmem:[#allocation5 + $0x8a8] sm:$0xff]
    %v363 = vld [vmem:[#allocation5 + $0x8b0] sm:$0xff]
    %v364 = vld [vmem:[#allocation5 + $0x8b8] sm:$0xff]
    %v365 = vld [vmem:[#allocation5 + $0x8c0] sm:$0xff]
    %v366 = vld [vmem:[#allocation5 + $0x8c8] sm:$0xff]
    %v367 = vld [vmem:[#allocation5 + $0x8d0] sm:$0xff]
    %v368 = vld [vmem:[#allocation5 + $0x8d8] sm:$0xff]
    %v369 = vld [vmem:[#allocation5 + $0x8e0] sm:$0xff]
    %v370 = vld [vmem:[#allocation5 + $0x8e8] sm:$0xff]
    %v371 = vld [vmem:[#allocation5 + $0x8f0] sm:$0xff]
    %v372 = vld [vmem:[#allocation5 + $0x8f8] sm:$0xff]
    %v373 = vld [vmem:[#allocation5 + $0x900] sm:$0xff]
    %v374 = vld [vmem:[#allocation5 + $0x908] sm:$0xff]
    %v375 = vld [vmem:[#allocation5 + $0x910] sm:$0xff]
    %v376 = vld [vmem:[#allocation5 + $0x918] sm:$0xff]
    %v377 = vld [vmem:[#allocation5 + $0x920] sm:$0xff]
    %v378 = vld [vmem:[#allocation5 + $0x928] sm:$0xff]
    %v379 = vld [vmem:[#allocation5 + $0x930] sm:$0xff]
    %v380 = vld [vmem:[#allocation5 + $0x938] sm:$0xff]
    %v381 = vld [vmem:[#allocation5 + $0x940] sm:$0xff]
    %v382 = vld [vmem:[#allocation5 + $0x948] sm:$0xff]
    %v383 = vld [vmem:[#allocation5 + $0x950] sm:$0xff]
    %v384 = vld [vmem:[#allocation5 + $0x958] sm:$0xff]
    %v385 = vld [vmem:[#allocation5 + $0x960] sm:$0xff]
    %v386 = vld [vmem:[#allocation5 + $0x968] sm:$0xff]
    %v387 = vld [vmem:[#allocation5 + $0x970] sm:$0xff]
    %v388 = vld [vmem:[#allocation5 + $0x978] sm:$0xff]
    %v389 = vld [vmem:[#allocation5 + $0x980] sm:$0xff]
    %v390 = vld [vmem:[#allocation5 + $0x988] sm:$0xff]
    %v391 = vld [vmem:[#allocation5 + $0x990] sm:$0xff]
    %v392 = vld [vmem:[#allocation5 + $0x998] sm:$0xff]
    %v393 = vld [vmem:[#allocation5 + $0x9a0] sm:$0xff]
    %v394 = vld [vmem:[#allocation5 + $0x9a8] sm:$0xff]
    %v395 = vld [vmem:[#allocation5 + $0x9b0] sm:$0xff]
    %v396 = vld [vmem:[#allocation5 + $0x9b8] sm:$0xff]
    %v397 = vld [vmem:[#allocation5 + $0x9c0] sm:$0xff]
    %v398 = vld [vmem:[#allocation5 + $0x9c8] sm:$0xff]
    %v399 = vld [vmem:[#allocation5 + $0x9d0] sm:$0xff]
    %v400 = vld [vmem:[#allocation5 + $0x9d8] sm:$0xff]
    %v401 = vld [vmem:[#allocation5 + $0x9e0] sm:$0xff]
    %v402 = vld [vmem:[#allocation5 + $0x9e8] sm:$0xff]
    %v403 = vld [vmem:[#allocation5 + $0x9f0] sm:$0xff]
    %v404 = vld [vmem:[#allocation5 + $0x9f8] sm:$0xff]
    %v405 = vld [vmem:[#allocation5 + $0xa00] sm:$0xff]
    %v406 = vld [vmem:[#allocation5 + $0xa08] sm:$0xff]
    %v407 = vld [vmem:[#allocation5 + $0xa10] sm:$0xff]
    %v408 = vld [vmem:[#allocation5 + $0xa18] sm:$0xff]
    %v409 = vld [vmem:[#allocation5 + $0xa20] sm:$0xff]
    %v410 = vld [vmem:[#allocation5 + $0xa28] sm:$0xff]
    %v411 = vld [vmem:[#allocation5 + $0xa30] sm:$0xff]
    %v412 = vld [vmem:[#allocation5 + $0xa38] sm:$0xff]
    %v413 = vld [vmem:[#allocation5 + $0xa40] sm:$0xff]
    %v414 = vld [vmem:[#allocation5 + $0xa48] sm:$0xff]
    %v415 = vld [vmem:[#allocation5 + $0xa50] sm:$0xff]
    %v416 = vld [vmem:[#allocation5 + $0xa58] sm:$0xff]
    %v417 = vld [vmem:[#allocation5 + $0xa60] sm:$0xff]
    %v418 = vld [vmem:[#allocation5 + $0xa68] sm:$0xff]
    %v419 = vld [vmem:[#allocation5 + $0xa70] sm:$0xff]
    %v420 = vld [vmem:[#allocation5 + $0xa78] sm:$0xff]
    %v421 = vld [vmem:[#allocation5 + $0xa80] sm:$0xff]
    %v422 = vld [vmem:[#allocation5 + $0xa88] sm:$0xff]
    %v423 = vld [vmem:[#allocation5 + $0xa90] sm:$0xff]
    %v424 = vld [vmem:[#allocation5 + $0xa98] sm:$0xff]
    %v425 = vld [vmem:[#allocation5 + $0xaa0] sm:$0xff]
    %v426 = vld [vmem:[#allocation5 + $0xaa8] sm:$0xff]
    %v427 = vld [vmem:[#allocation5 + $0xab0] sm:$0xff]
    %v428 = vld [vmem:[#allocation5 + $0xab8] sm:$0xff]
    %v429 = vld [vmem:[#allocation5 + $0xac0] sm:$0xff]
    %v430 = vld [vmem:[#allocation5 + $0xac8] sm:$0xff]
    %v431 = vld [vmem:[#allocation5 + $0xad0] sm:$0xff]
    %v432 = vld [vmem:[#allocation5 + $0xad8] sm:$0xff]
    %v433 = vld [vmem:[#allocation5 + $0xae0] sm:$0xff]
    %v434 = vld [vmem:[#allocation5 + $0xae8] sm:$0xff]
    %v435 = vld [vmem:[#allocation5 + $0xaf0] sm:$0xff]
    %v436 = vld [vmem:[#allocation5 + $0xaf8] sm:$0xff]
    %v437 = vld [vmem:[#allocation5 + $0xb00] sm:$0xff]
    %v438 = vld [vmem:[#allocation5 + $0xb08] sm:$0xff]
    %v439 = vld [vmem:[#allocation5 + $0xb10] sm:$0xff]
    %v440 = vld [vmem:[#allocation5 + $0xb18] sm:$0xff]
    %v441 = vld [vmem:[#allocation5 + $0xb20] sm:$0xff]
    %v442 = vld [vmem:[#allocation5 + $0xb28] sm:$0xff]
    %v443 = vld [vmem:[#allocation5 + $0xb30] sm:$0xff]
    %v444 = vld [vmem:[#allocation5 + $0xb38] sm:$0xff]
    %v445 = vld [vmem:[#allocation5 + $0xb40] sm:$0xff]
    %v446 = vld [vmem:[#allocation5 + $0xb48] sm:$0xff]
    %v447 = vld [vmem:[#allocation5 + $0xb50] sm:$0xff]
    %v448 = vld [vmem:[#allocation5 + $0xb58] sm:$0xff]
    %v449 = vld [vmem:[#allocation5 + $0xb60] sm:$0xff]
    %v450 = vld [vmem:[#allocation5 + $0xb68] sm:$0xff]
    %v451 = vld [vmem:[#allocation5 + $0xb70] sm:$0xff]
    %v452 = vld [vmem:[#allocation5 + $0xb78] sm:$0xff]
    %v453 = vld [vmem:[#allocation5 + $0xb80] sm:$0xff]
    %v454 = vld [vmem:[#allocation5 + $0xb88] sm:$0xff]
    %v455 = vld [vmem:[#allocation5 + $0xb90] sm:$0xff]
    %v456 = vld [vmem:[#allocation5 + $0xb98] sm:$0xff]
    %v457 = vld [vmem:[#allocation5 + $0xba0] sm:$0xff]
    %v458 = vld [vmem:[#allocation5 + $0xba8] sm:$0xff]
    %v459 = vld [vmem:[#allocation5 + $0xbb0] sm:$0xff]
    %v460 = vld [vmem:[#allocation5 + $0xbb8] sm:$0xff]
    %v461 = vld [vmem:[#allocation5 + $0xbc0] sm:$0xff]
    %v462 = vld [vmem:[#allocation5 + $0xbc8] sm:$0xff]
    %v463 = vld [vmem:[#allocation5 + $0xbd0] sm:$0xff]
    %v464 = vld [vmem:[#allocation5 + $0xbd8] sm:$0xff]
    %v465 = vld [vmem:[#allocation5 + $0xbe0] sm:$0xff]
    %v466 = vld [vmem:[#allocation5 + $0xbe8] sm:$0xff]
    %v467 = vld [vmem:[#allocation5 + $0xbf0] sm:$0xff]
    %v468 = vld [vmem:[#allocation5 + $0xbf8] sm:$0xff]
    %v469 = vld [vmem:[#allocation5 + $0xc00] sm:$0xff]
    %v470 = vld [vmem:[#allocation5 + $0xc08] sm:$0xff]
    %v471 = vld [vmem:[#allocation5 + $0xc10] sm:$0xff]
    %v472 = vld [vmem:[#allocation5 + $0xc18] sm:$0xff]
    %v473 = vld [vmem:[#allocation5 + $0xc20] sm:$0xff]
    %v474 = vld [vmem:[#allocation5 + $0xc28] sm:$0xff]
    %v475 = vld [vmem:[#allocation5 + $0xc30] sm:$0xff]
    %v476 = vld [vmem:[#allocation5 + $0xc38] sm:$0xff]
    %v477 = vld [vmem:[#allocation5 + $0xc40] sm:$0xff]
    %v478 = vld [vmem:[#allocation5 + $0xc48] sm:$0xff]
    %v479 = vld [vmem:[#allocation5 + $0xc50] sm:$0xff]
    %v480 = vld [vmem:[#allocation5 + $0xc58] sm:$0xff]
    %v481 = vld [vmem:[#allocation5 + $0xc60] sm:$0xff]
    %v482 = vld [vmem:[#allocation5 + $0xc68] sm:$0xff]
    %v483 = vld [vmem:[#allocation5 + $0xc70] sm:$0xff]
    %v484 = vld [vmem:[#allocation5 + $0xc78] sm:$0xff]
    %v485 = vld [vmem:[#allocation5 + $0xc80] sm:$0xff]
    %v486 = vld [vmem:[#allocation5 + $0xc88] sm:$0xff]
    %v487 = vld [vmem:[#allocation5 + $0xc90] sm:$0xff]
    %v488 = vld [vmem:[#allocation5 + $0xc98] sm:$0xff]
    %v489 = vld [vmem:[#allocation5 + $0xca0] sm:$0xff]
    %v490 = vld [vmem:[#allocation5 + $0xca8] sm:$0xff]
    %v491 = vld [vmem:[#allocation5 + $0xcb0] sm:$0xff]
    %v492 = vld [vmem:[#allocation5 + $0xcb8] sm:$0xff]
    %v493 = vld [vmem:[#allocation5 + $0xcc0] sm:$0xff]
    %v494 = vld [vmem:[#allocation5 + $0xcc8] sm:$0xff]
    %v495 = vld [vmem:[#allocation5 + $0xcd0] sm:$0xff]
    %v496 = vld [vmem:[#allocation5 + $0xcd8] sm:$0xff]
    %v497 = vld [vmem:[#allocation5 + $0xce0] sm:$0xff]
    %v498 = vld [vmem:[#allocation5 + $0xce8] sm:$0xff]
    %v499 = vld [vmem:[#allocation5 + $0xcf0] sm:$0xff]
    %v500 = vld [vmem:[#allocation5 + $0xcf8] sm:$0xff]
    %v501 = vld [vmem:[#allocation5 + $0xd00] sm:$0xff]
    %v502 = vld [vmem:[#allocation5 + $0xd08] sm:$0xff]
    %v503 = vld [vmem:[#allocation5 + $0xd10] sm:$0xff]
    %v504 = vld [vmem:[#allocation5 + $0xd18] sm:$0xff]
    %v505 = vld [vmem:[#allocation5 + $0xd20] sm:$0xff]
    %v506 = vld [vmem:[#allocation5 + $0xd28] sm:$0xff]
    %v507 = vld [vmem:[#allocation5 + $0xd30] sm:$0xff]
    %v508 = vld [vmem:[#allocation5 + $0xd38] sm:$0xff]
    %v509 = vld [vmem:[#allocation5 + $0xd40] sm:$0xff]
    %v510 = vld [vmem:[#allocation5 + $0xd48] sm:$0xff]
    %v511 = vld [vmem:[#allocation5 + $0xd50] sm:$0xff]
    %v512 = vld [vmem:[#allocation5 + $0xd58] sm:$0xff]
    %v513 = vld [vmem:[#allocation5 + $0xd60] sm:$0xff]
    %v514 = vld [vmem:[#allocation5 + $0xd68] sm:$0xff]
    %v515 = vld [vmem:[#allocation5 + $0xd70] sm:$0xff]
    %v516 = vld [vmem:[#allocation5 + $0xd78] sm:$0xff]
    %v517 = vld [vmem:[#allocation5 + $0xd80] sm:$0xff]
    %v518 = vld [vmem:[#allocation5 + $0xd88] sm:$0xff]
    %v519 = vld [vmem:[#allocation5 + $0xd90] sm:$0xff]
    %v520 = vld [vmem:[#allocation5 + $0xd98] sm:$0xff]
    %v521 = vld [vmem:[#allocation5 + $0xda0] sm:$0xff]
    %v522 = vld [vmem:[#allocation5 + $0xda8] sm:$0xff]
    %v523 = vld [vmem:[#allocation5 + $0xdb0] sm:$0xff]
    %v524 = vld [vmem:[#allocation5 + $0xdb8] sm:$0xff]
    %v525 = vld [vmem:[#allocation5 + $0xdc0] sm:$0xff]
    %v526 = vld [vmem:[#allocation5 + $0xdc8] sm:$0xff]
    %v527 = vld [vmem:[#allocation5 + $0xdd0] sm:$0xff]
    %v528 = vld [vmem:[#allocation5 + $0xdd8] sm:$0xff]
    %v529 = vld [vmem:[#allocation5 + $0xde0] sm:$0xff]
    %v530 = vld [vmem:[#allocation5 + $0xde8] sm:$0xff]
    %v531 = vld [vmem:[#allocation5 + $0xdf0] sm:$0xff]
    %v532 = vld [vmem:[#allocation5 + $0xdf8] sm:$0xff]
    %v533 = vld [vmem:[#allocation5 + $0xe00] sm:$0xff]
    %v534 = vld [vmem:[#allocation5 + $0xe08] sm:$0xff]
    %v535 = vld [vmem:[#allocation5 + $0xe10] sm:$0xff]
    %v536 = vld [vmem:[#allocation5 + $0xe18] sm:$0xff]
    %v537 = vld [vmem:[#allocation5 + $0xe20] sm:$0xff]
    %v538 = vld [vmem:[#allocation5 + $0xe28] sm:$0xff]
    %v539 = vld [vmem:[#allocation5 + $0xe30] sm:$0xff]
    %v540 = vld [vmem:[#allocation5 + $0xe38] sm:$0xff]
    %v541 = vld [vmem:[#allocation5 + $0xe40] sm:$0xff]
    %v542 = vld [vmem:[#allocation5 + $0xe48] sm:$0xff]
    %v543 = vld [vmem:[#allocation5 + $0xe50] sm:$0xff]
    %v544 = vld [vmem:[#allocation5 + $0xe58] sm:$0xff]
    %v545 = vld [vmem:[#allocation5 + $0xe60] sm:$0xff]
    %v546 = vld [vmem:[#allocation5 + $0xe68] sm:$0xff]
    %v547 = vld [vmem:[#allocation5 + $0xe70] sm:$0xff]
    %v548 = vld [vmem:[#allocation5 + $0xe78] sm:$0xff]
    %v549 = vld [vmem:[#allocation5 + $0xe80] sm:$0xff]
    %v550 = vld [vmem:[#allocation5 + $0xe88] sm:$0xff]
    %v551 = vld [vmem:[#allocation5 + $0xe90] sm:$0xff]
    %v552 = vld [vmem:[#allocation5 + $0xe98] sm:$0xff]
    %v553 = vld [vmem:[#allocation5 + $0xea0] sm:$0xff]
    %v554 = vld [vmem:[#allocation5 + $0xea8] sm:$0xff]
    %v555 = vld [vmem:[#allocation5 + $0xeb0] sm:$0xff]
    %v556 = vld [vmem:[#allocation5 + $0xeb8] sm:$0xff]
    %v557 = vld [vmem:[#allocation5 + $0xec0] sm:$0xff]
    %v558 = vld [vmem:[#allocation5 + $0xec8] sm:$0xff]
    %v559 = vld [vmem:[#allocation5 + $0xed0] sm:$0xff]
    %v560 = vld [vmem:[#allocation5 + $0xed8] sm:$0xff]
    %v561 = vld [vmem:[#allocation5 + $0xee0] sm:$0xff]
    %v562 = vld [vmem:[#allocation5 + $0xee8] sm:$0xff]
    %v563 = vld [vmem:[#allocation5 + $0xef0] sm:$0xff]
    %v564 = vld [vmem:[#allocation5 + $0xef8] sm:$0xff]
    %v565 = vld [vmem:[#allocation5 + $0xf00] sm:$0xff]
    %v566 = vld [vmem:[#allocation5 + $0xf08] sm:$0xff]
    %v567 = vld [vmem:[#allocation5 + $0xf10] sm:$0xff]
    %v568 = vld [vmem:[#allocation5 + $0xf18] sm:$0xff]
    %v569 = vld [vmem:[#allocation5 + $0xf20] sm:$0xff]
    %v570 = vld [vmem:[#allocation5 + $0xf28] sm:$0xff]
    %v571 = vld [vmem:[#allocation5 + $0xf30] sm:$0xff]
    %v572 = vld [vmem:[#allocation5 + $0xf38] sm:$0xff]
    %v573 = vld [vmem:[#allocation5 + $0xf40] sm:$0xff]
    %v574 = vld [vmem:[#allocation5 + $0xf48] sm:$0xff]
    %v575 = vld [vmem:[#allocation5 + $0xf50] sm:$0xff]
    %v576 = vld [vmem:[#allocation5 + $0xf58] sm:$0xff]
    %v577 = vld [vmem:[#allocation5 + $0xf60] sm:$0xff]
    %v578 = vld [vmem:[#allocation5 + $0xf68] sm:$0xff]
    %v579 = vld [vmem:[#allocation5 + $0xf70] sm:$0xff]
    %v580 = vld [vmem:[#allocation5 + $0xf78] sm:$0xff]
    %v581 = vld [vmem:[#allocation5 + $0xf80] sm:$0xff]
    %v582 = vld [vmem:[#allocation5 + $0xf88] sm:$0xff]
    %v583 = vld [vmem:[#allocation5 + $0xf90] sm:$0xff]
    %v584 = vld [vmem:[#allocation5 + $0xf98] sm:$0xff]
    %v585 = vld [vmem:[#allocation5 + $0xfa0] sm:$0xff]
    %v586 = vld [vmem:[#allocation5 + $0xfa8] sm:$0xff]
    %v587 = vld [vmem:[#allocation5 + $0xfb0] sm:$0xff]
    %v588 = vld [vmem:[#allocation5 + $0xfb8] sm:$0xff]
    %v589 = vld [vmem:[#allocation5 + $0xfc0] sm:$0xff]
    %v590 = vld [vmem:[#allocation5 + $0xfc8] sm:$0xff]
    %v591 = vld [vmem:[#allocation5 + $0xfd0] sm:$0xff]
    %v592 = vld [vmem:[#allocation5 + $0xfd8] sm:$0xff]
    %v593 = vld [vmem:[#allocation5 + $0xfe0] sm:$0xff]
    %v594 = vld [vmem:[#allocation5 + $0xfe8] sm:$0xff]
    %v595 = vld [vmem:[#allocation5 + $0xff0] sm:$0xff]
    %v596 = vld [vmem:[#allocation5 + $0xff8] sm:$0xff]
    %v1109 = vunpack.c.l.b16 %v85
    %v1110 = vunpack.c.h.b16 %v85
    %v1111 = vunpack.c.l.b16 %v86
    %v1112 = vunpack.c.h.b16 %v86
    %v1113 = vunpack.c.l.b16 %v87
    %v1114 = vunpack.c.h.b16 %v87
    %v1115 = vunpack.c.l.b16 %v88
    %v1116 = vunpack.c.h.b16 %v88
    %v1117 = vunpack.c.l.b16 %v89
    %v1118 = vunpack.c.h.b16 %v89
    %v1119 = vunpack.c.l.b16 %v90
    %v1120 = vunpack.c.h.b16 %v90
    %v1121 = vunpack.c.l.b16 %v91
    %v1122 = vunpack.c.h.b16 %v91
    %v1123 = vunpack.c.l.b16 %v92
    %v1124 = vunpack.c.h.b16 %v92
    %v1125 = vunpack.c.l.b16 %v93
    %v1126 = vunpack.c.h.b16 %v93
    %v1127 = vunpack.c.l.b16 %v94
    %v1128 = vunpack.c.h.b16 %v94
    %v1129 = vunpack.c.l.b16 %v95
    %v1130 = vunpack.c.h.b16 %v95
    %v1131 = vunpack.c.l.b16 %v96
    %v1132 = vunpack.c.h.b16 %v96
    %v1133 = vunpack.c.l.b16 %v97
    %v1134 = vunpack.c.h.b16 %v97
    %v1135 = vunpack.c.l.b16 %v98
    %v1136 = vunpack.c.h.b16 %v98
    %v1137 = vunpack.c.l.b16 %v99
    %v1138 = vunpack.c.h.b16 %v99
    %v1139 = vunpack.c.l.b16 %v100
    %v1140 = vunpack.c.h.b16 %v100
    %v1141 = vunpack.c.l.b16 %v101
    %v1142 = vunpack.c.h.b16 %v101
    %v1143 = vunpack.c.l.b16 %v102
    %v1144 = vunpack.c.h.b16 %v102
    %v1145 = vunpack.c.l.b16 %v103
    %v1146 = vunpack.c.h.b16 %v103
    %v1147 = vunpack.c.l.b16 %v104
    %v1148 = vunpack.c.h.b16 %v104
    %v1149 = vunpack.c.l.b16 %v105
    %v1150 = vunpack.c.h.b16 %v105
    %v1151 = vunpack.c.l.b16 %v106
    %v1152 = vunpack.c.h.b16 %v106
    %v1153 = vunpack.c.l.b16 %v107
    %v1154 = vunpack.c.h.b16 %v107
    %v1155 = vunpack.c.l.b16 %v108
    %v1156 = vunpack.c.h.b16 %v108
    %v1157 = vunpack.c.l.b16 %v109
    %v1158 = vunpack.c.h.b16 %v109
    %v1159 = vunpack.c.l.b16 %v110
    %v1160 = vunpack.c.h.b16 %v110
    %v1161 = vunpack.c.l.b16 %v111
    %v1162 = vunpack.c.h.b16 %v111
    %v1163 = vunpack.c.l.b16 %v112
    %v1164 = vunpack.c.h.b16 %v112
    %v1165 = vunpack.c.l.b16 %v113
    %v1166 = vunpack.c.h.b16 %v113
    %v1167 = vunpack.c.l.b16 %v114
    %v1168 = vunpack.c.h.b16 %v114
    %v1169 = vunpack.c.l.b16 %v115
    %v1170 = vunpack.c.h.b16 %v115
    %v1171 = vunpack.c.l.b16 %v116
    %v1172 = vunpack.c.h.b16 %v116
    %v1173 = vunpack.c.l.b16 %v117
    %v1174 = vunpack.c.h.b16 %v117
    %v1175 = vunpack.c.l.b16 %v118
    %v1176 = vunpack.c.h.b16 %v118
    %v1177 = vunpack.c.l.b16 %v119
    %v1178 = vunpack.c.h.b16 %v119
    %v1179 = vunpack.c.l.b16 %v120
    %v1180 = vunpack.c.h.b16 %v120
    %v1181 = vunpack.c.l.b16 %v121
    %v1182 = vunpack.c.h.b16 %v121
    %v1183 = vunpack.c.l.b16 %v122
    %v1184 = vunpack.c.h.b16 %v122
    %v1185 = vunpack.c.l.b16 %v123
    %v1186 = vunpack.c.h.b16 %v123
    %v1187 = vunpack.c.l.b16 %v124
    %v1188 = vunpack.c.h.b16 %v124
    %v1189 = vunpack.c.l.b16 %v125
    %v1190 = vunpack.c.h.b16 %v125
    %v1191 = vunpack.c.l.b16 %v126
    %v1192 = vunpack.c.h.b16 %v126
    %v1193 = vunpack.c.l.b16 %v127
    %v1194 = vunpack.c.h.b16 %v127
    %v1195 = vunpack.c.l.b16 %v128
    %v1196 = vunpack.c.h.b16 %v128
    %v1197 = vunpack.c.l.b16 %v129
    %v1198 = vunpack.c.h.b16 %v129
    %v1199 = vunpack.c.l.b16 %v130
    %v1200 = vunpack.c.h.b16 %v130
    %v1201 = vunpack.c.l.b16 %v131
    %v1202 = vunpack.c.h.b16 %v131
    %v1203 = vunpack.c.l.b16 %v132
    %v1204 = vunpack.c.h.b16 %v132
    %v1205 = vunpack.c.l.b16 %v133
    %v1206 = vunpack.c.h.b16 %v133
    %v1207 = vunpack.c.l.b16 %v134
    %v1208 = vunpack.c.h.b16 %v134
    %v1209 = vunpack.c.l.b16 %v135
    %v1210 = vunpack.c.h.b16 %v135
    %v1211 = vunpack.c.l.b16 %v136
    %v1212 = vunpack.c.h.b16 %v136
    %v1213 = vunpack.c.l.b16 %v137
    %v1214 = vunpack.c.h.b16 %v137
    %v1215 = vunpack.c.l.b16 %v138
    %v1216 = vunpack.c.h.b16 %v138
    %v1217 = vunpack.c.l.b16 %v139
    %v1218 = vunpack.c.h.b16 %v139
    %v1219 = vunpack.c.l.b16 %v140
    %v1220 = vunpack.c.h.b16 %v140
    %v1221 = vunpack.c.l.b16 %v141
    %v1222 = vunpack.c.h.b16 %v141
    %v1223 = vunpack.c.l.b16 %v142
    %v1224 = vunpack.c.h.b16 %v142
    %v1225 = vunpack.c.l.b16 %v143
    %v1226 = vunpack.c.h.b16 %v143
    %v1227 = vunpack.c.l.b16 %v144
    %v1228 = vunpack.c.h.b16 %v144
    %v1229 = vunpack.c.l.b16 %v145
    %v1230 = vunpack.c.h.b16 %v145
    %v1231 = vunpack.c.l.b16 %v146
    %v1232 = vunpack.c.h.b16 %v146
    %v1233 = vunpack.c.l.b16 %v147
    %v1234 = vunpack.c.h.b16 %v147
    %v1235 = vunpack.c.l.b16 %v148
    %v1236 = vunpack.c.h.b16 %v148
    %v1237 = vunpack.c.l.b16 %v149
    %v1238 = vunpack.c.h.b16 %v149
    %v1239 = vunpack.c.l.b16 %v150
    %v1240 = vunpack.c.h.b16 %v150
    %v1241 = vunpack.c.l.b16 %v151
    %v1242 = vunpack.c.h.b16 %v151
    %v1243 = vunpack.c.l.b16 %v152
    %v1244 = vunpack.c.h.b16 %v152
    %v1245 = vunpack.c.l.b16 %v153
    %v1246 = vunpack.c.h.b16 %v153
    %v1247 = vunpack.c.l.b16 %v154
    %v1248 = vunpack.c.h.b16 %v154
    %v1249 = vunpack.c.l.b16 %v155
    %v1250 = vunpack.c.h.b16 %v155
    %v1251 = vunpack.c.l.b16 %v156
    %v1252 = vunpack.c.h.b16 %v156
    %v1253 = vunpack.c.l.b16 %v157
    %v1254 = vunpack.c.h.b16 %v157
    %v1255 = vunpack.c.l.b16 %v158
    %v1256 = vunpack.c.h.b16 %v158
    %v1257 = vunpack.c.l.b16 %v159
    %v1258 = vunpack.c.h.b16 %v159
    %v1259 = vunpack.c.l.b16 %v160
    %v1260 = vunpack.c.h.b16 %v160
    %v1261 = vunpack.c.l.b16 %v161
    %v1262 = vunpack.c.h.b16 %v161
    %v1263 = vunpack.c.l.b16 %v162
    %v1264 = vunpack.c.h.b16 %v162
    %v1265 = vunpack.c.l.b16 %v163
    %v1266 = vunpack.c.h.b16 %v163
    %v1267 = vunpack.c.l.b16 %v164
    %v1268 = vunpack.c.h.b16 %v164
    %v1269 = vunpack.c.l.b16 %v165
    %v1270 = vunpack.c.h.b16 %v165
    %v1271 = vunpack.c.l.b16 %v166
    %v1272 = vunpack.c.h.b16 %v166
    %v1273 = vunpack.c.l.b16 %v167
    %v1274 = vunpack.c.h.b16 %v167
    %v1275 = vunpack.c.l.b16 %v168
    %v1276 = vunpack.c.h.b16 %v168
    %v1277 = vunpack.c.l.b16 %v169
    %v1278 = vunpack.c.h.b16 %v169
    %v1279 = vunpack.c.l.b16 %v170
    %v1280 = vunpack.c.h.b16 %v170
    %v1281 = vunpack.c.l.b16 %v171
    %v1282 = vunpack.c.h.b16 %v171
    %v1283 = vunpack.c.l.b16 %v172
    %v1284 = vunpack.c.h.b16 %v172
    %v1285 = vunpack.c.l.b16 %v173
    %v1286 = vunpack.c.h.b16 %v173
    %v1287 = vunpack.c.l.b16 %v174
    %v1288 = vunpack.c.h.b16 %v174
    %v1289 = vunpack.c.l.b16 %v175
    %v1290 = vunpack.c.h.b16 %v175
    %v1291 = vunpack.c.l.b16 %v176
    %v1292 = vunpack.c.h.b16 %v176
    %v1293 = vunpack.c.l.b16 %v177
    %v1294 = vunpack.c.h.b16 %v177
    %v1295 = vunpack.c.l.b16 %v178
    %v1296 = vunpack.c.h.b16 %v178
    %v1297 = vunpack.c.l.b16 %v179
    %v1298 = vunpack.c.h.b16 %v179
    %v1299 = vunpack.c.l.b16 %v180
    %v1300 = vunpack.c.h.b16 %v180
    %v1301 = vunpack.c.l.b16 %v181
    %v1302 = vunpack.c.h.b16 %v181
    %v1303 = vunpack.c.l.b16 %v182
    %v1304 = vunpack.c.h.b16 %v182
    %v1305 = vunpack.c.l.b16 %v183
    %v1306 = vunpack.c.h.b16 %v183
    %v1307 = vunpack.c.l.b16 %v184
    %v1308 = vunpack.c.h.b16 %v184
    %v1309 = vunpack.c.l.b16 %v185
    %v1310 = vunpack.c.h.b16 %v185
    %v1311 = vunpack.c.l.b16 %v186
    %v1312 = vunpack.c.h.b16 %v186
    %v1313 = vunpack.c.l.b16 %v187
    %v1314 = vunpack.c.h.b16 %v187
    %v1315 = vunpack.c.l.b16 %v188
    %v1316 = vunpack.c.h.b16 %v188
    %v1317 = vunpack.c.l.b16 %v189
    %v1318 = vunpack.c.h.b16 %v189
    %v1319 = vunpack.c.l.b16 %v190
    %v1320 = vunpack.c.h.b16 %v190
    %v1321 = vunpack.c.l.b16 %v191
    %v1322 = vunpack.c.h.b16 %v191
    %v1323 = vunpack.c.l.b16 %v192
    %v1324 = vunpack.c.h.b16 %v192
    %v1325 = vunpack.c.l.b16 %v193
    %v1326 = vunpack.c.h.b16 %v193
    %v1327 = vunpack.c.l.b16 %v194
    %v1328 = vunpack.c.h.b16 %v194
    %v1329 = vunpack.c.l.b16 %v195
    %v1330 = vunpack.c.h.b16 %v195
    %v1331 = vunpack.c.l.b16 %v196
    %v1332 = vunpack.c.h.b16 %v196
    %v1333 = vunpack.c.l.b16 %v197
    %v1334 = vunpack.c.h.b16 %v197
    %v1335 = vunpack.c.l.b16 %v198
    %v1336 = vunpack.c.h.b16 %v198
    %v1337 = vunpack.c.l.b16 %v199
    %v1338 = vunpack.c.h.b16 %v199
    %v1339 = vunpack.c.l.b16 %v200
    %v1340 = vunpack.c.h.b16 %v200
    %v1341 = vunpack.c.l.b16 %v201
    %v1342 = vunpack.c.h.b16 %v201
    %v1343 = vunpack.c.l.b16 %v202
    %v1344 = vunpack.c.h.b16 %v202
    %v1345 = vunpack.c.l.b16 %v203
    %v1346 = vunpack.c.h.b16 %v203
    %v1347 = vunpack.c.l.b16 %v204
    %v1348 = vunpack.c.h.b16 %v204
    %v1349 = vunpack.c.l.b16 %v205
    %v1350 = vunpack.c.h.b16 %v205
    %v1351 = vunpack.c.l.b16 %v206
    %v1352 = vunpack.c.h.b16 %v206
    %v1353 = vunpack.c.l.b16 %v207
    %v1354 = vunpack.c.h.b16 %v207
    %v1355 = vunpack.c.l.b16 %v208
    %v1356 = vunpack.c.h.b16 %v208
    %v1357 = vunpack.c.l.b16 %v209
    %v1358 = vunpack.c.h.b16 %v209
    %v1359 = vunpack.c.l.b16 %v210
    %v1360 = vunpack.c.h.b16 %v210
    %v1361 = vunpack.c.l.b16 %v211
    %v1362 = vunpack.c.h.b16 %v211
    %v1363 = vunpack.c.l.b16 %v212
    %v1364 = vunpack.c.h.b16 %v212
    %v1365 = vunpack.c.l.b16 %v213
    %v1366 = vunpack.c.h.b16 %v213
    %v1367 = vunpack.c.l.b16 %v214
    %v1368 = vunpack.c.h.b16 %v214
    %v1369 = vunpack.c.l.b16 %v215
    %v1370 = vunpack.c.h.b16 %v215
    %v1371 = vunpack.c.l.b16 %v216
    %v1372 = vunpack.c.h.b16 %v216
    %v1373 = vunpack.c.l.b16 %v217
    %v1374 = vunpack.c.h.b16 %v217
    %v1375 = vunpack.c.l.b16 %v218
    %v1376 = vunpack.c.h.b16 %v218
    %v1377 = vunpack.c.l.b16 %v219
    %v1378 = vunpack.c.h.b16 %v219
    %v1379 = vunpack.c.l.b16 %v220
    %v1380 = vunpack.c.h.b16 %v220
    %v1381 = vunpack.c.l.b16 %v221
    %v1382 = vunpack.c.h.b16 %v221
    %v1383 = vunpack.c.l.b16 %v222
    %v1384 = vunpack.c.h.b16 %v222
    %v1385 = vunpack.c.l.b16 %v223
    %v1386 = vunpack.c.h.b16 %v223
    %v1387 = vunpack.c.l.b16 %v224
    %v1388 = vunpack.c.h.b16 %v224
    %v1389 = vunpack.c.l.b16 %v225
    %v1390 = vunpack.c.h.b16 %v225
    %v1391 = vunpack.c.l.b16 %v226
    %v1392 = vunpack.c.h.b16 %v226
    %v1393 = vunpack.c.l.b16 %v227
    %v1394 = vunpack.c.h.b16 %v227
    %v1395 = vunpack.c.l.b16 %v228
    %v1396 = vunpack.c.h.b16 %v228
    %v1397 = vunpack.c.l.b16 %v229
    %v1398 = vunpack.c.h.b16 %v229
    %v1399 = vunpack.c.l.b16 %v230
    %v1400 = vunpack.c.h.b16 %v230
    %v1401 = vunpack.c.l.b16 %v231
    %v1402 = vunpack.c.h.b16 %v231
    %v1403 = vunpack.c.l.b16 %v232
    %v1404 = vunpack.c.h.b16 %v232
    %v1405 = vunpack.c.l.b16 %v233
    %v1406 = vunpack.c.h.b16 %v233
    %v1407 = vunpack.c.l.b16 %v234
    %v1408 = vunpack.c.h.b16 %v234
    %v1409 = vunpack.c.l.b16 %v235
    %v1410 = vunpack.c.h.b16 %v235
    %v1411 = vunpack.c.l.b16 %v236
    %v1412 = vunpack.c.h.b16 %v236
    %v1413 = vunpack.c.l.b16 %v237
    %v1414 = vunpack.c.h.b16 %v237
    %v1415 = vunpack.c.l.b16 %v238
    %v1416 = vunpack.c.h.b16 %v238
    %v1417 = vunpack.c.l.b16 %v239
    %v1418 = vunpack.c.h.b16 %v239
    %v1419 = vunpack.c.l.b16 %v240
    %v1420 = vunpack.c.h.b16 %v240
    %v1421 = vunpack.c.l.b16 %v241
    %v1422 = vunpack.c.h.b16 %v241
    %v1423 = vunpack.c.l.b16 %v242
    %v1424 = vunpack.c.h.b16 %v242
    %v1425 = vunpack.c.l.b16 %v243
    %v1426 = vunpack.c.h.b16 %v243
    %v1427 = vunpack.c.l.b16 %v244
    %v1428 = vunpack.c.h.b16 %v244
    %v1429 = vunpack.c.l.b16 %v245
    %v1430 = vunpack.c.h.b16 %v245
    %v1431 = vunpack.c.l.b16 %v246
    %v1432 = vunpack.c.h.b16 %v246
    %v1433 = vunpack.c.l.b16 %v247
    %v1434 = vunpack.c.h.b16 %v247
    %v1435 = vunpack.c.l.b16 %v248
    %v1436 = vunpack.c.h.b16 %v248
    %v1437 = vunpack.c.l.b16 %v249
    %v1438 = vunpack.c.h.b16 %v249
    %v1439 = vunpack.c.l.b16 %v250
    %v1440 = vunpack.c.h.b16 %v250
    %v1441 = vunpack.c.l.b16 %v251
    %v1442 = vunpack.c.h.b16 %v251
    %v1443 = vunpack.c.l.b16 %v252
    %v1444 = vunpack.c.h.b16 %v252
    %v1445 = vunpack.c.l.b16 %v253
    %v1446 = vunpack.c.h.b16 %v253
    %v1447 = vunpack.c.l.b16 %v254
    %v1448 = vunpack.c.h.b16 %v254
    %v1449 = vunpack.c.l.b16 %v255
    %v1450 = vunpack.c.h.b16 %v255
    %v1451 = vunpack.c.l.b16 %v256
    %v1452 = vunpack.c.h.b16 %v256
    %v1453 = vunpack.c.l.b16 %v257
    %v1454 = vunpack.c.h.b16 %v257
    %v1455 = vunpack.c.l.b16 %v258
    %v1456 = vunpack.c.h.b16 %v258
    %v1457 = vunpack.c.l.b16 %v259
    %v1458 = vunpack.c.h.b16 %v259
    %v1459 = vunpack.c.l.b16 %v260
    %v1460 = vunpack.c.h.b16 %v260
    %v1461 = vunpack.c.l.b16 %v261
    %v1462 = vunpack.c.h.b16 %v261
    %v1463 = vunpack.c.l.b16 %v262
    %v1464 = vunpack.c.h.b16 %v262
    %v1465 = vunpack.c.l.b16 %v263
    %v1466 = vunpack.c.h.b16 %v263
    %v1467 = vunpack.c.l.b16 %v264
    %v1468 = vunpack.c.h.b16 %v264
    %v1469 = vunpack.c.l.b16 %v265
    %v1470 = vunpack.c.h.b16 %v265
    %v1471 = vunpack.c.l.b16 %v266
    %v1472 = vunpack.c.h.b16 %v266
    %v1473 = vunpack.c.l.b16 %v267
    %v1474 = vunpack.c.h.b16 %v267
    %v1475 = vunpack.c.l.b16 %v268
    %v1476 = vunpack.c.h.b16 %v268
    %v1477 = vunpack.c.l.b16 %v269
    %v1478 = vunpack.c.h.b16 %v269
    %v1479 = vunpack.c.l.b16 %v270
    %v1480 = vunpack.c.h.b16 %v270
    %v1481 = vunpack.c.l.b16 %v271
    %v1482 = vunpack.c.h.b16 %v271
    %v1483 = vunpack.c.l.b16 %v272
    %v1484 = vunpack.c.h.b16 %v272
    %v1485 = vunpack.c.l.b16 %v273
    %v1486 = vunpack.c.h.b16 %v273
    %v1487 = vunpack.c.l.b16 %v274
    %v1488 = vunpack.c.h.b16 %v274
    %v1489 = vunpack.c.l.b16 %v275
    %v1490 = vunpack.c.h.b16 %v275
    %v1491 = vunpack.c.l.b16 %v276
    %v1492 = vunpack.c.h.b16 %v276
    %v1493 = vunpack.c.l.b16 %v277
    %v1494 = vunpack.c.h.b16 %v277
    %v1495 = vunpack.c.l.b16 %v278
    %v1496 = vunpack.c.h.b16 %v278
    %v1497 = vunpack.c.l.b16 %v279
    %v1498 = vunpack.c.h.b16 %v279
    %v1499 = vunpack.c.l.b16 %v280
    %v1500 = vunpack.c.h.b16 %v280
    %v1501 = vunpack.c.l.b16 %v281
    %v1502 = vunpack.c.h.b16 %v281
    %v1503 = vunpack.c.l.b16 %v282
    %v1504 = vunpack.c.h.b16 %v282
    %v1505 = vunpack.c.l.b16 %v283
    %v1506 = vunpack.c.h.b16 %v283
    %v1507 = vunpack.c.l.b16 %v284
    %v1508 = vunpack.c.h.b16 %v284
    %v1509 = vunpack.c.l.b16 %v285
    %v1510 = vunpack.c.h.b16 %v285
    %v1511 = vunpack.c.l.b16 %v286
    %v1512 = vunpack.c.h.b16 %v286
    %v1513 = vunpack.c.l.b16 %v287
    %v1514 = vunpack.c.h.b16 %v287
    %v1515 = vunpack.c.l.b16 %v288
    %v1516 = vunpack.c.h.b16 %v288
    %v1517 = vunpack.c.l.b16 %v289
    %v1518 = vunpack.c.h.b16 %v289
    %v1519 = vunpack.c.l.b16 %v290
    %v1520 = vunpack.c.h.b16 %v290
    %v1521 = vunpack.c.l.b16 %v291
    %v1522 = vunpack.c.h.b16 %v291
    %v1523 = vunpack.c.l.b16 %v292
    %v1524 = vunpack.c.h.b16 %v292
    %v1525 = vunpack.c.l.b16 %v293
    %v1526 = vunpack.c.h.b16 %v293
    %v1527 = vunpack.c.l.b16 %v294
    %v1528 = vunpack.c.h.b16 %v294
    %v1529 = vunpack.c.l.b16 %v295
    %v1530 = vunpack.c.h.b16 %v295
    %v1531 = vunpack.c.l.b16 %v296
    %v1532 = vunpack.c.h.b16 %v296
    %v1533 = vunpack.c.l.b16 %v297
    %v1534 = vunpack.c.h.b16 %v297
    %v1535 = vunpack.c.l.b16 %v298
    %v1536 = vunpack.c.h.b16 %v298
    %v1537 = vunpack.c.l.b16 %v299
    %v1538 = vunpack.c.h.b16 %v299
    %v1539 = vunpack.c.l.b16 %v300
    %v1540 = vunpack.c.h.b16 %v300
    %v1541 = vunpack.c.l.b16 %v301
    %v1542 = vunpack.c.h.b16 %v301
    %v1543 = vunpack.c.l.b16 %v302
    %v1544 = vunpack.c.h.b16 %v302
    %v1545 = vunpack.c.l.b16 %v303
    %v1546 = vunpack.c.h.b16 %v303
    %v1547 = vunpack.c.l.b16 %v304
    %v1548 = vunpack.c.h.b16 %v304
    %v1549 = vunpack.c.l.b16 %v305
    %v1550 = vunpack.c.h.b16 %v305
    %v1551 = vunpack.c.l.b16 %v306
    %v1552 = vunpack.c.h.b16 %v306
    %v1553 = vunpack.c.l.b16 %v307
    %v1554 = vunpack.c.h.b16 %v307
    %v1555 = vunpack.c.l.b16 %v308
    %v1556 = vunpack.c.h.b16 %v308
    %v1557 = vunpack.c.l.b16 %v309
    %v1558 = vunpack.c.h.b16 %v309
    %v1559 = vunpack.c.l.b16 %v310
    %v1560 = vunpack.c.h.b16 %v310
    %v1561 = vunpack.c.l.b16 %v311
    %v1562 = vunpack.c.h.b16 %v311
    %v1563 = vunpack.c.l.b16 %v312
    %v1564 = vunpack.c.h.b16 %v312
    %v1565 = vunpack.c.l.b16 %v313
    %v1566 = vunpack.c.h.b16 %v313
    %v1567 = vunpack.c.l.b16 %v314
    %v1568 = vunpack.c.h.b16 %v314
    %v1569 = vunpack.c.l.b16 %v315
    %v1570 = vunpack.c.h.b16 %v315
    %v1571 = vunpack.c.l.b16 %v316
    %v1572 = vunpack.c.h.b16 %v316
    %v1573 = vunpack.c.l.b16 %v317
    %v1574 = vunpack.c.h.b16 %v317
    %v1575 = vunpack.c.l.b16 %v318
    %v1576 = vunpack.c.h.b16 %v318
    %v1577 = vunpack.c.l.b16 %v319
    %v1578 = vunpack.c.h.b16 %v319
    %v1579 = vunpack.c.l.b16 %v320
    %v1580 = vunpack.c.h.b16 %v320
    %v1581 = vunpack.c.l.b16 %v321
    %v1582 = vunpack.c.h.b16 %v321
    %v1583 = vunpack.c.l.b16 %v322
    %v1584 = vunpack.c.h.b16 %v322
    %v1585 = vunpack.c.l.b16 %v323
    %v1586 = vunpack.c.h.b16 %v323
    %v1587 = vunpack.c.l.b16 %v324
    %v1588 = vunpack.c.h.b16 %v324
    %v1589 = vunpack.c.l.b16 %v325
    %v1590 = vunpack.c.h.b16 %v325
    %v1591 = vunpack.c.l.b16 %v326
    %v1592 = vunpack.c.h.b16 %v326
    %v1593 = vunpack.c.l.b16 %v327
    %v1594 = vunpack.c.h.b16 %v327
    %v1595 = vunpack.c.l.b16 %v328
    %v1596 = vunpack.c.h.b16 %v328
    %v1597 = vunpack.c.l.b16 %v329
    %v1598 = vunpack.c.h.b16 %v329
    %v1599 = vunpack.c.l.b16 %v330
    %v1600 = vunpack.c.h.b16 %v330
    %v1601 = vunpack.c.l.b16 %v331
    %v1602 = vunpack.c.h.b16 %v331
    %v1603 = vunpack.c.l.b16 %v332
    %v1604 = vunpack.c.h.b16 %v332
    %v1605 = vunpack.c.l.b16 %v333
    %v1606 = vunpack.c.h.b16 %v333
    %v1607 = vunpack.c.l.b16 %v334
    %v1608 = vunpack.c.h.b16 %v334
    %v1609 = vunpack.c.l.b16 %v335
    %v1610 = vunpack.c.h.b16 %v335
    %v1611 = vunpack.c.l.b16 %v336
    %v1612 = vunpack.c.h.b16 %v336
    %v1613 = vunpack.c.l.b16 %v337
    %v1614 = vunpack.c.h.b16 %v337
    %v1615 = vunpack.c.l.b16 %v338
    %v1616 = vunpack.c.h.b16 %v338
    %v1617 = vunpack.c.l.b16 %v339
    %v1618 = vunpack.c.h.b16 %v339
    %v1619 = vunpack.c.l.b16 %v340
    %v1620 = vunpack.c.h.b16 %v340
    %v1621 = vunpack.c.l.b16 %v341
    %v1622 = vunpack.c.h.b16 %v341
    %v1623 = vunpack.c.l.b16 %v342
    %v1624 = vunpack.c.h.b16 %v342
    %v1625 = vunpack.c.l.b16 %v343
    %v1626 = vunpack.c.h.b16 %v343
    %v1627 = vunpack.c.l.b16 %v344
    %v1628 = vunpack.c.h.b16 %v344
    %v1629 = vunpack.c.l.b16 %v345
    %v1630 = vunpack.c.h.b16 %v345
    %v1631 = vunpack.c.l.b16 %v346
    %v1632 = vunpack.c.h.b16 %v346
    %v1633 = vunpack.c.l.b16 %v347
    %v1634 = vunpack.c.h.b16 %v347
    %v1635 = vunpack.c.l.b16 %v348
    %v1636 = vunpack.c.h.b16 %v348
    %v1637 = vunpack.c.l.b16 %v349
    %v1638 = vunpack.c.h.b16 %v349
    %v1639 = vunpack.c.l.b16 %v350
    %v1640 = vunpack.c.h.b16 %v350
    %v1641 = vunpack.c.l.b16 %v351
    %v1642 = vunpack.c.h.b16 %v351
    %v1643 = vunpack.c.l.b16 %v352
    %v1644 = vunpack.c.h.b16 %v352
    %v1645 = vunpack.c.l.b16 %v353
    %v1646 = vunpack.c.h.b16 %v353
    %v1647 = vunpack.c.l.b16 %v354
    %v1648 = vunpack.c.h.b16 %v354
    %v1649 = vunpack.c.l.b16 %v355
    %v1650 = vunpack.c.h.b16 %v355
    %v1651 = vunpack.c.l.b16 %v356
    %v1652 = vunpack.c.h.b16 %v356
    %v1653 = vunpack.c.l.b16 %v357
    %v1654 = vunpack.c.h.b16 %v357
    %v1655 = vunpack.c.l.b16 %v358
    %v1656 = vunpack.c.h.b16 %v358
    %v1657 = vunpack.c.l.b16 %v359
    %v1658 = vunpack.c.h.b16 %v359
    %v1659 = vunpack.c.l.b16 %v360
    %v1660 = vunpack.c.h.b16 %v360
    %v1661 = vunpack.c.l.b16 %v361
    %v1662 = vunpack.c.h.b16 %v361
    %v1663 = vunpack.c.l.b16 %v362
    %v1664 = vunpack.c.h.b16 %v362
    %v1665 = vunpack.c.l.b16 %v363
    %v1666 = vunpack.c.h.b16 %v363
    %v1667 = vunpack.c.l.b16 %v364
    %v1668 = vunpack.c.h.b16 %v364
    %v1669 = vunpack.c.l.b16 %v365
    %v1670 = vunpack.c.h.b16 %v365
    %v1671 = vunpack.c.l.b16 %v366
    %v1672 = vunpack.c.h.b16 %v366
    %v1673 = vunpack.c.l.b16 %v367
    %v1674 = vunpack.c.h.b16 %v367
    %v1675 = vunpack.c.l.b16 %v368
    %v1676 = vunpack.c.h.b16 %v368
    %v1677 = vunpack.c.l.b16 %v369
    %v1678 = vunpack.c.h.b16 %v369
    %v1679 = vunpack.c.l.b16 %v370
    %v1680 = vunpack.c.h.b16 %v370
    %v1681 = vunpack.c.l.b16 %v371
    %v1682 = vunpack.c.h.b16 %v371
    %v1683 = vunpack.c.l.b16 %v372
    %v1684 = vunpack.c.h.b16 %v372
    %v1685 = vunpack.c.l.b16 %v373
    %v1686 = vunpack.c.h.b16 %v373
    %v1687 = vunpack.c.l.b16 %v374
    %v1688 = vunpack.c.h.b16 %v374
    %v1689 = vunpack.c.l.b16 %v375
    %v1690 = vunpack.c.h.b16 %v375
    %v1691 = vunpack.c.l.b16 %v376
    %v1692 = vunpack.c.h.b16 %v376
    %v1693 = vunpack.c.l.b16 %v377
    %v1694 = vunpack.c.h.b16 %v377
    %v1695 = vunpack.c.l.b16 %v378
    %v1696 = vunpack.c.h.b16 %v378
    %v1697 = vunpack.c.l.b16 %v379
    %v1698 = vunpack.c.h.b16 %v379
    %v1699 = vunpack.c.l.b16 %v380
    %v1700 = vunpack.c.h.b16 %v380
    %v1701 = vunpack.c.l.b16 %v381
    %v1702 = vunpack.c.h.b16 %v381
    %v1703 = vunpack.c.l.b16 %v382
    %v1704 = vunpack.c.h.b16 %v382
    %v1705 = vunpack.c.l.b16 %v383
    %v1706 = vunpack.c.h.b16 %v383
    %v1707 = vunpack.c.l.b16 %v384
    %v1708 = vunpack.c.h.b16 %v384
    %v1709 = vunpack.c.l.b16 %v385
    %v1710 = vunpack.c.h.b16 %v385
    %v1711 = vunpack.c.l.b16 %v386
    %v1712 = vunpack.c.h.b16 %v386
    %v1713 = vunpack.c.l.b16 %v387
    %v1714 = vunpack.c.h.b16 %v387
    %v1715 = vunpack.c.l.b16 %v388
    %v1716 = vunpack.c.h.b16 %v388
    %v1717 = vunpack.c.l.b16 %v389
    %v1718 = vunpack.c.h.b16 %v389
    %v1719 = vunpack.c.l.b16 %v390
    %v1720 = vunpack.c.h.b16 %v390
    %v1721 = vunpack.c.l.b16 %v391
    %v1722 = vunpack.c.h.b16 %v391
    %v1723 = vunpack.c.l.b16 %v392
    %v1724 = vunpack.c.h.b16 %v392
    %v1725 = vunpack.c.l.b16 %v393
    %v1726 = vunpack.c.h.b16 %v393
    %v1727 = vunpack.c.l.b16 %v394
    %v1728 = vunpack.c.h.b16 %v394
    %v1729 = vunpack.c.l.b16 %v395
    %v1730 = vunpack.c.h.b16 %v395
    %v1731 = vunpack.c.l.b16 %v396
    %v1732 = vunpack.c.h.b16 %v396
    %v1733 = vunpack.c.l.b16 %v397
    %v1734 = vunpack.c.h.b16 %v397
    %v1735 = vunpack.c.l.b16 %v398
    %v1736 = vunpack.c.h.b16 %v398
    %v1737 = vunpack.c.l.b16 %v399
    %v1738 = vunpack.c.h.b16 %v399
    %v1739 = vunpack.c.l.b16 %v400
    %v1740 = vunpack.c.h.b16 %v400
    %v1741 = vunpack.c.l.b16 %v401
    %v1742 = vunpack.c.h.b16 %v401
    %v1743 = vunpack.c.l.b16 %v402
    %v1744 = vunpack.c.h.b16 %v402
    %v1745 = vunpack.c.l.b16 %v403
    %v1746 = vunpack.c.h.b16 %v403
    %v1747 = vunpack.c.l.b16 %v404
    %v1748 = vunpack.c.h.b16 %v404
    %v1749 = vunpack.c.l.b16 %v405
    %v1750 = vunpack.c.h.b16 %v405
    %v1751 = vunpack.c.l.b16 %v406
    %v1752 = vunpack.c.h.b16 %v406
    %v1753 = vunpack.c.l.b16 %v407
    %v1754 = vunpack.c.h.b16 %v407
    %v1755 = vunpack.c.l.b16 %v408
    %v1756 = vunpack.c.h.b16 %v408
    %v1757 = vunpack.c.l.b16 %v409
    %v1758 = vunpack.c.h.b16 %v409
    %v1759 = vunpack.c.l.b16 %v410
    %v1760 = vunpack.c.h.b16 %v410
    %v1761 = vunpack.c.l.b16 %v411
    %v1762 = vunpack.c.h.b16 %v411
    %v1763 = vunpack.c.l.b16 %v412
    %v1764 = vunpack.c.h.b16 %v412
    %v1765 = vunpack.c.l.b16 %v413
    %v1766 = vunpack.c.h.b16 %v413
    %v1767 = vunpack.c.l.b16 %v414
    %v1768 = vunpack.c.h.b16 %v414
    %v1769 = vunpack.c.l.b16 %v415
    %v1770 = vunpack.c.h.b16 %v415
    %v1771 = vunpack.c.l.b16 %v416
    %v1772 = vunpack.c.h.b16 %v416
    %v1773 = vunpack.c.l.b16 %v417
    %v1774 = vunpack.c.h.b16 %v417
    %v1775 = vunpack.c.l.b16 %v418
    %v1776 = vunpack.c.h.b16 %v418
    %v1777 = vunpack.c.l.b16 %v419
    %v1778 = vunpack.c.h.b16 %v419
    %v1779 = vunpack.c.l.b16 %v420
    %v1780 = vunpack.c.h.b16 %v420
    %v1781 = vunpack.c.l.b16 %v421
    %v1782 = vunpack.c.h.b16 %v421
    %v1783 = vunpack.c.l.b16 %v422
    %v1784 = vunpack.c.h.b16 %v422
    %v1785 = vunpack.c.l.b16 %v423
    %v1786 = vunpack.c.h.b16 %v423
    %v1787 = vunpack.c.l.b16 %v424
    %v1788 = vunpack.c.h.b16 %v424
    %v1789 = vunpack.c.l.b16 %v425
    %v1790 = vunpack.c.h.b16 %v425
    %v1791 = vunpack.c.l.b16 %v426
    %v1792 = vunpack.c.h.b16 %v426
    %v1793 = vunpack.c.l.b16 %v427
    %v1794 = vunpack.c.h.b16 %v427
    %v1795 = vunpack.c.l.b16 %v428
    %v1796 = vunpack.c.h.b16 %v428
    %v1797 = vunpack.c.l.b16 %v429
    %v1798 = vunpack.c.h.b16 %v429
    %v1799 = vunpack.c.l.b16 %v430
    %v1800 = vunpack.c.h.b16 %v430
    %v1801 = vunpack.c.l.b16 %v431
    %v1802 = vunpack.c.h.b16 %v431
    %v1803 = vunpack.c.l.b16 %v432
    %v1804 = vunpack.c.h.b16 %v432
    %v1805 = vunpack.c.l.b16 %v433
    %v1806 = vunpack.c.h.b16 %v433
    %v1807 = vunpack.c.l.b16 %v434
    %v1808 = vunpack.c.h.b16 %v434
    %v1809 = vunpack.c.l.b16 %v435
    %v1810 = vunpack.c.h.b16 %v435
    %v1811 = vunpack.c.l.b16 %v436
    %v1812 = vunpack.c.h.b16 %v436
    %v1813 = vunpack.c.l.b16 %v437
    %v1814 = vunpack.c.h.b16 %v437
    %v1815 = vunpack.c.l.b16 %v438
    %v1816 = vunpack.c.h.b16 %v438
    %v1817 = vunpack.c.l.b16 %v439
    %v1818 = vunpack.c.h.b16 %v439
    %v1819 = vunpack.c.l.b16 %v440
    %v1820 = vunpack.c.h.b16 %v440
    %v1821 = vunpack.c.l.b16 %v441
    %v1822 = vunpack.c.h.b16 %v441
    %v1823 = vunpack.c.l.b16 %v442
    %v1824 = vunpack.c.h.b16 %v442
    %v1825 = vunpack.c.l.b16 %v443
    %v1826 = vunpack.c.h.b16 %v443
    %v1827 = vunpack.c.l.b16 %v444
    %v1828 = vunpack.c.h.b16 %v444
    %v1829 = vunpack.c.l.b16 %v445
    %v1830 = vunpack.c.h.b16 %v445
    %v1831 = vunpack.c.l.b16 %v446
    %v1832 = vunpack.c.h.b16 %v446
    %v1833 = vunpack.c.l.b16 %v447
    %v1834 = vunpack.c.h.b16 %v447
    %v1835 = vunpack.c.l.b16 %v448
    %v1836 = vunpack.c.h.b16 %v448
    %v1837 = vunpack.c.l.b16 %v449
    %v1838 = vunpack.c.h.b16 %v449
    %v1839 = vunpack.c.l.b16 %v450
    %v1840 = vunpack.c.h.b16 %v450
    %v1841 = vunpack.c.l.b16 %v451
    %v1842 = vunpack.c.h.b16 %v451
    %v1843 = vunpack.c.l.b16 %v452
    %v1844 = vunpack.c.h.b16 %v452
    %v1845 = vunpack.c.l.b16 %v453
    %v1846 = vunpack.c.h.b16 %v453
    %v1847 = vunpack.c.l.b16 %v454
    %v1848 = vunpack.c.h.b16 %v454
    %v1849 = vunpack.c.l.b16 %v455
    %v1850 = vunpack.c.h.b16 %v455
    %v1851 = vunpack.c.l.b16 %v456
    %v1852 = vunpack.c.h.b16 %v456
    %v1853 = vunpack.c.l.b16 %v457
    %v1854 = vunpack.c.h.b16 %v457
    %v1855 = vunpack.c.l.b16 %v458
    %v1856 = vunpack.c.h.b16 %v458
    %v1857 = vunpack.c.l.b16 %v459
    %v1858 = vunpack.c.h.b16 %v459
    %v1859 = vunpack.c.l.b16 %v460
    %v1860 = vunpack.c.h.b16 %v460
    %v1861 = vunpack.c.l.b16 %v461
    %v1862 = vunpack.c.h.b16 %v461
    %v1863 = vunpack.c.l.b16 %v462
    %v1864 = vunpack.c.h.b16 %v462
    %v1865 = vunpack.c.l.b16 %v463
    %v1866 = vunpack.c.h.b16 %v463
    %v1867 = vunpack.c.l.b16 %v464
    %v1868 = vunpack.c.h.b16 %v464
    %v1869 = vunpack.c.l.b16 %v465
    %v1870 = vunpack.c.h.b16 %v465
    %v1871 = vunpack.c.l.b16 %v466
    %v1872 = vunpack.c.h.b16 %v466
    %v1873 = vunpack.c.l.b16 %v467
    %v1874 = vunpack.c.h.b16 %v467
    %v1875 = vunpack.c.l.b16 %v468
    %v1876 = vunpack.c.h.b16 %v468
    %v1877 = vunpack.c.l.b16 %v469
    %v1878 = vunpack.c.h.b16 %v469
    %v1879 = vunpack.c.l.b16 %v470
    %v1880 = vunpack.c.h.b16 %v470
    %v1881 = vunpack.c.l.b16 %v471
    %v1882 = vunpack.c.h.b16 %v471
    %v1883 = vunpack.c.l.b16 %v472
    %v1884 = vunpack.c.h.b16 %v472
    %v1885 = vunpack.c.l.b16 %v473
    %v1886 = vunpack.c.h.b16 %v473
    %v1887 = vunpack.c.l.b16 %v474
    %v1888 = vunpack.c.h.b16 %v474
    %v1889 = vunpack.c.l.b16 %v475
    %v1890 = vunpack.c.h.b16 %v475
    %v1891 = vunpack.c.l.b16 %v476
    %v1892 = vunpack.c.h.b16 %v476
    %v1893 = vunpack.c.l.b16 %v477
    %v1894 = vunpack.c.h.b16 %v477
    %v1895 = vunpack.c.l.b16 %v478
    %v1896 = vunpack.c.h.b16 %v478
    %v1897 = vunpack.c.l.b16 %v479
    %v1898 = vunpack.c.h.b16 %v479
    %v1899 = vunpack.c.l.b16 %v480
    %v1900 = vunpack.c.h.b16 %v480
    %v1901 = vunpack.c.l.b16 %v481
    %v1902 = vunpack.c.h.b16 %v481
    %v1903 = vunpack.c.l.b16 %v482
    %v1904 = vunpack.c.h.b16 %v482
    %v1905 = vunpack.c.l.b16 %v483
    %v1906 = vunpack.c.h.b16 %v483
    %v1907 = vunpack.c.l.b16 %v484
    %v1908 = vunpack.c.h.b16 %v484
    %v1909 = vunpack.c.l.b16 %v485
    %v1910 = vunpack.c.h.b16 %v485
    %v1911 = vunpack.c.l.b16 %v486
    %v1912 = vunpack.c.h.b16 %v486
    %v1913 = vunpack.c.l.b16 %v487
    %v1914 = vunpack.c.h.b16 %v487
    %v1915 = vunpack.c.l.b16 %v488
    %v1916 = vunpack.c.h.b16 %v488
    %v1917 = vunpack.c.l.b16 %v489
    %v1918 = vunpack.c.h.b16 %v489
    %v1919 = vunpack.c.l.b16 %v490
    %v1920 = vunpack.c.h.b16 %v490
    %v1921 = vunpack.c.l.b16 %v491
    %v1922 = vunpack.c.h.b16 %v491
    %v1923 = vunpack.c.l.b16 %v492
    %v1924 = vunpack.c.h.b16 %v492
    %v1925 = vunpack.c.l.b16 %v493
    %v1926 = vunpack.c.h.b16 %v493
    %v1927 = vunpack.c.l.b16 %v494
    %v1928 = vunpack.c.h.b16 %v494
    %v1929 = vunpack.c.l.b16 %v495
    %v1930 = vunpack.c.h.b16 %v495
    %v1931 = vunpack.c.l.b16 %v496
    %v1932 = vunpack.c.h.b16 %v496
    %v1933 = vunpack.c.l.b16 %v497
    %v1934 = vunpack.c.h.b16 %v497
    %v1935 = vunpack.c.l.b16 %v498
    %v1936 = vunpack.c.h.b16 %v498
    %v1937 = vunpack.c.l.b16 %v499
    %v1938 = vunpack.c.h.b16 %v499
    %v1939 = vunpack.c.l.b16 %v500
    %v1940 = vunpack.c.h.b16 %v500
    %v1941 = vunpack.c.l.b16 %v501
    %v1942 = vunpack.c.h.b16 %v501
    %v1943 = vunpack.c.l.b16 %v502
    %v1944 = vunpack.c.h.b16 %v502
    %v1945 = vunpack.c.l.b16 %v503
    %v1946 = vunpack.c.h.b16 %v503
    %v1947 = vunpack.c.l.b16 %v504
    %v1948 = vunpack.c.h.b16 %v504
    %v1949 = vunpack.c.l.b16 %v505
    %v1950 = vunpack.c.h.b16 %v505
    %v1951 = vunpack.c.l.b16 %v506
    %v1952 = vunpack.c.h.b16 %v506
    %v1953 = vunpack.c.l.b16 %v507
    %v1954 = vunpack.c.h.b16 %v507
    %v1955 = vunpack.c.l.b16 %v508
    %v1956 = vunpack.c.h.b16 %v508
    %v1957 = vunpack.c.l.b16 %v509
    %v1958 = vunpack.c.h.b16 %v509
    %v1959 = vunpack.c.l.b16 %v510
    %v1960 = vunpack.c.h.b16 %v510
    %v1961 = vunpack.c.l.b16 %v511
    %v1962 = vunpack.c.h.b16 %v511
    %v1963 = vunpack.c.l.b16 %v512
    %v1964 = vunpack.c.h.b16 %v512
    %v1965 = vunpack.c.l.b16 %v513
    %v1966 = vunpack.c.h.b16 %v513
    %v1967 = vunpack.c.l.b16 %v514
    %v1968 = vunpack.c.h.b16 %v514
    %v1969 = vunpack.c.l.b16 %v515
    %v1970 = vunpack.c.h.b16 %v515
    %v1971 = vunpack.c.l.b16 %v516
    %v1972 = vunpack.c.h.b16 %v516
    %v1973 = vunpack.c.l.b16 %v517
    %v1974 = vunpack.c.h.b16 %v517
    %v1975 = vunpack.c.l.b16 %v518
    %v1976 = vunpack.c.h.b16 %v518
    %v1977 = vunpack.c.l.b16 %v519
    %v1978 = vunpack.c.h.b16 %v519
    %v1979 = vunpack.c.l.b16 %v520
    %v1980 = vunpack.c.h.b16 %v520
    %v1981 = vunpack.c.l.b16 %v521
    %v1982 = vunpack.c.h.b16 %v521
    %v1983 = vunpack.c.l.b16 %v522
    %v1984 = vunpack.c.h.b16 %v522
    %v1985 = vunpack.c.l.b16 %v523
    %v1986 = vunpack.c.h.b16 %v523
    %v1987 = vunpack.c.l.b16 %v524
    %v1988 = vunpack.c.h.b16 %v524
    %v1989 = vunpack.c.l.b16 %v525
    %v1990 = vunpack.c.h.b16 %v525
    %v1991 = vunpack.c.l.b16 %v526
    %v1992 = vunpack.c.h.b16 %v526
    %v1993 = vunpack.c.l.b16 %v527
    %v1994 = vunpack.c.h.b16 %v527
    %v1995 = vunpack.c.l.b16 %v528
    %v1996 = vunpack.c.h.b16 %v528
    %v1997 = vunpack.c.l.b16 %v529
    %v1998 = vunpack.c.h.b16 %v529
    %v1999 = vunpack.c.l.b16 %v530
    %v2000 = vunpack.c.h.b16 %v530
    %v2001 = vunpack.c.l.b16 %v531
    %v2002 = vunpack.c.h.b16 %v531
    %v2003 = vunpack.c.l.b16 %v532
    %v2004 = vunpack.c.h.b16 %v532
    %v2005 = vunpack.c.l.b16 %v533
    %v2006 = vunpack.c.h.b16 %v533
    %v2007 = vunpack.c.l.b16 %v534
    %v2008 = vunpack.c.h.b16 %v534
    %v2009 = vunpack.c.l.b16 %v535
    %v2010 = vunpack.c.h.b16 %v535
    %v2011 = vunpack.c.l.b16 %v536
    %v2012 = vunpack.c.h.b16 %v536
    %v2013 = vunpack.c.l.b16 %v537
    %v2014 = vunpack.c.h.b16 %v537
    %v2015 = vunpack.c.l.b16 %v538
    %v2016 = vunpack.c.h.b16 %v538
    %v2017 = vunpack.c.l.b16 %v539
    %v2018 = vunpack.c.h.b16 %v539
    %v2019 = vunpack.c.l.b16 %v540
    %v2020 = vunpack.c.h.b16 %v540
    %v2021 = vunpack.c.l.b16 %v541
    %v2022 = vunpack.c.h.b16 %v541
    %v2023 = vunpack.c.l.b16 %v542
    %v2024 = vunpack.c.h.b16 %v542
    %v2025 = vunpack.c.l.b16 %v543
    %v2026 = vunpack.c.h.b16 %v543
    %v2027 = vunpack.c.l.b16 %v544
    %v2028 = vunpack.c.h.b16 %v544
    %v2029 = vunpack.c.l.b16 %v545
    %v2030 = vunpack.c.h.b16 %v545
    %v2031 = vunpack.c.l.b16 %v546
    %v2032 = vunpack.c.h.b16 %v546
    %v2033 = vunpack.c.l.b16 %v547
    %v2034 = vunpack.c.h.b16 %v547
    %v2035 = vunpack.c.l.b16 %v548
    %v2036 = vunpack.c.h.b16 %v548
    %v2037 = vunpack.c.l.b16 %v549
    %v2038 = vunpack.c.h.b16 %v549
    %v2039 = vunpack.c.l.b16 %v550
    %v2040 = vunpack.c.h.b16 %v550
    %v2041 = vunpack.c.l.b16 %v551
    %v2042 = vunpack.c.h.b16 %v551
    %v2043 = vunpack.c.l.b16 %v552
    %v2044 = vunpack.c.h.b16 %v552
    %v2045 = vunpack.c.l.b16 %v553
    %v2046 = vunpack.c.h.b16 %v553
    %v2047 = vunpack.c.l.b16 %v554
    %v2048 = vunpack.c.h.b16 %v554
    %v2049 = vunpack.c.l.b16 %v555
    %v2050 = vunpack.c.h.b16 %v555
    %v2051 = vunpack.c.l.b16 %v556
    %v2052 = vunpack.c.h.b16 %v556
    %v2053 = vunpack.c.l.b16 %v557
    %v2054 = vunpack.c.h.b16 %v557
    %v2055 = vunpack.c.l.b16 %v558
    %v2056 = vunpack.c.h.b16 %v558
    %v2057 = vunpack.c.l.b16 %v559
    %v2058 = vunpack.c.h.b16 %v559
    %v2059 = vunpack.c.l.b16 %v560
    %v2060 = vunpack.c.h.b16 %v560
    %v2061 = vunpack.c.l.b16 %v561
    %v2062 = vunpack.c.h.b16 %v561
    %v2063 = vunpack.c.l.b16 %v562
    %v2064 = vunpack.c.h.b16 %v562
    %v2065 = vunpack.c.l.b16 %v563
    %v2066 = vunpack.c.h.b16 %v563
    %v2067 = vunpack.c.l.b16 %v564
    %v2068 = vunpack.c.h.b16 %v564
    %v2069 = vunpack.c.l.b16 %v565
    %v2070 = vunpack.c.h.b16 %v565
    %v2071 = vunpack.c.l.b16 %v566
    %v2072 = vunpack.c.h.b16 %v566
    %v2073 = vunpack.c.l.b16 %v567
    %v2074 = vunpack.c.h.b16 %v567
    %v2075 = vunpack.c.l.b16 %v568
    %v2076 = vunpack.c.h.b16 %v568
    %v2077 = vunpack.c.l.b16 %v569
    %v2078 = vunpack.c.h.b16 %v569
    %v2079 = vunpack.c.l.b16 %v570
    %v2080 = vunpack.c.h.b16 %v570
    %v2081 = vunpack.c.l.b16 %v571
    %v2082 = vunpack.c.h.b16 %v571
    %v2083 = vunpack.c.l.b16 %v572
    %v2084 = vunpack.c.h.b16 %v572
    %v2085 = vunpack.c.l.b16 %v573
    %v2086 = vunpack.c.h.b16 %v573
    %v2087 = vunpack.c.l.b16 %v574
    %v2088 = vunpack.c.h.b16 %v574
    %v2089 = vunpack.c.l.b16 %v575
    %v2090 = vunpack.c.h.b16 %v575
    %v2091 = vunpack.c.l.b16 %v576
    %v2092 = vunpack.c.h.b16 %v576
    %v2093 = vunpack.c.l.b16 %v577
    %v2094 = vunpack.c.h.b16 %v577
    %v2095 = vunpack.c.l.b16 %v578
    %v2096 = vunpack.c.h.b16 %v578
    %v2097 = vunpack.c.l.b16 %v579
    %v2098 = vunpack.c.h.b16 %v579
    %v2099 = vunpack.c.l.b16 %v580
    %v2100 = vunpack.c.h.b16 %v580
    %v2101 = vunpack.c.l.b16 %v581
    %v2102 = vunpack.c.h.b16 %v581
    %v2103 = vunpack.c.l.b16 %v582
    %v2104 = vunpack.c.h.b16 %v582
    %v2105 = vunpack.c.l.b16 %v583
    %v2106 = vunpack.c.h.b16 %v583
    %v2107 = vunpack.c.l.b16 %v584
    %v2108 = vunpack.c.h.b16 %v584
    %v2109 = vunpack.c.l.b16 %v585
    %v2110 = vunpack.c.h.b16 %v585
    %v2111 = vunpack.c.l.b16 %v586
    %v2112 = vunpack.c.h.b16 %v586
    %v2113 = vunpack.c.l.b16 %v587
    %v2114 = vunpack.c.h.b16 %v587
    %v2115 = vunpack.c.l.b16 %v588
    %v2116 = vunpack.c.h.b16 %v588
    %v2117 = vunpack.c.l.b16 %v589
    %v2118 = vunpack.c.h.b16 %v589
    %v2119 = vunpack.c.l.b16 %v590
    %v2120 = vunpack.c.h.b16 %v590
    %v2121 = vunpack.c.l.b16 %v591
    %v2122 = vunpack.c.h.b16 %v591
    %v2123 = vunpack.c.l.b16 %v592
    %v2124 = vunpack.c.h.b16 %v592
    %v2125 = vunpack.c.l.b16 %v593
    %v2126 = vunpack.c.h.b16 %v593
    %v2127 = vunpack.c.l.b16 %v594
    %v2128 = vunpack.c.h.b16 %v594
    %v2129 = vunpack.c.l.b16 %v595
    %v2130 = vunpack.c.h.b16 %v595
    %v2131 = vunpack.c.l.b16 %v596
    %v2132 = vunpack.c.h.b16 %v596
    %v2133 = vpack.c.b16 %v1117, %v1109
    %v2134 = vpack.c.b16 %v1118, %v1110
    %v2135 = vpack.c.b16 %v1119, %v1111
    %v2136 = vpack.c.b16 %v1120, %v1112
    %v2137 = vpack.c.b16 %v1121, %v1113
    %v2138 = vpack.c.b16 %v1122, %v1114
    %v2139 = vpack.c.b16 %v1123, %v1115
    %v2140 = vpack.c.b16 %v1124, %v1116
    %v2141 = vpack.c.b16 %v1133, %v1125
    %v2142 = vpack.c.b16 %v1134, %v1126
    %v2143 = vpack.c.b16 %v1135, %v1127
    %v2144 = vpack.c.b16 %v1136, %v1128
    %v2145 = vpack.c.b16 %v1137, %v1129
    %v2146 = vpack.c.b16 %v1138, %v1130
    %v2147 = vpack.c.b16 %v1139, %v1131
    %v2148 = vpack.c.b16 %v1140, %v1132
    %v2149 = vpack.c.b16 %v1149, %v1141
    %v2150 = vpack.c.b16 %v1150, %v1142
    %v2151 = vpack.c.b16 %v1151, %v1143
    %v2152 = vpack.c.b16 %v1152, %v1144
    %v2153 = vpack.c.b16 %v1153, %v1145
    %v2154 = vpack.c.b16 %v1154, %v1146
    %v2155 = vpack.c.b16 %v1155, %v1147
    %v2156 = vpack.c.b16 %v1156, %v1148
    %v2157 = vpack.c.b16 %v1165, %v1157
    %v2158 = vpack.c.b16 %v1166, %v1158
    %v2159 = vpack.c.b16 %v1167, %v1159
    %v2160 = vpack.c.b16 %v1168, %v1160
    %v2161 = vpack.c.b16 %v1169, %v1161
    %v2162 = vpack.c.b16 %v1170, %v1162
    %v2163 = vpack.c.b16 %v1171, %v1163
    %v2164 = vpack.c.b16 %v1172, %v1164
    %v2165 = vpack.c.b16 %v1181, %v1173
    %v2166 = vpack.c.b16 %v1182, %v1174
    %v2167 = vpack.c.b16 %v1183, %v1175
    %v2168 = vpack.c.b16 %v1184, %v1176
    %v2169 = vpack.c.b16 %v1185, %v1177
    %v2170 = vpack.c.b16 %v1186, %v1178
    %v2171 = vpack.c.b16 %v1187, %v1179
    %v2172 = vpack.c.b16 %v1188, %v1180
    %v2173 = vpack.c.b16 %v1197, %v1189
    %v2174 = vpack.c.b16 %v1198, %v1190
    %v2175 = vpack.c.b16 %v1199, %v1191
    %v2176 = vpack.c.b16 %v1200, %v1192
    %v2177 = vpack.c.b16 %v1201, %v1193
    %v2178 = vpack.c.b16 %v1202, %v1194
    %v2179 = vpack.c.b16 %v1203, %v1195
    %v2180 = vpack.c.b16 %v1204, %v1196
    %v2181 = vpack.c.b16 %v1213, %v1205
    %v2182 = vpack.c.b16 %v1214, %v1206
    %v2183 = vpack.c.b16 %v1215, %v1207
    %v2184 = vpack.c.b16 %v1216, %v1208
    %v2185 = vpack.c.b16 %v1217, %v1209
    %v2186 = vpack.c.b16 %v1218, %v1210
    %v2187 = vpack.c.b16 %v1219, %v1211
    %v2188 = vpack.c.b16 %v1220, %v1212
    %v2189 = vpack.c.b16 %v1229, %v1221
    %v2190 = vpack.c.b16 %v1230, %v1222
    %v2191 = vpack.c.b16 %v1231, %v1223
    %v2192 = vpack.c.b16 %v1232, %v1224
    %v2193 = vpack.c.b16 %v1233, %v1225
    %v2194 = vpack.c.b16 %v1234, %v1226
    %v2195 = vpack.c.b16 %v1235, %v1227
    %v2196 = vpack.c.b16 %v1236, %v1228
    %v2197 = vpack.c.b16 %v1245, %v1237
    %v2198 = vpack.c.b16 %v1246, %v1238
    %v2199 = vpack.c.b16 %v1247, %v1239
    %v2200 = vpack.c.b16 %v1248, %v1240
    %v2201 = vpack.c.b16 %v1249, %v1241
    %v2202 = vpack.c.b16 %v1250, %v1242
    %v2203 = vpack.c.b16 %v1251, %v1243
    %v2204 = vpack.c.b16 %v1252, %v1244
    %v2205 = vpack.c.b16 %v1261, %v1253
    %v2206 = vpack.c.b16 %v1262, %v1254
    %v2207 = vpack.c.b16 %v1263, %v1255
    %v2208 = vpack.c.b16 %v1264, %v1256
    %v2209 = vpack.c.b16 %v1265, %v1257
    %v2210 = vpack.c.b16 %v1266, %v1258
    %v2211 = vpack.c.b16 %v1267, %v1259
    %v2212 = vpack.c.b16 %v1268, %v1260
    %v2213 = vpack.c.b16 %v1277, %v1269
    %v2214 = vpack.c.b16 %v1278, %v1270
    %v2215 = vpack.c.b16 %v1279, %v1271
    %v2216 = vpack.c.b16 %v1280, %v1272
    %v2217 = vpack.c.b16 %v1281, %v1273
    %v2218 = vpack.c.b16 %v1282, %v1274
    %v2219 = vpack.c.b16 %v1283, %v1275
    %v2220 = vpack.c.b16 %v1284, %v1276
    %v2221 = vpack.c.b16 %v1293, %v1285
    %v2222 = vpack.c.b16 %v1294, %v1286
    %v2223 = vpack.c.b16 %v1295, %v1287
    %v2224 = vpack.c.b16 %v1296, %v1288
    %v2225 = vpack.c.b16 %v1297, %v1289
    %v2226 = vpack.c.b16 %v1298, %v1290
    %v2227 = vpack.c.b16 %v1299, %v1291
    %v2228 = vpack.c.b16 %v1300, %v1292
    %v2229 = vpack.c.b16 %v1309, %v1301
    %v2230 = vpack.c.b16 %v1310, %v1302
    %v2231 = vpack.c.b16 %v1311, %v1303
    %v2232 = vpack.c.b16 %v1312, %v1304
    %v2233 = vpack.c.b16 %v1313, %v1305
    %v2234 = vpack.c.b16 %v1314, %v1306
    %v2235 = vpack.c.b16 %v1315, %v1307
    %v2236 = vpack.c.b16 %v1316, %v1308
    %v2237 = vpack.c.b16 %v1325, %v1317
    %v2238 = vpack.c.b16 %v1326, %v1318
    %v2239 = vpack.c.b16 %v1327, %v1319
    %v2240 = vpack.c.b16 %v1328, %v1320
    %v2241 = vpack.c.b16 %v1329, %v1321
    %v2242 = vpack.c.b16 %v1330, %v1322
    %v2243 = vpack.c.b16 %v1331, %v1323
    %v2244 = vpack.c.b16 %v1332, %v1324
    %v2245 = vpack.c.b16 %v1341, %v1333
    %v2246 = vpack.c.b16 %v1342, %v1334
    %v2247 = vpack.c.b16 %v1343, %v1335
    %v2248 = vpack.c.b16 %v1344, %v1336
    %v2249 = vpack.c.b16 %v1345, %v1337
    %v2250 = vpack.c.b16 %v1346, %v1338
    %v2251 = vpack.c.b16 %v1347, %v1339
    %v2252 = vpack.c.b16 %v1348, %v1340
    %v2253 = vpack.c.b16 %v1357, %v1349
    %v2254 = vpack.c.b16 %v1358, %v1350
    %v2255 = vpack.c.b16 %v1359, %v1351
    %v2256 = vpack.c.b16 %v1360, %v1352
    %v2257 = vpack.c.b16 %v1361, %v1353
    %v2258 = vpack.c.b16 %v1362, %v1354
    %v2259 = vpack.c.b16 %v1363, %v1355
    %v2260 = vpack.c.b16 %v1364, %v1356
    %v2261 = vpack.c.b16 %v1373, %v1365
    %v2262 = vpack.c.b16 %v1374, %v1366
    %v2263 = vpack.c.b16 %v1375, %v1367
    %v2264 = vpack.c.b16 %v1376, %v1368
    %v2265 = vpack.c.b16 %v1377, %v1369
    %v2266 = vpack.c.b16 %v1378, %v1370
    %v2267 = vpack.c.b16 %v1379, %v1371
    %v2268 = vpack.c.b16 %v1380, %v1372
    %v2269 = vpack.c.b16 %v1389, %v1381
    %v2270 = vpack.c.b16 %v1390, %v1382
    %v2271 = vpack.c.b16 %v1391, %v1383
    %v2272 = vpack.c.b16 %v1392, %v1384
    %v2273 = vpack.c.b16 %v1393, %v1385
    %v2274 = vpack.c.b16 %v1394, %v1386
    %v2275 = vpack.c.b16 %v1395, %v1387
    %v2276 = vpack.c.b16 %v1396, %v1388
    %v2277 = vpack.c.b16 %v1405, %v1397
    %v2278 = vpack.c.b16 %v1406, %v1398
    %v2279 = vpack.c.b16 %v1407, %v1399
    %v2280 = vpack.c.b16 %v1408, %v1400
    %v2281 = vpack.c.b16 %v1409, %v1401
    %v2282 = vpack.c.b16 %v1410, %v1402
    %v2283 = vpack.c.b16 %v1411, %v1403
    %v2284 = vpack.c.b16 %v1412, %v1404
    %v2285 = vpack.c.b16 %v1421, %v1413
    %v2286 = vpack.c.b16 %v1422, %v1414
    %v2287 = vpack.c.b16 %v1423, %v1415
    %v2288 = vpack.c.b16 %v1424, %v1416
    %v2289 = vpack.c.b16 %v1425, %v1417
    %v2290 = vpack.c.b16 %v1426, %v1418
    %v2291 = vpack.c.b16 %v1427, %v1419
    %v2292 = vpack.c.b16 %v1428, %v1420
    %v2293 = vpack.c.b16 %v1437, %v1429
    %v2294 = vpack.c.b16 %v1438, %v1430
    %v2295 = vpack.c.b16 %v1439, %v1431
    %v2296 = vpack.c.b16 %v1440, %v1432
    %v2297 = vpack.c.b16 %v1441, %v1433
    %v2298 = vpack.c.b16 %v1442, %v1434
    %v2299 = vpack.c.b16 %v1443, %v1435
    %v2300 = vpack.c.b16 %v1444, %v1436
    %v2301 = vpack.c.b16 %v1453, %v1445
    %v2302 = vpack.c.b16 %v1454, %v1446
    %v2303 = vpack.c.b16 %v1455, %v1447
    %v2304 = vpack.c.b16 %v1456, %v1448
    %v2305 = vpack.c.b16 %v1457, %v1449
    %v2306 = vpack.c.b16 %v1458, %v1450
    %v2307 = vpack.c.b16 %v1459, %v1451
    %v2308 = vpack.c.b16 %v1460, %v1452
    %v2309 = vpack.c.b16 %v1469, %v1461
    %v2310 = vpack.c.b16 %v1470, %v1462
    %v2311 = vpack.c.b16 %v1471, %v1463
    %v2312 = vpack.c.b16 %v1472, %v1464
    %v2313 = vpack.c.b16 %v1473, %v1465
    %v2314 = vpack.c.b16 %v1474, %v1466
    %v2315 = vpack.c.b16 %v1475, %v1467
    %v2316 = vpack.c.b16 %v1476, %v1468
    %v2317 = vpack.c.b16 %v1485, %v1477
    %v2318 = vpack.c.b16 %v1486, %v1478
    %v2319 = vpack.c.b16 %v1487, %v1479
    %v2320 = vpack.c.b16 %v1488, %v1480
    %v2321 = vpack.c.b16 %v1489, %v1481
    %v2322 = vpack.c.b16 %v1490, %v1482
    %v2323 = vpack.c.b16 %v1491, %v1483
    %v2324 = vpack.c.b16 %v1492, %v1484
    %v2325 = vpack.c.b16 %v1501, %v1493
    %v2326 = vpack.c.b16 %v1502, %v1494
    %v2327 = vpack.c.b16 %v1503, %v1495
    %v2328 = vpack.c.b16 %v1504, %v1496
    %v2329 = vpack.c.b16 %v1505, %v1497
    %v2330 = vpack.c.b16 %v1506, %v1498
    %v2331 = vpack.c.b16 %v1507, %v1499
    %v2332 = vpack.c.b16 %v1508, %v1500
    %v2333 = vpack.c.b16 %v1517, %v1509
    %v2334 = vpack.c.b16 %v1518, %v1510
    %v2335 = vpack.c.b16 %v1519, %v1511
    %v2336 = vpack.c.b16 %v1520, %v1512
    %v2337 = vpack.c.b16 %v1521, %v1513
    %v2338 = vpack.c.b16 %v1522, %v1514
    %v2339 = vpack.c.b16 %v1523, %v1515
    %v2340 = vpack.c.b16 %v1524, %v1516
    %v2341 = vpack.c.b16 %v1533, %v1525
    %v2342 = vpack.c.b16 %v1534, %v1526
    %v2343 = vpack.c.b16 %v1535, %v1527
    %v2344 = vpack.c.b16 %v1536, %v1528
    %v2345 = vpack.c.b16 %v1537, %v1529
    %v2346 = vpack.c.b16 %v1538, %v1530
    %v2347 = vpack.c.b16 %v1539, %v1531
    %v2348 = vpack.c.b16 %v1540, %v1532
    %v2349 = vpack.c.b16 %v1549, %v1541
    %v2350 = vpack.c.b16 %v1550, %v1542
    %v2351 = vpack.c.b16 %v1551, %v1543
    %v2352 = vpack.c.b16 %v1552, %v1544
    %v2353 = vpack.c.b16 %v1553, %v1545
    %v2354 = vpack.c.b16 %v1554, %v1546
    %v2355 = vpack.c.b16 %v1555, %v1547
    %v2356 = vpack.c.b16 %v1556, %v1548
    %v2357 = vpack.c.b16 %v1565, %v1557
    %v2358 = vpack.c.b16 %v1566, %v1558
    %v2359 = vpack.c.b16 %v1567, %v1559
    %v2360 = vpack.c.b16 %v1568, %v1560
    %v2361 = vpack.c.b16 %v1569, %v1561
    %v2362 = vpack.c.b16 %v1570, %v1562
    %v2363 = vpack.c.b16 %v1571, %v1563
    %v2364 = vpack.c.b16 %v1572, %v1564
    %v2365 = vpack.c.b16 %v1581, %v1573
    %v2366 = vpack.c.b16 %v1582, %v1574
    %v2367 = vpack.c.b16 %v1583, %v1575
    %v2368 = vpack.c.b16 %v1584, %v1576
    %v2369 = vpack.c.b16 %v1585, %v1577
    %v2370 = vpack.c.b16 %v1586, %v1578
    %v2371 = vpack.c.b16 %v1587, %v1579
    %v2372 = vpack.c.b16 %v1588, %v1580
    %v2373 = vpack.c.b16 %v1597, %v1589
    %v2374 = vpack.c.b16 %v1598, %v1590
    %v2375 = vpack.c.b16 %v1599, %v1591
    %v2376 = vpack.c.b16 %v1600, %v1592
    %v2377 = vpack.c.b16 %v1601, %v1593
    %v2378 = vpack.c.b16 %v1602, %v1594
    %v2379 = vpack.c.b16 %v1603, %v1595
    %v2380 = vpack.c.b16 %v1604, %v1596
    %v2381 = vpack.c.b16 %v1613, %v1605
    %v2382 = vpack.c.b16 %v1614, %v1606
    %v2383 = vpack.c.b16 %v1615, %v1607
    %v2384 = vpack.c.b16 %v1616, %v1608
    %v2385 = vpack.c.b16 %v1617, %v1609
    %v2386 = vpack.c.b16 %v1618, %v1610
    %v2387 = vpack.c.b16 %v1619, %v1611
    %v2388 = vpack.c.b16 %v1620, %v1612
    %v2389 = vpack.c.b16 %v1629, %v1621
    %v2390 = vpack.c.b16 %v1630, %v1622
    %v2391 = vpack.c.b16 %v1631, %v1623
    %v2392 = vpack.c.b16 %v1632, %v1624
    %v2393 = vpack.c.b16 %v1633, %v1625
    %v2394 = vpack.c.b16 %v1634, %v1626
    %v2395 = vpack.c.b16 %v1635, %v1627
    %v2396 = vpack.c.b16 %v1636, %v1628
    %v2397 = vpack.c.b16 %v1645, %v1637
    %v2398 = vpack.c.b16 %v1646, %v1638
    %v2399 = vpack.c.b16 %v1647, %v1639
    %v2400 = vpack.c.b16 %v1648, %v1640
    %v2401 = vpack.c.b16 %v1649, %v1641
    %v2402 = vpack.c.b16 %v1650, %v1642
    %v2403 = vpack.c.b16 %v1651, %v1643
    %v2404 = vpack.c.b16 %v1652, %v1644
    %v2405 = vpack.c.b16 %v1661, %v1653
    %v2406 = vpack.c.b16 %v1662, %v1654
    %v2407 = vpack.c.b16 %v1663, %v1655
    %v2408 = vpack.c.b16 %v1664, %v1656
    %v2409 = vpack.c.b16 %v1665, %v1657
    %v2410 = vpack.c.b16 %v1666, %v1658
    %v2411 = vpack.c.b16 %v1667, %v1659
    %v2412 = vpack.c.b16 %v1668, %v1660
    %v2413 = vpack.c.b16 %v1677, %v1669
    %v2414 = vpack.c.b16 %v1678, %v1670
    %v2415 = vpack.c.b16 %v1679, %v1671
    %v2416 = vpack.c.b16 %v1680, %v1672
    %v2417 = vpack.c.b16 %v1681, %v1673
    %v2418 = vpack.c.b16 %v1682, %v1674
    %v2419 = vpack.c.b16 %v1683, %v1675
    %v2420 = vpack.c.b16 %v1684, %v1676
    %v2421 = vpack.c.b16 %v1693, %v1685
    %v2422 = vpack.c.b16 %v1694, %v1686
    %v2423 = vpack.c.b16 %v1695, %v1687
    %v2424 = vpack.c.b16 %v1696, %v1688
    %v2425 = vpack.c.b16 %v1697, %v1689
    %v2426 = vpack.c.b16 %v1698, %v1690
    %v2427 = vpack.c.b16 %v1699, %v1691
    %v2428 = vpack.c.b16 %v1700, %v1692
    %v2429 = vpack.c.b16 %v1709, %v1701
    %v2430 = vpack.c.b16 %v1710, %v1702
    %v2431 = vpack.c.b16 %v1711, %v1703
    %v2432 = vpack.c.b16 %v1712, %v1704
    %v2433 = vpack.c.b16 %v1713, %v1705
    %v2434 = vpack.c.b16 %v1714, %v1706
    %v2435 = vpack.c.b16 %v1715, %v1707
    %v2436 = vpack.c.b16 %v1716, %v1708
    %v2437 = vpack.c.b16 %v1725, %v1717
    %v2438 = vpack.c.b16 %v1726, %v1718
    %v2439 = vpack.c.b16 %v1727, %v1719
    %v2440 = vpack.c.b16 %v1728, %v1720
    %v2441 = vpack.c.b16 %v1729, %v1721
    %v2442 = vpack.c.b16 %v1730, %v1722
    %v2443 = vpack.c.b16 %v1731, %v1723
    %v2444 = vpack.c.b16 %v1732, %v1724
    %v2445 = vpack.c.b16 %v1741, %v1733
    %v2446 = vpack.c.b16 %v1742, %v1734
    %v2447 = vpack.c.b16 %v1743, %v1735
    %v2448 = vpack.c.b16 %v1744, %v1736
    %v2449 = vpack.c.b16 %v1745, %v1737
    %v2450 = vpack.c.b16 %v1746, %v1738
    %v2451 = vpack.c.b16 %v1747, %v1739
    %v2452 = vpack.c.b16 %v1748, %v1740
    %v2453 = vpack.c.b16 %v1757, %v1749
    %v2454 = vpack.c.b16 %v1758, %v1750
    %v2455 = vpack.c.b16 %v1759, %v1751
    %v2456 = vpack.c.b16 %v1760, %v1752
    %v2457 = vpack.c.b16 %v1761, %v1753
    %v2458 = vpack.c.b16 %v1762, %v1754
    %v2459 = vpack.c.b16 %v1763, %v1755
    %v2460 = vpack.c.b16 %v1764, %v1756
    %v2461 = vpack.c.b16 %v1773, %v1765
    %v2462 = vpack.c.b16 %v1774, %v1766
    %v2463 = vpack.c.b16 %v1775, %v1767
    %v2464 = vpack.c.b16 %v1776, %v1768
    %v2465 = vpack.c.b16 %v1777, %v1769
    %v2466 = vpack.c.b16 %v1778, %v1770
    %v2467 = vpack.c.b16 %v1779, %v1771
    %v2468 = vpack.c.b16 %v1780, %v1772
    %v2469 = vpack.c.b16 %v1789, %v1781
    %v2470 = vpack.c.b16 %v1790, %v1782
    %v2471 = vpack.c.b16 %v1791, %v1783
    %v2472 = vpack.c.b16 %v1792, %v1784
    %v2473 = vpack.c.b16 %v1793, %v1785
    %v2474 = vpack.c.b16 %v1794, %v1786
    %v2475 = vpack.c.b16 %v1795, %v1787
    %v2476 = vpack.c.b16 %v1796, %v1788
    %v2477 = vpack.c.b16 %v1805, %v1797
    %v2478 = vpack.c.b16 %v1806, %v1798
    %v2479 = vpack.c.b16 %v1807, %v1799
    %v2480 = vpack.c.b16 %v1808, %v1800
    %v2481 = vpack.c.b16 %v1809, %v1801
    %v2482 = vpack.c.b16 %v1810, %v1802
    %v2483 = vpack.c.b16 %v1811, %v1803
    %v2484 = vpack.c.b16 %v1812, %v1804
    %v2485 = vpack.c.b16 %v1821, %v1813
    %v2486 = vpack.c.b16 %v1822, %v1814
    %v2487 = vpack.c.b16 %v1823, %v1815
    %v2488 = vpack.c.b16 %v1824, %v1816
    %v2489 = vpack.c.b16 %v1825, %v1817
    %v2490 = vpack.c.b16 %v1826, %v1818
    %v2491 = vpack.c.b16 %v1827, %v1819
    %v2492 = vpack.c.b16 %v1828, %v1820
    %v2493 = vpack.c.b16 %v1837, %v1829
    %v2494 = vpack.c.b16 %v1838, %v1830
    %v2495 = vpack.c.b16 %v1839, %v1831
    %v2496 = vpack.c.b16 %v1840, %v1832
    %v2497 = vpack.c.b16 %v1841, %v1833
    %v2498 = vpack.c.b16 %v1842, %v1834
    %v2499 = vpack.c.b16 %v1843, %v1835
    %v2500 = vpack.c.b16 %v1844, %v1836
    %v2501 = vpack.c.b16 %v1853, %v1845
    %v2502 = vpack.c.b16 %v1854, %v1846
    %v2503 = vpack.c.b16 %v1855, %v1847
    %v2504 = vpack.c.b16 %v1856, %v1848
    %v2505 = vpack.c.b16 %v1857, %v1849
    %v2506 = vpack.c.b16 %v1858, %v1850
    %v2507 = vpack.c.b16 %v1859, %v1851
    %v2508 = vpack.c.b16 %v1860, %v1852
    %v2509 = vpack.c.b16 %v1869, %v1861
    %v2510 = vpack.c.b16 %v1870, %v1862
    %v2511 = vpack.c.b16 %v1871, %v1863
    %v2512 = vpack.c.b16 %v1872, %v1864
    %v2513 = vpack.c.b16 %v1873, %v1865
    %v2514 = vpack.c.b16 %v1874, %v1866
    %v2515 = vpack.c.b16 %v1875, %v1867
    %v2516 = vpack.c.b16 %v1876, %v1868
    %v2517 = vpack.c.b16 %v1885, %v1877
    %v2518 = vpack.c.b16 %v1886, %v1878
    %v2519 = vpack.c.b16 %v1887, %v1879
    %v2520 = vpack.c.b16 %v1888, %v1880
    %v2521 = vpack.c.b16 %v1889, %v1881
    %v2522 = vpack.c.b16 %v1890, %v1882
    %v2523 = vpack.c.b16 %v1891, %v1883
    %v2524 = vpack.c.b16 %v1892, %v1884
    %v2525 = vpack.c.b16 %v1901, %v1893
    %v2526 = vpack.c.b16 %v1902, %v1894
    %v2527 = vpack.c.b16 %v1903, %v1895
    %v2528 = vpack.c.b16 %v1904, %v1896
    %v2529 = vpack.c.b16 %v1905, %v1897
    %v2530 = vpack.c.b16 %v1906, %v1898
    %v2531 = vpack.c.b16 %v1907, %v1899
    %v2532 = vpack.c.b16 %v1908, %v1900
    %v2533 = vpack.c.b16 %v1917, %v1909
    %v2534 = vpack.c.b16 %v1918, %v1910
    %v2535 = vpack.c.b16 %v1919, %v1911
    %v2536 = vpack.c.b16 %v1920, %v1912
    %v2537 = vpack.c.b16 %v1921, %v1913
    %v2538 = vpack.c.b16 %v1922, %v1914
    %v2539 = vpack.c.b16 %v1923, %v1915
    %v2540 = vpack.c.b16 %v1924, %v1916
    %v2541 = vpack.c.b16 %v1933, %v1925
    %v2542 = vpack.c.b16 %v1934, %v1926
    %v2543 = vpack.c.b16 %v1935, %v1927
    %v2544 = vpack.c.b16 %v1936, %v1928
    %v2545 = vpack.c.b16 %v1937, %v1929
    %v2546 = vpack.c.b16 %v1938, %v1930
    %v2547 = vpack.c.b16 %v1939, %v1931
    %v2548 = vpack.c.b16 %v1940, %v1932
    %v2549 = vpack.c.b16 %v1949, %v1941
    %v2550 = vpack.c.b16 %v1950, %v1942
    %v2551 = vpack.c.b16 %v1951, %v1943
    %v2552 = vpack.c.b16 %v1952, %v1944
    %v2553 = vpack.c.b16 %v1953, %v1945
    %v2554 = vpack.c.b16 %v1954, %v1946
    %v2555 = vpack.c.b16 %v1955, %v1947
    %v2556 = vpack.c.b16 %v1956, %v1948
    %v2557 = vpack.c.b16 %v1965, %v1957
    %v2558 = vpack.c.b16 %v1966, %v1958
    %v2559 = vpack.c.b16 %v1967, %v1959
    %v2560 = vpack.c.b16 %v1968, %v1960
    %v2561 = vpack.c.b16 %v1969, %v1961
    %v2562 = vpack.c.b16 %v1970, %v1962
    %v2563 = vpack.c.b16 %v1971, %v1963
    %v2564 = vpack.c.b16 %v1972, %v1964
    %v2565 = vpack.c.b16 %v1981, %v1973
    %v2566 = vpack.c.b16 %v1982, %v1974
    %v2567 = vpack.c.b16 %v1983, %v1975
    %v2568 = vpack.c.b16 %v1984, %v1976
    %v2569 = vpack.c.b16 %v1985, %v1977
    %v2570 = vpack.c.b16 %v1986, %v1978
    %v2571 = vpack.c.b16 %v1987, %v1979
    %v2572 = vpack.c.b16 %v1988, %v1980
    %v2573 = vpack.c.b16 %v1997, %v1989
    %v2574 = vpack.c.b16 %v1998, %v1990
    %v2575 = vpack.c.b16 %v1999, %v1991
    %v2576 = vpack.c.b16 %v2000, %v1992
    %v2577 = vpack.c.b16 %v2001, %v1993
    %v2578 = vpack.c.b16 %v2002, %v1994
    %v2579 = vpack.c.b16 %v2003, %v1995
    %v2580 = vpack.c.b16 %v2004, %v1996
    %v2581 = vpack.c.b16 %v2013, %v2005
    %v2582 = vpack.c.b16 %v2014, %v2006
    %v2583 = vpack.c.b16 %v2015, %v2007
    %v2584 = vpack.c.b16 %v2016, %v2008
    %v2585 = vpack.c.b16 %v2017, %v2009
    %v2586 = vpack.c.b16 %v2018, %v2010
    %v2587 = vpack.c.b16 %v2019, %v2011
    %v2588 = vpack.c.b16 %v2020, %v2012
    %v2589 = vpack.c.b16 %v2029, %v2021
    %v2590 = vpack.c.b16 %v2030, %v2022
    %v2591 = vpack.c.b16 %v2031, %v2023
    %v2592 = vpack.c.b16 %v2032, %v2024
    %v2593 = vpack.c.b16 %v2033, %v2025
    %v2594 = vpack.c.b16 %v2034, %v2026
    %v2595 = vpack.c.b16 %v2035, %v2027
    %v2596 = vpack.c.b16 %v2036, %v2028
    %v2597 = vpack.c.b16 %v2045, %v2037
    %v2598 = vpack.c.b16 %v2046, %v2038
    %v2599 = vpack.c.b16 %v2047, %v2039
    %v2600 = vpack.c.b16 %v2048, %v2040
    %v2601 = vpack.c.b16 %v2049, %v2041
    %v2602 = vpack.c.b16 %v2050, %v2042
    %v2603 = vpack.c.b16 %v2051, %v2043
    %v2604 = vpack.c.b16 %v2052, %v2044
    %v2605 = vpack.c.b16 %v2061, %v2053
    %v2606 = vpack.c.b16 %v2062, %v2054
    %v2607 = vpack.c.b16 %v2063, %v2055
    %v2608 = vpack.c.b16 %v2064, %v2056
    %v2609 = vpack.c.b16 %v2065, %v2057
    %v2610 = vpack.c.b16 %v2066, %v2058
    %v2611 = vpack.c.b16 %v2067, %v2059
    %v2612 = vpack.c.b16 %v2068, %v2060
    %v2613 = vpack.c.b16 %v2077, %v2069
    %v2614 = vpack.c.b16 %v2078, %v2070
    %v2615 = vpack.c.b16 %v2079, %v2071
    %v2616 = vpack.c.b16 %v2080, %v2072
    %v2617 = vpack.c.b16 %v2081, %v2073
    %v2618 = vpack.c.b16 %v2082, %v2074
    %v2619 = vpack.c.b16 %v2083, %v2075
    %v2620 = vpack.c.b16 %v2084, %v2076
    %v2621 = vpack.c.b16 %v2093, %v2085
    %v2622 = vpack.c.b16 %v2094, %v2086
    %v2623 = vpack.c.b16 %v2095, %v2087
    %v2624 = vpack.c.b16 %v2096, %v2088
    %v2625 = vpack.c.b16 %v2097, %v2089
    %v2626 = vpack.c.b16 %v2098, %v2090
    %v2627 = vpack.c.b16 %v2099, %v2091
    %v2628 = vpack.c.b16 %v2100, %v2092
    %v2629 = vpack.c.b16 %v2109, %v2101
    %v2630 = vpack.c.b16 %v2110, %v2102
    %v2631 = vpack.c.b16 %v2111, %v2103
    %v2632 = vpack.c.b16 %v2112, %v2104
    %v2633 = vpack.c.b16 %v2113, %v2105
    %v2634 = vpack.c.b16 %v2114, %v2106
    %v2635 = vpack.c.b16 %v2115, %v2107
    %v2636 = vpack.c.b16 %v2116, %v2108
    %v2637 = vpack.c.b16 %v2125, %v2117
    %v2638 = vpack.c.b16 %v2126, %v2118
    %v2639 = vpack.c.b16 %v2127, %v2119
    %v2640 = vpack.c.b16 %v2128, %v2120
    %v2641 = vpack.c.b16 %v2129, %v2121
    %v2642 = vpack.c.b16 %v2130, %v2122
    %v2643 = vpack.c.b16 %v2131, %v2123
    %v2644 = vpack.c.b16 %v2132, %v2124
    %3157 = vmatprep.subr.bf16.mxu0 %v2134
    %3158 = vmatpush1.bf16.msra.mxu0 %v2133
    %3159 = vmatprep.subr.bf16.mxu0 %v2142
    %3160 = vmatpush1.bf16.msra.mxu0 %v2141
    %3161 = vmatprep.subr.bf16.mxu0 %v2150
    %3162 = vmatpush1.bf16.msra.mxu0 %v2149
    %3163 = vmatprep.subr.bf16.mxu0 %v2158
    %3164 = vmatpush1.bf16.msra.mxu0 %v2157
    %3165 = vmatprep.subr.bf16.mxu0 %v2166
    %3166 = vmatpush1.bf16.msra.mxu0 %v2165
    %3167 = vmatprep.subr.bf16.mxu0 %v2174
    %3168 = vmatpush1.bf16.msra.mxu0 %v2173
    %3169 = vmatprep.subr.bf16.mxu0 %v2182
    %3170 = vmatpush1.bf16.msra.mxu0 %v2181
    %3171 = vmatprep.subr.bf16.mxu0 %v2190
    %3172 = vmatpush1.bf16.msra.mxu0 %v2189
    %3173 = vmatprep.subr.bf16.mxu0 %v2198
    %3174 = vmatpush1.bf16.msra.mxu0 %v2197
    %3175 = vmatprep.subr.bf16.mxu0 %v2206
    %3176 = vmatpush1.bf16.msra.mxu0 %v2205
    %3177 = vmatprep.subr.bf16.mxu0 %v2214
    %3178 = vmatpush1.bf16.msra.mxu0 %v2213
    %3179 = vmatprep.subr.bf16.mxu0 %v2222
    %3180 = vmatpush1.bf16.msra.mxu0 %v2221
    %3181 = vmatprep.subr.bf16.mxu0 %v2230
    %3182 = vmatpush1.bf16.msra.mxu0 %v2229
    %3183 = vmatprep.subr.bf16.mxu0 %v2238
    %3184 = vmatpush1.bf16.msra.mxu0 %v2237
    %3185 = vmatprep.subr.bf16.mxu0 %v2246
    %3186 = vmatpush1.bf16.msra.mxu0 %v2245
    %3187 = vmatprep.subr.bf16.mxu0 %v2254
    %3188 = vmatpush1.bf16.msra.mxu0 %v2253
    %3189 = vmatprep.mubr.bf16.mxu0 %v78
    %3190 = vmatmul.mubr.bf16.gmra.mrb[0].mxu0 %v77
    %v3191 = vpop.f32.mrb[0].mxu0
    %v3192 = vadd.f32 0.0, %v3191
    %v3193 = vpop.f32.mrb[0].mxu0
    %v3194 = vadd.f32 0.0, %v3193
    %v3195 = vpop.f32.mrb[0].mxu0
    %v3196 = vpop.f32.mrb[0].mxu0
    %3197 = vdwg.mxu0
    %3198 = vmatprep.subr.bf16.mxu0 %v2262
    %3199 = vmatpush1.bf16.msra.mxu0 %v2261
    %3200 = vmatprep.subr.bf16.mxu0 %v2270
    %3201 = vmatpush1.bf16.msra.mxu0 %v2269
    %3202 = vmatprep.subr.bf16.mxu0 %v2278
    %3203 = vmatpush1.bf16.msra.mxu0 %v2277
    %3204 = vmatprep.subr.bf16.mxu0 %v2286
    %3205 = vmatpush1.bf16.msra.mxu0 %v2285
    %3206 = vmatprep.subr.bf16.mxu0 %v2294
    %3207 = vmatpush1.bf16.msra.mxu0 %v2293
    %3208 = vmatprep.subr.bf16.mxu0 %v2302
    %3209 = vmatpush1.bf16.msra.mxu0 %v2301
    %3210 = vmatprep.subr.bf16.mxu0 %v2310
    %3211 = vmatpush1.bf16.msra.mxu0 %v2309
    %3212 = vmatprep.subr.bf16.mxu0 %v2318
    %3213 = vmatpush1.bf16.msra.mxu0 %v2317
    %3214 = vmatprep.subr.bf16.mxu0 %v2326
    %3215 = vmatpush1.bf16.msra.mxu0 %v2325
    %3216 = vmatprep.subr.bf16.mxu0 %v2334
    %3217 = vmatpush1.bf16.msra.mxu0 %v2333
    %3218 = vmatprep.subr.bf16.mxu0 %v2342
    %3219 = vmatpush1.bf16.msra.mxu0 %v2341
    %3220 = vmatprep.subr.bf16.mxu0 %v2350
    %3221 = vmatpush1.bf16.msra.mxu0 %v2349
    %3222 = vmatprep.subr.bf16.mxu0 %v2358
    %3223 = vmatpush1.bf16.msra.mxu0 %v2357
    %3224 = vmatprep.subr.bf16.mxu0 %v2366
    %3225 = vmatpush1.bf16.msra.mxu0 %v2365
    %3226 = vmatprep.subr.bf16.mxu0 %v2374
    %3227 = vmatpush1.bf16.msra.mxu0 %v2373
    %3228 = vmatprep.subr.bf16.mxu0 %v2382
    %3229 = vmatpush1.bf16.msra.mxu0 %v2381
    %3230 = vmatprep.mubr.bf16.mxu0 %v80
    %3231 = vmatmul.mubr.bf16.gmra.mrb[0].mxu0 %v79
    %v3232 = vpop.f32.mrb[0].mxu0
    %v3233 = vadd.f32 %v3192, %v3232
    %v3234 = vpop.f32.mrb[0].mxu0
    %v3235 = vadd.f32 %v3194, %v3234
    %v3236 = vpop.f32.mrb[0].mxu0
    %v3237 = vpop.f32.mrb[0].mxu0
    %3238 = vdwg.mxu0
    %3239 = vmatprep.subr.bf16.mxu0 %v2390
    %3240 = vmatpush1.bf16.msra.mxu0 %v2389
    %3241 = vmatprep.subr.bf16.mxu0 %v2398
    %3242 = vmatpush1.bf16.msra.mxu0 %v2397
    %3243 = vmatprep.subr.bf16.mxu0 %v2406
    %3244 = vmatpush1.bf16.msra.mxu0 %v2405
    %3245 = vmatprep.subr.bf16.mxu0 %v2414
    %3246 = vmatpush1.bf16.msra.mxu0 %v2413
    %3247 = vmatprep.subr.bf16.mxu0 %v2422
    %3248 = vmatpush1.bf16.msra.mxu0 %v2421
    %3249 = vmatprep.subr.bf16.mxu0 %v2430
    %3250 = vmatpush1.bf16.msra.mxu0 %v2429
    %3251 = vmatprep.subr.bf16.mxu0 %v2438
    %3252 = vmatpush1.bf16.msra.mxu0 %v2437
    %3253 = vmatprep.subr.bf16.mxu0 %v2446
    %3254 = vmatpush1.bf16.msra.mxu0 %v2445
    %3255 = vmatprep.subr.bf16.mxu0 %v2454
    %3256 = vmatpush1.bf16.msra.mxu0 %v2453
    %3257 = vmatprep.subr.bf16.mxu0 %v2462
    %3258 = vmatpush1.bf16.msra.mxu0 %v2461
    %3259 = vmatprep.subr.bf16.mxu0 %v2470
    %3260 = vmatpush1.bf16.msra.mxu0 %v2469
    %3261 = vmatprep.subr.bf16.mxu0 %v2478
    %3262 = vmatpush1.bf16.msra.mxu0 %v2477
    %3263 = vmatprep.subr.bf16.mxu0 %v2486
    %3264 = vmatpush1.bf16.msra.mxu0 %v2485
    %3265 = vmatprep.subr.bf16.mxu0 %v2494
    %3266 = vmatpush1.bf16.msra.mxu0 %v2493
    %3267 = vmatprep.subr.bf16.mxu0 %v2502
    %3268 = vmatpush1.bf16.msra.mxu0 %v2501
    %3269 = vmatprep.subr.bf16.mxu0 %v2510
    %3270 = vmatpush1.bf16.msra.mxu0 %v2509
    %3271 = vmatprep.mubr.bf16.mxu0 %v82
    %3272 = vmatmul.mubr.bf16.gmra.mrb[0].mxu0 %v81
    %v3273 = vpop.f32.mrb[0].mxu0
    %v3274 = vadd.f32 %v3233, %v3273
    %v3275 = vpop.f32.mrb[0].mxu0
    %v3276 = vadd.f32 %v3235, %v3275
    %v3277 = vpop.f32.mrb[0].mxu0
    %v3278 = vpop.f32.mrb[0].mxu0
    %3279 = vdwg.mxu0
    %3280 = vmatprep.subr.bf16.mxu0 %v2518
    %3281 = vmatpush1.bf16.msra.mxu0 %v2517
    %3282 = vmatprep.subr.bf16.mxu0 %v2526
    %3283 = vmatpush1.bf16.msra.mxu0 %v2525
    %3284 = vmatprep.subr.bf16.mxu0 %v2534
    %3285 = vmatpush1.bf16.msra.mxu0 %v2533
    %3286 = vmatprep.subr.bf16.mxu0 %v2542
    %3287 = vmatpush1.bf16.msra.mxu0 %v2541
    %3288 = vmatprep.subr.bf16.mxu0 %v2550
    %3289 = vmatpush1.bf16.msra.mxu0 %v2549
    %3290 = vmatprep.subr.bf16.mxu0 %v2558
    %3291 = vmatpush1.bf16.msra.mxu0 %v2557
    %3292 = vmatprep.subr.bf16.mxu0 %v2566
    %3293 = vmatpush1.bf16.msra.mxu0 %v2565
    %3294 = vmatprep.subr.bf16.mxu0 %v2574
    %3295 = vmatpush1.bf16.msra.mxu0 %v2573
    %3296 = vmatprep.subr.bf16.mxu0 %v2582
    %3297 = vmatpush1.bf16.msra.mxu0 %v2581
    %3298 = vmatprep.subr.bf16.mxu0 %v2590
    %3299 = vmatpush1.bf16.msra.mxu0 %v2589
    %3300 = vmatprep.subr.bf16.mxu0 %v2598
    %3301 = vmatpush1.bf16.msra.mxu0 %v2597
    %3302 = vmatprep.subr.bf16.mxu0 %v2606
    %3303 = vmatpush1.bf16.msra.mxu0 %v2605
    %3304 = vmatprep.subr.bf16.mxu0 %v2614
    %3305 = vmatpush1.bf16.msra.mxu0 %v2613
    %3306 = vmatprep.subr.bf16.mxu0 %v2622
    %3307 = vmatpush1.bf16.msra.mxu0 %v2621
    %3308 = vmatprep.subr.bf16.mxu0 %v2630
    %3309 = vmatpush1.bf16.msra.mxu0 %v2629
    %3310 = vmatprep.subr.bf16.mxu0 %v2638
    %3311 = vmatpush1.bf16.msra.mxu0 %v2637
    %3312 = vmatprep.mubr.bf16.mxu0 %v84
    %3313 = vmatmul.mubr.bf16.gmra.mrb[0].mxu0 %v83
    %v3314 = vpop.f32.mrb[0].mxu0
    %v3315 = vadd.f32 %v3274, %v3314
    %v3316 = vpop.f32.mrb[0].mxu0
    %v3317 = vadd.f32 %v3276, %v3316
    %v3318 = vpop.f32.mrb[0].mxu0
    %v3319 = vpop.f32.mrb[0].mxu0
    %3320 = vdwg.mxu0
    %3321 = vmatprep.subr.bf16.mxu0 %v2136
    %3322 = vmatpush1.bf16.msra.mxu0 %v2135
    %3323 = vmatprep.subr.bf16.mxu0 %v2144
    %3324 = vmatpush1.bf16.msra.mxu0 %v2143
    %3325 = vmatprep.subr.bf16.mxu0 %v2152
    %3326 = vmatpush1.bf16.msra.mxu0 %v2151
    %3327 = vmatprep.subr.bf16.mxu0 %v2160
    %3328 = vmatpush1.bf16.msra.mxu0 %v2159
    %3329 = vmatprep.subr.bf16.mxu0 %v2168
    %3330 = vmatpush1.bf16.msra.mxu0 %v2167
    %3331 = vmatprep.subr.bf16.mxu0 %v2176
    %3332 = vmatpush1.bf16.msra.mxu0 %v2175
    %3333 = vmatprep.subr.bf16.mxu0 %v2184
    %3334 = vmatpush1.bf16.msra.mxu0 %v2183
    %3335 = vmatprep.subr.bf16.mxu0 %v2192
    %3336 = vmatpush1.bf16.msra.mxu0 %v2191
    %3337 = vmatprep.subr.bf16.mxu0 %v2200
    %3338 = vmatpush1.bf16.msra.mxu0 %v2199
    %3339 = vmatprep.subr.bf16.mxu0 %v2208
    %3340 = vmatpush1.bf16.msra.mxu0 %v2207
    %3341 = vmatprep.subr.bf16.mxu0 %v2216
    %3342 = vmatpush1.bf16.msra.mxu0 %v2215
    %3343 = vmatprep.subr.bf16.mxu0 %v2224
    %3344 = vmatpush1.bf16.msra.mxu0 %v2223
    %3345 = vmatprep.subr.bf16.mxu0 %v2232
    %3346 = vmatpush1.bf16.msra.mxu0 %v2231
    %3347 = vmatprep.subr.bf16.mxu0 %v2240
    %3348 = vmatpush1.bf16.msra.mxu0 %v2239
    %3349 = vmatprep.subr.bf16.mxu0 %v2248
    %3350 = vmatpush1.bf16.msra.mxu0 %v2247
    %3351 = vmatprep.subr.bf16.mxu0 %v2256
    %3352 = vmatpush1.bf16.msra.mxu0 %v2255
    %3353 = vmatprep.mubr.bf16.mxu0 %v78
    %3354 = vmatmul.mubr.bf16.gmra.mrb[0].mxu0 %v77
    %v3355 = vpop.f32.mrb[0].mxu0
    %v3356 = vadd.f32 0.0, %v3355
    %v3357 = vpop.f32.mrb[0].mxu0
    %v3358 = vadd.f32 0.0, %v3357
    %v3359 = vpop.f32.mrb[0].mxu0
    %v3360 = vpop.f32.mrb[0].mxu0
    %3361 = vdwg.mxu0
    %3362 = vmatprep.subr.bf16.mxu0 %v2264
    %3363 = vmatpush1.bf16.msra.mxu0 %v2263
    %3364 = vmatprep.subr.bf16.mxu0 %v2272
    %3365 = vmatpush1.bf16.msra.mxu0 %v2271
    %3366 = vmatprep.subr.bf16.mxu0 %v2280
    %3367 = vmatpush1.bf16.msra.mxu0 %v2279
    %3368 = vmatprep.subr.bf16.mxu0 %v2288
    %3369 = vmatpush1.bf16.msra.mxu0 %v2287
    %3370 = vmatprep.subr.bf16.mxu0 %v2296
    %3371 = vmatpush1.bf16.msra.mxu0 %v2295
    %3372 = vmatprep.subr.bf16.mxu0 %v2304
    %3373 = vmatpush1.bf16.msra.mxu0 %v2303
    %3374 = vmatprep.subr.bf16.mxu0 %v2312
    %3375 = vmatpush1.bf16.msra.mxu0 %v2311
    %3376 = vmatprep.subr.bf16.mxu0 %v2320
    %3377 = vmatpush1.bf16.msra.mxu0 %v2319
    %3378 = vmatprep.subr.bf16.mxu0 %v2328
    %3379 = vmatpush1.bf16.msra.mxu0 %v2327
    %3380 = vmatprep.subr.bf16.mxu0 %v2336
    %3381 = vmatpush1.bf16.msra.mxu0 %v2335
    %3382 = vmatprep.subr.bf16.mxu0 %v2344
    %3383 = vmatpush1.bf16.msra.mxu0 %v2343
    %3384 = vmatprep.subr.bf16.mxu0 %v2352
    %3385 = vmatpush1.bf16.msra.mxu0 %v2351
    %3386 = vmatprep.subr.bf16.mxu0 %v2360
    %3387 = vmatpush1.bf16.msra.mxu0 %v2359
    %3388 = vmatprep.subr.bf16.mxu0 %v2368
    %3389 = vmatpush1.bf16.msra.mxu0 %v2367
    %3390 = vmatprep.subr.bf16.mxu0 %v2376
    %3391 = vmatpush1.bf16.msra.mxu0 %v2375
    %3392 = vmatprep.subr.bf16.mxu0 %v2384
    %3393 = vmatpush1.bf16.msra.mxu0 %v2383
    %3394 = vmatprep.mubr.bf16.mxu0 %v80
    %3395 = vmatmul.mubr.bf16.gmra.mrb[0].mxu0 %v79
    %v3396 = vpop.f32.mrb[0].mxu0
    %v3397 = vadd.f32 %v3356, %v3396
    %v3398 = vpop.f32.mrb[0].mxu0
    %v3399 = vadd.f32 %v3358, %v3398
    %v3400 = vpop.f32.mrb[0].mxu0
    %v3401 = vpop.f32.mrb[0].mxu0
    %3402 = vdwg.mxu0
    %3403 = vmatprep.subr.bf16.mxu0 %v2392
    %3404 = vmatpush1.bf16.msra.mxu0 %v2391
    %3405 = vmatprep.subr.bf16.mxu0 %v2400
    %3406 = vmatpush1.bf16.msra.mxu0 %v2399
    %3407 = vmatprep.subr.bf16.mxu0 %v2408
    %3408 = vmatpush1.bf16.msra.mxu0 %v2407
    %3409 = vmatprep.subr.bf16.mxu0 %v2416
    %3410 = vmatpush1.bf16.msra.mxu0 %v2415
    %3411 = vmatprep.subr.bf16.mxu0 %v2424
    %3412 = vmatpush1.bf16.msra.mxu0 %v2423
    %3413 = vmatprep.subr.bf16.mxu0 %v2432
    %3414 = vmatpush1.bf16.msra.mxu0 %v2431
    %3415 = vmatprep.subr.bf16.mxu0 %v2440
    %3416 = vmatpush1.bf16.msra.mxu0 %v2439
    %3417 = vmatprep.subr.bf16.mxu0 %v2448
    %3418 = vmatpush1.bf16.msra.mxu0 %v2447
    %3419 = vmatprep.subr.bf16.mxu0 %v2456
    %3420 = vmatpush1.bf16.msra.mxu0 %v2455
    %3421 = vmatprep.subr.bf16.mxu0 %v2464
    %3422 = vmatpush1.bf16.msra.mxu0 %v2463
    %3423 = vmatprep.subr.bf16.mxu0 %v2472
    %3424 = vmatpush1.bf16.msra.mxu0 %v2471
    %3425 = vmatprep.subr.bf16.mxu0 %v2480
    %3426 = vmatpush1.bf16.msra.mxu0 %v2479
    %3427 = vmatprep.subr.bf16.mxu0 %v2488
    %3428 = vmatpush1.bf16.msra.mxu0 %v2487
    %3429 = vmatprep.subr.bf16.mxu0 %v2496
    %3430 = vmatpush1.bf16.msra.mxu0 %v2495
    %3431 = vmatprep.subr.bf16.mxu0 %v2504
    %3432 = vmatpush1.bf16.msra.mxu0 %v2503
    %3433 = vmatprep.subr.bf16.mxu0 %v2512
    %3434 = vmatpush1.bf16.msra.mxu0 %v2511
    %3435 = vmatprep.mubr.bf16.mxu0 %v82
    %3436 = vmatmul.mubr.bf16.gmra.mrb[0].mxu0 %v81
    %v3437 = vpop.f32.mrb[0].mxu0
    %v3438 = vadd.f32 %v3397, %v3437
    %v3439 = vpop.f32.mrb[0].mxu0
    %v3440 = vadd.f32 %v3399, %v3439
    %v3441 = vpop.f32.mrb[0].mxu0
    %v3442 = vpop.f32.mrb[0].mxu0
    %3443 = vdwg.mxu0
    %3444 = vmatprep.subr.bf16.mxu0 %v2520
    %3445 = vmatpush1.bf16.msra.mxu0 %v2519
    %3446 = vmatprep.subr.bf16.mxu0 %v2528
    %3447 = vmatpush1.bf16.msra.mxu0 %v2527
    %3448 = vmatprep.subr.bf16.mxu0 %v2536
    %3449 = vmatpush1.bf16.msra.mxu0 %v2535
    %3450 = vmatprep.subr.bf16.mxu0 %v2544
    %3451 = vmatpush1.bf16.msra.mxu0 %v2543
    %3452 = vmatprep.subr.bf16.mxu0 %v2552
    %3453 = vmatpush1.bf16.msra.mxu0 %v2551
    %3454 = vmatprep.subr.bf16.mxu0 %v2560
    %3455 = vmatpush1.bf16.msra.mxu0 %v2559
    %3456 = vmatprep.subr.bf16.mxu0 %v2568
    %3457 = vmatpush1.bf16.msra.mxu0 %v2567
    %3458 = vmatprep.subr.bf16.mxu0 %v2576
    %3459 = vmatpush1.bf16.msra.mxu0 %v2575
    %3460 = vmatprep.subr.bf16.mxu0 %v2584
    %3461 = vmatpush1.bf16.msra.mxu0 %v2583
    %3462 = vmatprep.subr.bf16.mxu0 %v2592
    %3463 = vmatpush1.bf16.msra.mxu0 %v2591
    %3464 = vmatprep.subr.bf16.mxu0 %v2600
    %3465 = vmatpush1.bf16.msra.mxu0 %v2599
    %3466 = vmatprep.subr.bf16.mxu0 %v2608
    %3467 = vmatpush1.bf16.msra.mxu0 %v2607
    %3468 = vmatprep.subr.bf16.mxu0 %v2616
    %3469 = vmatpush1.bf16.msra.mxu0 %v2615
    %3470 = vmatprep.subr.bf16.mxu0 %v2624
    %3471 = vmatpush1.bf16.msra.mxu0 %v2623
    %3472 = vmatprep.subr.bf16.mxu0 %v2632
    %3473 = vmatpush1.bf16.msra.mxu0 %v2631
    %3474 = vmatprep.subr.bf16.mxu0 %v2640
    %3475 = vmatpush1.bf16.msra.mxu0 %v2639
    %3476 = vmatprep.mubr.bf16.mxu0 %v84
    %3477 = vmatmul.mubr.bf16.gmra.mrb[0].mxu0 %v83
    %v3478 = vpop.f32.mrb[0].mxu0
    %v3479 = vadd.f32 %v3438, %v3478
    %v3480 = vpop.f32.mrb[0].mxu0
    %v3481 = vadd.f32 %v3440, %v3480
    %v3482 = vpop.f32.mrb[0].mxu0
    %v3483 = vpop.f32.mrb[0].mxu0
    %3484 = vdwg.mxu0
    %3485 = vmatprep.subr.bf16.mxu0 %v2138
    %3486 = vmatpush1.bf16.msra.mxu0 %v2137
    %3487 = vmatprep.subr.bf16.mxu0 %v2146
    %3488 = vmatpush1.bf16.msra.mxu0 %v2145
    %3489 = vmatprep.subr.bf16.mxu0 %v2154
    %3490 = vmatpush1.bf16.msra.mxu0 %v2153
    %3491 = vmatprep.subr.bf16.mxu0 %v2162
    %3492 = vmatpush1.bf16.msra.mxu0 %v2161
    %3493 = vmatprep.subr.bf16.mxu0 %v2170
    %3494 = vmatpush1.bf16.msra.mxu0 %v2169
    %3495 = vmatprep.subr.bf16.mxu0 %v2178
    %3496 = vmatpush1.bf16.msra.mxu0 %v2177
    %3497 = vmatprep.subr.bf16.mxu0 %v2186
    %3498 = vmatpush1.bf16.msra.mxu0 %v2185
    %3499 = vmatprep.subr.bf16.mxu0 %v2194
    %3500 = vmatpush1.bf16.msra.mxu0 %v2193
    %3501 = vmatprep.subr.bf16.mxu0 %v2202
    %3502 = vmatpush1.bf16.msra.mxu0 %v2201
    %3503 = vmatprep.subr.bf16.mxu0 %v2210
    %3504 = vmatpush1.bf16.msra.mxu0 %v2209
    %3505 = vmatprep.subr.bf16.mxu0 %v2218
    %3506 = vmatpush1.bf16.msra.mxu0 %v2217
    %3507 = vmatprep.subr.bf16.mxu0 %v2226
    %3508 = vmatpush1.bf16.msra.mxu0 %v2225
    %3509 = vmatprep.subr.bf16.mxu0 %v2234
    %3510 = vmatpush1.bf16.msra.mxu0 %v2233
    %3511 = vmatprep.subr.bf16.mxu0 %v2242
    %3512 = vmatpush1.bf16.msra.mxu0 %v2241
    %3513 = vmatprep.subr.bf16.mxu0 %v2250
    %3514 = vmatpush1.bf16.msra.mxu0 %v2249
    %3515 = vmatprep.subr.bf16.mxu0 %v2258
    %3516 = vmatpush1.bf16.msra.mxu0 %v2257
    %3517 = vmatprep.mubr.bf16.mxu0 %v78
    %3518 = vmatmul.mubr.bf16.gmra.mrb[0].mxu0 %v77
    %v3519 = vpop.f32.mrb[0].mxu0
    %v3520 = vadd.f32 0.0, %v3519
    %v3521 = vpop.f32.mrb[0].mxu0
    %v3522 = vadd.f32 0.0, %v3521
    %v3523 = vpop.f32.mrb[0].mxu0
    %v3524 = vpop.f32.mrb[0].mxu0
    %3525 = vdwg.mxu0
    %3526 = vmatprep.subr.bf16.mxu0 %v2266
    %3527 = vmatpush1.bf16.msra.mxu0 %v2265
    %3528 = vmatprep.subr.bf16.mxu0 %v2274
    %3529 = vmatpush1.bf16.msra.mxu0 %v2273
    %3530 = vmatprep.subr.bf16.mxu0 %v2282
    %3531 = vmatpush1.bf16.msra.mxu0 %v2281
    %3532 = vmatprep.subr.bf16.mxu0 %v2290
    %3533 = vmatpush1.bf16.msra.mxu0 %v2289
    %3534 = vmatprep.subr.bf16.mxu0 %v2298
    %3535 = vmatpush1.bf16.msra.mxu0 %v2297
    %3536 = vmatprep.subr.bf16.mxu0 %v2306
    %3537 = vmatpush1.bf16.msra.mxu0 %v2305
    %3538 = vmatprep.subr.bf16.mxu0 %v2314
    %3539 = vmatpush1.bf16.msra.mxu0 %v2313
    %3540 = vmatprep.subr.bf16.mxu0 %v2322
    %3541 = vmatpush1.bf16.msra.mxu0 %v2321
    %3542 = vmatprep.subr.bf16.mxu0 %v2330
    %3543 = vmatpush1.bf16.msra.mxu0 %v2329
    %3544 = vmatprep.subr.bf16.mxu0 %v2338
    %3545 = vmatpush1.bf16.msra.mxu0 %v2337
    %3546 = vmatprep.subr.bf16.mxu0 %v2346
    %3547 = vmatpush1.bf16.msra.mxu0 %v2345
    %3548 = vmatprep.subr.bf16.mxu0 %v2354
    %3549 = vmatpush1.bf16.msra.mxu0 %v2353
    %3550 = vmatprep.subr.bf16.mxu0 %v2362
    %3551 = vmatpush1.bf16.msra.mxu0 %v2361
    %3552 = vmatprep.subr.bf16.mxu0 %v2370
    %3553 = vmatpush1.bf16.msra.mxu0 %v2369
    %3554 = vmatprep.subr.bf16.mxu0 %v2378
    %3555 = vmatpush1.bf16.msra.mxu0 %v2377
    %3556 = vmatprep.subr.bf16.mxu0 %v2386
    %3557 = vmatpush1.bf16.msra.mxu0 %v2385
    %3558 = vmatprep.mubr.bf16.mxu0 %v80
    %3559 = vmatmul.mubr.bf16.gmra.mrb[0].mxu0 %v79
    %v3560 = vpop.f32.mrb[0].mxu0
    %v3561 = vadd.f32 %v3520, %v3560
    %v3562 = vpop.f32.mrb[0].mxu0
    %v3563 = vadd.f32 %v3522, %v3562
    %v3564 = vpop.f32.mrb[0].mxu0
    %v3565 = vpop.f32.mrb[0].mxu0
    %3566 = vdwg.mxu0
    %3567 = vmatprep.subr.bf16.mxu0 %v2394
    %3568 = vmatpush1.bf16.msra.mxu0 %v2393
    %3569 = vmatprep.subr.bf16.mxu0 %v2402
    %3570 = vmatpush1.bf16.msra.mxu0 %v2401
    %3571 = vmatprep.subr.bf16.mxu0 %v2410
    %3572 = vmatpush1.bf16.msra.mxu0 %v2409
    %3573 = vmatprep.subr.bf16.mxu0 %v2418
    %3574 = vmatpush1.bf16.msra.mxu0 %v2417
    %3575 = vmatprep.subr.bf16.mxu0 %v2426
    %3576 = vmatpush1.bf16.msra.mxu0 %v2425
    %3577 = vmatprep.subr.bf16.mxu0 %v2434
    %3578 = vmatpush1.bf16.msra.mxu0 %v2433
    %3579 = vmatprep.subr.bf16.mxu0 %v2442
    %3580 = vmatpush1.bf16.msra.mxu0 %v2441
    %3581 = vmatprep.subr.bf16.mxu0 %v2450
    %3582 = vmatpush1.bf16.msra.mxu0 %v2449
    %3583 = vmatprep.subr.bf16.mxu0 %v2458
    %3584 = vmatpush1.bf16.msra.mxu0 %v2457
    %3585 = vmatprep.subr.bf16.mxu0 %v2466
    %3586 = vmatpush1.bf16.msra.mxu0 %v2465
    %3587 = vmatprep.subr.bf16.mxu0 %v2474
    %3588 = vmatpush1.bf16.msra.mxu0 %v2473
    %3589 = vmatprep.subr.bf16.mxu0 %v2482
    %3590 = vmatpush1.bf16.msra.mxu0 %v2481
    %3591 = vmatprep.subr.bf16.mxu0 %v2490
    %3592 = vmatpush1.bf16.msra.mxu0 %v2489
    %3593 = vmatprep.subr.bf16.mxu0 %v2498
    %3594 = vmatpush1.bf16.msra.mxu0 %v2497
    %3595 = vmatprep.subr.bf16.mxu0 %v2506
    %3596 = vmatpush1.bf16.msra.mxu0 %v2505
    %3597 = vmatprep.subr.bf16.mxu0 %v2514
    %3598 = vmatpush1.bf16.msra.mxu0 %v2513
    %3599 = vmatprep.mubr.bf16.mxu0 %v82
    %3600 = vmatmul.mubr.bf16.gmra.mrb[0].mxu0 %v81
    %v3601 = vpop.f32.mrb[0].mxu0
    %v3602 = vadd.f32 %v3561, %v3601
    %v3603 = vpop.f32.mrb[0].mxu0
    %v3604 = vadd.f32 %v3563, %v3603
    %v3605 = vpop.f32.mrb[0].mxu0
    %v3606 = vpop.f32.mrb[0].mxu0
    %3607 = vdwg.mxu0
    %3608 = vmatprep.subr.bf16.mxu0 %v2522
    %3609 = vmatpush1.bf16.msra.mxu0 %v2521
    %3610 = vmatprep.subr.bf16.mxu0 %v2530
    %3611 = vmatpush1.bf16.msra.mxu0 %v2529
    %3612 = vmatprep.subr.bf16.mxu0 %v2538
    %3613 = vmatpush1.bf16.msra.mxu0 %v2537
    %3614 = vmatprep.subr.bf16.mxu0 %v2546
    %3615 = vmatpush1.bf16.msra.mxu0 %v2545
    %3616 = vmatprep.subr.bf16.mxu0 %v2554
    %3617 = vmatpush1.bf16.msra.mxu0 %v2553
    %3618 = vmatprep.subr.bf16.mxu0 %v2562
    %3619 = vmatpush1.bf16.msra.mxu0 %v2561
    %3620 = vmatprep.subr.bf16.mxu0 %v2570
    %3621 = vmatpush1.bf16.msra.mxu0 %v2569
    %3622 = vmatprep.subr.bf16.mxu0 %v2578
    %3623 = vmatpush1.bf16.msra.mxu0 %v2577
    %3624 = vmatprep.subr.bf16.mxu0 %v2586
    %3625 = vmatpush1.bf16.msra.mxu0 %v2585
    %3626 = vmatprep.subr.bf16.mxu0 %v2594
    %3627 = vmatpush1.bf16.msra.mxu0 %v2593
    %3628 = vmatprep.subr.bf16.mxu0 %v2602
    %3629 = vmatpush1.bf16.msra.mxu0 %v2601
    %3630 = vmatprep.subr.bf16.mxu0 %v2610
    %3631 = vmatpush1.bf16.msra.mxu0 %v2609
    %3632 = vmatprep.subr.bf16.mxu0 %v2618
    %3633 = vmatpush1.bf16.msra.mxu0 %v2617
    %3634 = vmatprep.subr.bf16.mxu0 %v2626
    %3635 = vmatpush1.bf16.msra.mxu0 %v2625
    %3636 = vmatprep.subr.bf16.mxu0 %v2634
    %3637 = vmatpush1.bf16.msra.mxu0 %v2633
    %3638 = vmatprep.subr.bf16.mxu0 %v2642
    %3639 = vmatpush1.bf16.msra.mxu0 %v2641
    %3640 = vmatprep.mubr.bf16.mxu0 %v84
    %3641 = vmatmul.mubr.bf16.gmra.mrb[0].mxu0 %v83
    %v3642 = vpop.f32.mrb[0].mxu0
    %v3643 = vadd.f32 %v3602, %v3642
    %v3644 = vpop.f32.mrb[0].mxu0
    %v3645 = vadd.f32 %v3604, %v3644
    %v3646 = vpop.f32.mrb[0].mxu0
    %v3647 = vpop.f32.mrb[0].mxu0
    %3648 = vdwg.mxu0
    %3649 = vmatprep.subr.bf16.mxu0 %v2140
    %3650 = vmatpush1.bf16.msra.mxu0 %v2139
    %3651 = vmatprep.subr.bf16.mxu0 %v2148
    %3652 = vmatpush1.bf16.msra.mxu0 %v2147
    %3653 = vmatprep.subr.bf16.mxu0 %v2156
    %3654 = vmatpush1.bf16.msra.mxu0 %v2155
    %3655 = vmatprep.subr.bf16.mxu0 %v2164
    %3656 = vmatpush1.bf16.msra.mxu0 %v2163
    %3657 = vmatprep.subr.bf16.mxu0 %v2172
    %3658 = vmatpush1.bf16.msra.mxu0 %v2171
    %3659 = vmatprep.subr.bf16.mxu0 %v2180
    %3660 = vmatpush1.bf16.msra.mxu0 %v2179
    %3661 = vmatprep.subr.bf16.mxu0 %v2188
    %3662 = vmatpush1.bf16.msra.mxu0 %v2187
    %3663 = vmatprep.subr.bf16.mxu0 %v2196
    %3664 = vmatpush1.bf16.msra.mxu0 %v2195
    %3665 = vmatprep.subr.bf16.mxu0 %v2204
    %3666 = vmatpush1.bf16.msra.mxu0 %v2203
    %3667 = vmatprep.subr.bf16.mxu0 %v2212
    %3668 = vmatpush1.bf16.msra.mxu0 %v2211
    %3669 = vmatprep.subr.bf16.mxu0 %v2220
    %3670 = vmatpush1.bf16.msra.mxu0 %v2219
    %3671 = vmatprep.subr.bf16.mxu0 %v2228
    %3672 = vmatpush1.bf16.msra.mxu0 %v2227
    %3673 = vmatprep.subr.bf16.mxu0 %v2236
    %3674 = vmatpush1.bf16.msra.mxu0 %v2235
    %3675 = vmatprep.subr.bf16.mxu0 %v2244
    %3676 = vmatpush1.bf16.msra.mxu0 %v2243
    %3677 = vmatprep.subr.bf16.mxu0 %v2252
    %3678 = vmatpush1.bf16.msra.mxu0 %v2251
    %3679 = vmatprep.subr.bf16.mxu0 %v2260
    %3680 = vmatpush1.bf16.msra.mxu0 %v2259
    %3681 = vmatprep.mubr.bf16.mxu0 %v78
    %3682 = vmatmul.mubr.bf16.gmra.mrb[0].mxu0 %v77
    %v3683 = vpop.f32.mrb[0].mxu0
    %v3684 = vadd.f32 0.0, %v3683
    %v3685 = vpop.f32.mrb[0].mxu0
    %v3686 = vadd.f32 0.0, %v3685
    %v3687 = vpop.f32.mrb[0].mxu0
    %v3688 = vpop.f32.mrb[0].mxu0
    %3689 = vdwg.mxu0
    %3690 = vmatprep.subr.bf16.mxu0 %v2268
    %3691 = vmatpush1.bf16.msra.mxu0 %v2267
    %3692 = vmatprep.subr.bf16.mxu0 %v2276
    %3693 = vmatpush1.bf16.msra.mxu0 %v2275
    %3694 = vmatprep.subr.bf16.mxu0 %v2284
    %3695 = vmatpush1.bf16.msra.mxu0 %v2283
    %3696 = vmatprep.subr.bf16.mxu0 %v2292
    %3697 = vmatpush1.bf16.msra.mxu0 %v2291
    %3698 = vmatprep.subr.bf16.mxu0 %v2300
    %3699 = vmatpush1.bf16.msra.mxu0 %v2299
    %3700 = vmatprep.subr.bf16.mxu0 %v2308
    %3701 = vmatpush1.bf16.msra.mxu0 %v2307
    %3702 = vmatprep.subr.bf16.mxu0 %v2316
    %3703 = vmatpush1.bf16.msra.mxu0 %v2315
    %3704 = vmatprep.subr.bf16.mxu0 %v2324
    %3705 = vmatpush1.bf16.msra.mxu0 %v2323
    %3706 = vmatprep.subr.bf16.mxu0 %v2332
    %3707 = vmatpush1.bf16.msra.mxu0 %v2331
    %3708 = vmatprep.subr.bf16.mxu0 %v2340
    %3709 = vmatpush1.bf16.msra.mxu0 %v2339
    %3710 = vmatprep.subr.bf16.mxu0 %v2348
    %3711 = vmatpush1.bf16.msra.mxu0 %v2347
    %3712 = vmatprep.subr.bf16.mxu0 %v2356
    %3713 = vmatpush1.bf16.msra.mxu0 %v2355
    %3714 = vmatprep.subr.bf16.mxu0 %v2364
    %3715 = vmatpush1.bf16.msra.mxu0 %v2363
    %3716 = vmatprep.subr.bf16.mxu0 %v2372
    %3717 = vmatpush1.bf16.msra.mxu0 %v2371
    %3718 = vmatprep.subr.bf16.mxu0 %v2380
    %3719 = vmatpush1.bf16.msra.mxu0 %v2379
    %3720 = vmatprep.subr.bf16.mxu0 %v2388
    %3721 = vmatpush1.bf16.msra.mxu0 %v2387
    %3722 = vmatprep.mubr.bf16.mxu0 %v80
    %3723 = vmatmul.mubr.bf16.gmra.mrb[0].mxu0 %v79
    %v3724 = vpop.f32.mrb[0].mxu0
    %v3725 = vadd.f32 %v3684, %v3724
    %v3726 = vpop.f32.mrb[0].mxu0
    %v3727 = vadd.f32 %v3686, %v3726
    %v3728 = vpop.f32.mrb[0].mxu0
    %v3729 = vpop.f32.mrb[0].mxu0
    %3730 = vdwg.mxu0
    %3731 = vmatprep.subr.bf16.mxu0 %v2396
    %3732 = vmatpush1.bf16.msra.mxu0 %v2395
    %3733 = vmatprep.subr.bf16.mxu0 %v2404
    %3734 = vmatpush1.bf16.msra.mxu0 %v2403
    %3735 = vmatprep.subr.bf16.mxu0 %v2412
    %3736 = vmatpush1.bf16.msra.mxu0 %v2411
    %3737 = vmatprep.subr.bf16.mxu0 %v2420
    %3738 = vmatpush1.bf16.msra.mxu0 %v2419
    %3739 = vmatprep.subr.bf16.mxu0 %v2428
    %3740 = vmatpush1.bf16.msra.mxu0 %v2427
    %3741 = vmatprep.subr.bf16.mxu0 %v2436
    %3742 = vmatpush1.bf16.msra.mxu0 %v2435
    %3743 = vmatprep.subr.bf16.mxu0 %v2444
    %3744 = vmatpush1.bf16.msra.mxu0 %v2443
    %3745 = vmatprep.subr.bf16.mxu0 %v2452
    %3746 = vmatpush1.bf16.msra.mxu0 %v2451
    %3747 = vmatprep.subr.bf16.mxu0 %v2460
    %3748 = vmatpush1.bf16.msra.mxu0 %v2459
    %3749 = vmatprep.subr.bf16.mxu0 %v2468
    %3750 = vmatpush1.bf16.msra.mxu0 %v2467
    %3751 = vmatprep.subr.bf16.mxu0 %v2476
    %3752 = vmatpush1.bf16.msra.mxu0 %v2475
    %3753 = vmatprep.subr.bf16.mxu0 %v2484
    %3754 = vmatpush1.bf16.msra.mxu0 %v2483
    %3755 = vmatprep.subr.bf16.mxu0 %v2492
    %3756 = vmatpush1.bf16.msra.mxu0 %v2491
    %3757 = vmatprep.subr.bf16.mxu0 %v2500
    %3758 = vmatpush1.bf16.msra.mxu0 %v2499
    %3759 = vmatprep.subr.bf16.mxu0 %v2508
    %3760 = vmatpush1.bf16.msra.mxu0 %v2507
    %3761 = vmatprep.subr.bf16.mxu0 %v2516
    %3762 = vmatpush1.bf16.msra.mxu0 %v2515
    %3763 = vmatprep.mubr.bf16.mxu0 %v82
    %3764 = vmatmul.mubr.bf16.gmra.mrb[0].mxu0 %v81
    %v3765 = vpop.f32.mrb[0].mxu0
    %v3766 = vadd.f32 %v3725, %v3765
    %v3767 = vpop.f32.mrb[0].mxu0
    %v3768 = vadd.f32 %v3727, %v3767
    %v3769 = vpop.f32.mrb[0].mxu0
    %v3770 = vpop.f32.mrb[0].mxu0
    %3771 = vdwg.mxu0
    %3772 = vmatprep.subr.bf16.mxu0 %v2524
    %3773 = vmatpush1.bf16.msra.mxu0 %v2523
    %3774 = vmatprep.subr.bf16.mxu0 %v2532
    %3775 = vmatpush1.bf16.msra.mxu0 %v2531
    %3776 = vmatprep.subr.bf16.mxu0 %v2540
    %3777 = vmatpush1.bf16.msra.mxu0 %v2539
    %3778 = vmatprep.subr.bf16.mxu0 %v2548
    %3779 = vmatpush1.bf16.msra.mxu0 %v2547
    %3780 = vmatprep.subr.bf16.mxu0 %v2556
    %3781 = vmatpush1.bf16.msra.mxu0 %v2555
    %3782 = vmatprep.subr.bf16.mxu0 %v2564
    %3783 = vmatpush1.bf16.msra.mxu0 %v2563
    %3784 = vmatprep.subr.bf16.mxu0 %v2572
    %3785 = vmatpush1.bf16.msra.mxu0 %v2571
    %3786 = vmatprep.subr.bf16.mxu0 %v2580
    %3787 = vmatpush1.bf16.msra.mxu0 %v2579
    %3788 = vmatprep.subr.bf16.mxu0 %v2588
    %3789 = vmatpush1.bf16.msra.mxu0 %v2587
    %3790 = vmatprep.subr.bf16.mxu0 %v2596
    %3791 = vmatpush1.bf16.msra.mxu0 %v2595
    %3792 = vmatprep.subr.bf16.mxu0 %v2604
    %3793 = vmatpush1.bf16.msra.mxu0 %v2603
    %3794 = vmatprep.subr.bf16.mxu0 %v2612
    %3795 = vmatpush1.bf16.msra.mxu0 %v2611
    %3796 = vmatprep.subr.bf16.mxu0 %v2620
    %3797 = vmatpush1.bf16.msra.mxu0 %v2619
    %3798 = vmatprep.subr.bf16.mxu0 %v2628
    %3799 = vmatpush1.bf16.msra.mxu0 %v2627
    %3800 = vmatprep.subr.bf16.mxu0 %v2636
    %3801 = vmatpush1.bf16.msra.mxu0 %v2635
    %3802 = vmatprep.subr.bf16.mxu0 %v2644
    %3803 = vmatpush1.bf16.msra.mxu0 %v2643
    %3804 = vmatprep.mubr.bf16.mxu0 %v84
    %3805 = vmatmul.mubr.bf16.gmra.mrb[0].mxu0 %v83
    %v3806 = vpop.f32.mrb[0].mxu0
    %v3807 = vadd.f32 %v3766, %v3806
    %v3808 = vpop.f32.mrb[0].mxu0
    %v3809 = vadd.f32 %v3768, %v3808
    %v3810 = vpop.f32.mrb[0].mxu0
    %v3811 = vpop.f32.mrb[0].mxu0
    %3812 = vdwg.mxu0
    %v3813 = vrot.slane %v3315, 4
    %v3814 = vadd.f32 %v3315, %v3813
    %v3815 = vrot.slane %v3814, 2
    %v3816 = vadd.f32 %v3814, %v3815
    %v3817 = vrot.slane %v3816, 1
    %v3818 = vadd.f32 %v3816, %v3817
    %v3819 = vrot.slane %v3317, 4
    %v3820 = vadd.f32 %v3317, %v3819
    %v3821 = vrot.slane %v3820, 2
    %v3822 = vadd.f32 %v3820, %v3821
    %v3823 = vrot.slane %v3822, 1
    %v3824 = vadd.f32 %v3822, %v3823
    %v3825 = vrot.slane %v3479, 4
    %v3826 = vadd.f32 %v3479, %v3825
    %v3827 = vrot.slane %v3826, 2
    %v3828 = vadd.f32 %v3826, %v3827
    %v3829 = vrot.slane %v3828, 1
    %v3830 = vadd.f32 %v3828, %v3829
    %v3831 = vrot.slane %v3481, 4
    %v3832 = vadd.f32 %v3481, %v3831
    %v3833 = vrot.slane %v3832, 2
    %v3834 = vadd.f32 %v3832, %v3833
    %v3835 = vrot.slane %v3834, 1
    %v3836 = vadd.f32 %v3834, %v3835
    %v3837 = vrot.slane %v3643, 4
    %v3838 = vadd.f32 %v3643, %v3837
    %v3839 = vrot.slane %v3838, 2
    %v3840 = vadd.f32 %v3838, %v3839
    %v3841 = vrot.slane %v3840, 1
    %v3842 = vadd.f32 %v3840, %v3841
    %v3843 = vrot.slane %v3645, 4
    %v3844 = vadd.f32 %v3645, %v3843
    %v3845 = vrot.slane %v3844, 2
    %v3846 = vadd.f32 %v3844, %v3845
    %v3847 = vrot.slane %v3846, 1
    %v3848 = vadd.f32 %v3846, %v3847
    %v3849 = vrot.slane %v3807, 4
    %v3850 = vadd.f32 %v3807, %v3849
    %v3851 = vrot.slane %v3850, 2
    %v3852 = vadd.f32 %v3850, %v3851
    %v3853 = vrot.slane %v3852, 1
    %v3854 = vadd.f32 %v3852, %v3853
    %v3855 = vrot.slane %v3809, 4
    %v3856 = vadd.f32 %v3809, %v3855
    %v3857 = vrot.slane %v3856, 2
    %v3858 = vadd.f32 %v3856, %v3857
    %v3859 = vrot.slane %v3858, 1
    %v3860 = vadd.f32 %v3858, %v3859
    %v3861 = vmul.f32 %v3818, 0.125
    %v3862 = vmul.f32 %v3824, 0.125
    %v3863 = vmul.f32 %v3830, 0.125
    %v3864 = vmul.f32 %v3836, 0.125
    %v3865 = vmul.f32 %v3842, 0.125
    %v3866 = vmul.f32 %v3848, 0.125
    %v3867 = vmul.f32 %v3854, 0.125
    %v3868 = vmul.f32 %v3860, 0.125
    %v3869 = vmul.f32 %v3315, %v3315
    %v3870 = vmul.f32 %v3317, %v3317
    %v3871 = vmul.f32 %v3479, %v3479
    %v3872 = vmul.f32 %v3481, %v3481
    %v3873 = vmul.f32 %v3643, %v3643
    %v3874 = vmul.f32 %v3645, %v3645
    %v3875 = vmul.f32 %v3807, %v3807
    %v3876 = vmul.f32 %v3809, %v3809
    %v3877 = vrot.slane %v3869, 4
    %v3878 = vadd.f32 %v3869, %v3877
    %v3879 = vrot.slane %v3878, 2
    %v3880 = vadd.f32 %v3878, %v3879
    %v3881 = vrot.slane %v3880, 1
    %v3882 = vadd.f32 %v3880, %v3881
    %v3883 = vrot.slane %v3870, 4
    %v3884 = vadd.f32 %v3870, %v3883
    %v3885 = vrot.slane %v3884, 2
    %v3886 = vadd.f32 %v3884, %v3885
    %v3887 = vrot.slane %v3886, 1
    %v3888 = vadd.f32 %v3886, %v3887
    %v3889 = vrot.slane %v3871, 4
    %v3890 = vadd.f32 %v3871, %v3889
    %v3891 = vrot.slane %v3890, 2
    %v3892 = vadd.f32 %v3890, %v3891
    %v3893 = vrot.slane %v3892, 1
    %v3894 = vadd.f32 %v3892, %v3893
    %v3895 = vrot.slane %v3872, 4
    %v3896 = vadd.f32 %v3872, %v3895
    %v3897 = vrot.slane %v3896, 2
    %v3898 = vadd.f32 %v3896, %v3897
    %v3899 = vrot.slane %v3898, 1
    %v3900 = vadd.f32 %v3898, %v3899
    %v3901 = vrot.slane %v3873, 4
    %v3902 = vadd.f32 %v3873, %v3901
    %v3903 = vrot.slane %v3902, 2
    %v3904 = vadd.f32 %v3902, %v3903
    %v3905 = vrot.slane %v3904, 1
    %v3906 = vadd.f32 %v3904, %v3905
    %v3907 = vrot.slane %v3874, 4
    %v3908 = vadd.f32 %v3874, %v3907
    %v3909 = vrot.slane %v3908, 2
    %v3910 = vadd.f32 %v3908, %v3909
    %v3911 = vrot.slane %v3910, 1
    %v3912 = vadd.f32 %v3910, %v3911
    %v3913 = vrot.slane %v3875, 4
    %v3914 = vadd.f32 %v3875, %v3913
    %v3915 = vrot.slane %v3914, 2
    %v3916 = vadd.f32 %v3914, %v3915
    %v3917 = vrot.slane %v3916, 1
    %v3918 = vadd.f32 %v3916, %v3917
    %v3919 = vrot.slane %v3876, 4
    %v3920 = vadd.f32 %v3876, %v3919
    %v3921 = vrot.slane %v3920, 2
    %v3922 = vadd.f32 %v3920, %v3921
    %v3923 = vrot.slane %v3922, 1
    %v3924 = vadd.f32 %v3922, %v3923
    %v3925 = vmul.f32 %v3882, 0.125
    %v3926 = vmul.f32 %v3888, 0.125
    %v3927 = vmul.f32 %v3894, 0.125
    %v3928 = vmul.f32 %v3900, 0.125
    %v3929 = vmul.f32 %v3906, 0.125
    %v3930 = vmul.f32 %v3912, 0.125
    %v3931 = vmul.f32 %v3918, 0.125
    %v3932 = vmul.f32 %v3924, 0.125
    %v3933 = vmul.f32 %v3861, %v3861
    %v3934 = vmul.f32 %v3862, %v3862
    %v3935 = vmul.f32 %v3863, %v3863
    %v3936 = vmul.f32 %v3864, %v3864
    %v3937 = vmul.f32 %v3865, %v3865
    %v3938 = vmul.f32 %v3866, %v3866
    %v3939 = vmul.f32 %v3867, %v3867
    %v3940 = vmul.f32 %v3868, %v3868
    %v3941 = vsub.f32 %v3925, %v3933
    %v3942 = vsub.f32 %v3926, %v3934
    %v3943 = vsub.f32 %v3927, %v3935
    %v3944 = vsub.f32 %v3928, %v3936
    %v3945 = vsub.f32 %v3929, %v3937
    %v3946 = vsub.f32 %v3930, %v3938
    %v3947 = vsub.f32 %v3931, %v3939
    %v3948 = vsub.f32 %v3932, %v3940
    %v3949 = vsub.f32 %v3315, %v3861
    %v3950 = vsub.f32 %v3317, %v3862
    %v3951 = vsub.f32 %v3479, %v3863
    %v3952 = vsub.f32 %v3481, %v3864
    %v3953 = vsub.f32 %v3643, %v3865
    %v3954 = vsub.f32 %v3645, %v3866
    %v3955 = vsub.f32 %v3807, %v3867
    %v3956 = vsub.f32 %v3809, %v3868
    %v3957 = vadd.f32 %v3941, 1e-05
    %v3958 = vadd.f32 %v3942, 1e-05
    %v3959 = vadd.f32 %v3943, 1e-05
    %v3960 = vadd.f32 %v3944, 1e-05
    %v3961 = vadd.f32 %v3945, 1e-05
    %v3962 = vadd.f32 %v3946, 1e-05
    %v3963 = vadd.f32 %v3947, 1e-05
    %v3964 = vadd.f32 %v3948, 1e-05
    %v3965 = vrsqrt.pop %v3957
    %v3966 = vrsqrt.pop %v3958
    %v3967 = vrsqrt.pop %v3959
    %v3968 = vrsqrt.pop %v3960
    %v3969 = vrsqrt.pop %v3961
    %v3970 = vrsqrt.pop %v3962
    %v3971 = vrsqrt.pop %v3963
    %v3972 = vrsqrt.pop %v3964
    %v3973 = vmul.f32 %v3949, %v3965
    %v3974 = vmul.f32 %v3950, %v3966
    %v3975 = vmul.f32 %v3951, %v3967
    %v3976 = vmul.f32 %v3952, %v3968
    %v3977 = vmul.f32 %v3953, %v3969
    %v3978 = vmul.f32 %v3954, %v3970
    %v3979 = vmul.f32 %v3955, %v3971
    %v3980 = vmul.f32 %v3956, %v3972
    %v3981 = vmul.f32 %v3973, 0.01
    %v3982 = vmul.f32 %v3974, 0.01
    %v3983 = vmul.f32 %v3975, 0.01
    %v3984 = vmul.f32 %v3976, 0.01
    %v3985 = vmul.f32 %v3977, 0.01
    %v3986 = vmul.f32 %v3978, 0.01
    %v3987 = vmul.f32 %v3979, 0.01
    %v3988 = vmul.f32 %v3980, 0.01
    %v3989 = vmax.f32 %v3973, %v3981
    %v3990 = vmax.f32 %v3974, %v3982
    %v3991 = vmax.f32 %v3975, %v3983
    %v3992 = vmax.f32 %v3976, %v3984
    %v3993 = vmax.f32 %v3977, %v3985
    %v3994 = vmax.f32 %v3978, %v3986
    %v3995 = vmax.f32 %v3979, %v3987
    %v3996 = vmax.f32 %v3980, %v3988
    %v3997 = vpack.c.bf16 %v3989, %v3989
    %v3998 = vpack.c.bf16 %v3990, %v3990
    %v3999 = vpack.c.bf16 %v3991, %v3991
    %v4000 = vpack.c.bf16 %v3992, %v3992
    %v4001 = vpack.c.bf16 %v3993, %v3993
    %v4002 = vpack.c.bf16 %v3994, %v3994
    %v4003 = vpack.c.bf16 %v3995, %v3995
    %v4004 = vpack.c.bf16 %v3996, %v3996
    %v4005 = vld [vmem:[#allocation7] sm:$0xff]
    %v4006 = vld [vmem:[#allocation7 + $0x8] sm:$0xff]
    %v4007 = vld [vmem:[#allocation7 + $0x10] sm:$0xff]
    %v4008 = vld [vmem:[#allocation7 + $0x18] sm:$0xff]
    %v4009 = vld [vmem:[#allocation7 + $0x20] sm:$0xff]
    %v4010 = vld [vmem:[#allocation7 + $0x28] sm:$0xff]
    %v4011 = vld [vmem:[#allocation7 + $0x30] sm:$0xff]
    %v4012 = vld [vmem:[#allocation7 + $0x38] sm:$0xff]
    %v4013 = vld [vmem:[#allocation7 + $0x40] sm:$0xff]
    %v4014 = vld [vmem:[#allocation7 + $0x48] sm:$0xff]
    %v4015 = vld [vmem:[#allocation7 + $0x50] sm:$0xff]
    %v4016 = vld [vmem:[#allocation7 + $0x58] sm:$0xff]
    %v4017 = vld [vmem:[#allocation7 + $0x60] sm:$0xff]
    %v4018 = vld [vmem:[#allocation7 + $0x68] sm:$0xff]
    %v4019 = vld [vmem:[#allocation7 + $0x70] sm:$0xff]
    %v4020 = vld [vmem:[#allocation7 + $0x78] sm:$0xff]
    %v4021 = vld [vmem:[#allocation7 + $0x80] sm:$0xff]
    %v4022 = vld [vmem:[#allocation7 + $0x88] sm:$0xff]
    %v4023 = vld [vmem:[#allocation7 + $0x90] sm:$0xff]
    %v4024 = vld [vmem:[#allocation7 + $0x98] sm:$0xff]
    %v4025 = vld [vmem:[#allocation7 + $0xa0] sm:$0xff]
    %v4026 = vld [vmem:[#allocation7 + $0xa8] sm:$0xff]
    %v4027 = vld [vmem:[#allocation7 + $0xb0] sm:$0xff]
    %v4028 = vld [vmem:[#allocation7 + $0xb8] sm:$0xff]
    %v4029 = vld [vmem:[#allocation7 + $0xc0] sm:$0xff]
    %v4030 = vld [vmem:[#allocation7 + $0xc8] sm:$0xff]
    %v4031 = vld [vmem:[#allocation7 + $0xd0] sm:$0xff]
    %v4032 = vld [vmem:[#allocation7 + $0xd8] sm:$0xff]
    %v4033 = vld [vmem:[#allocation7 + $0xe0] sm:$0xff]
    %v4034 = vld [vmem:[#allocation7 + $0xe8] sm:$0xff]
    %v4035 = vld [vmem:[#allocation7 + $0xf0] sm:$0xff]
    %v4036 = vld [vmem:[#allocation7 + $0xf8] sm:$0xff]
    %v4037 = vld [vmem:[#allocation7 + $0x100] sm:$0xff]
    %v4038 = vld [vmem:[#allocation7 + $0x108] sm:$0xff]
    %v4039 = vld [vmem:[#allocation7 + $0x110] sm:$0xff]
    %v4040 = vld [vmem:[#allocation7 + $0x118] sm:$0xff]
    %v4041 = vld [vmem:[#allocation7 + $0x120] sm:$0xff]
    %v4042 = vld [vmem:[#allocation7 + $0x128] sm:$0xff]
    %v4043 = vld [vmem:[#allocation7 + $0x130] sm:$0xff]
    %v4044 = vld [vmem:[#allocation7 + $0x138] sm:$0xff]
    %v4045 = vld [vmem:[#allocation7 + $0x140] sm:$0xff]
    %v4046 = vld [vmem:[#allocation7 + $0x148] sm:$0xff]
    %v4047 = vld [vmem:[#allocation7 + $0x150] sm:$0xff]
    %v4048 = vld [vmem:[#allocation7 + $0x158] sm:$0xff]
    %v4049 = vld [vmem:[#allocation7 + $0x160] sm:$0xff]
    %v4050 = vld [vmem:[#allocation7 + $0x168] sm:$0xff]
    %v4051 = vld [vmem:[#allocation7 + $0x170] sm:$0xff]
    %v4052 = vld [vmem:[#allocation7 + $0x178] sm:$0xff]
    %v4053 = vld [vmem:[#allocation7 + $0x180] sm:$0xff]
    %v4054 = vld [vmem:[#allocation7 + $0x188] sm:$0xff]
    %v4055 = vld [vmem:[#allocation7 + $0x190] sm:$0xff]
    %v4056 = vld [vmem:[#allocation7 + $0x198] sm:$0xff]
    %v4057 = vld [vmem:[#allocation7 + $0x1a0] sm:$0xff]
    %v4058 = vld [vmem:[#allocation7 + $0x1a8] sm:$0xff]
    %v4059 = vld [vmem:[#allocation7 + $0x1b0] sm:$0xff]
    %v4060 = vld [vmem:[#allocation7 + $0x1b8] sm:$0xff]
    %v4061 = vld [vmem:[#allocation7 + $0x1c0] sm:$0xff]
    %v4062 = vld [vmem:[#allocation7 + $0x1c8] sm:$0xff]
    %v4063 = vld [vmem:[#allocation7 + $0x1d0] sm:$0xff]
    %v4064 = vld [vmem:[#allocation7 + $0x1d8] sm:$0xff]
    %v4065 = vld [vmem:[#allocation7 + $0x1e0] sm:$0xff]
    %v4066 = vld [vmem:[#allocation7 + $0x1e8] sm:$0xff]
    %v4067 = vld [vmem:[#allocation7 + $0x1f0] sm:$0xff]
    %v4068 = vld [vmem:[#allocation7 + $0x1f8] sm:$0xff]
    %v4069 = vld [vmem:[#allocation7 + $0x200] sm:$0xff]
    %v4070 = vld [vmem:[#allocation7 + $0x208] sm:$0xff]
    %v4071 = vld [vmem:[#allocation7 + $0x210] sm:$0xff]
    %v4072 = vld [vmem:[#allocation7 + $0x218] sm:$0xff]
    %v4073 = vld [vmem:[#allocation7 + $0x220] sm:$0xff]
    %v4074 = vld [vmem:[#allocation7 + $0x228] sm:$0xff]
    %v4075 = vld [vmem:[#allocation7 + $0x230] sm:$0xff]
    %v4076 = vld [vmem:[#allocation7 + $0x238] sm:$0xff]
    %v4077 = vld [vmem:[#allocation7 + $0x240] sm:$0xff]
    %v4078 = vld [vmem:[#allocation7 + $0x248] sm:$0xff]
    %v4079 = vld [vmem:[#allocation7 + $0x250] sm:$0xff]
    %v4080 = vld [vmem:[#allocation7 + $0x258] sm:$0xff]
    %v4081 = vld [vmem:[#allocation7 + $0x260] sm:$0xff]
    %v4082 = vld [vmem:[#allocation7 + $0x268] sm:$0xff]
    %v4083 = vld [vmem:[#allocation7 + $0x270] sm:$0xff]
    %v4084 = vld [vmem:[#allocation7 + $0x278] sm:$0xff]
    %v4085 = vld [vmem:[#allocation7 + $0x280] sm:$0xff]
    %v4086 = vld [vmem:[#allocation7 + $0x288] sm:$0xff]
    %v4087 = vld [vmem:[#allocation7 + $0x290] sm:$0xff]
    %v4088 = vld [vmem:[#allocation7 + $0x298] sm:$0xff]
    %v4089 = vld [vmem:[#allocation7 + $0x2a0] sm:$0xff]
    %v4090 = vld [vmem:[#allocation7 + $0x2a8] sm:$0xff]
    %v4091 = vld [vmem:[#allocation7 + $0x2b0] sm:$0xff]
    %v4092 = vld [vmem:[#allocation7 + $0x2b8] sm:$0xff]
    %v4093 = vld [vmem:[#allocation7 + $0x2c0] sm:$0xff]
    %v4094 = vld [vmem:[#allocation7 + $0x2c8] sm:$0xff]
    %v4095 = vld [vmem:[#allocation7 + $0x2d0] sm:$0xff]
    %v4096 = vld [vmem:[#allocation7 + $0x2d8] sm:$0xff]
    %v4097 = vld [vmem:[#allocation7 + $0x2e0] sm:$0xff]
    %v4098 = vld [vmem:[#allocation7 + $0x2e8] sm:$0xff]
    %v4099 = vld [vmem:[#allocation7 + $0x2f0] sm:$0xff]
    %v4100 = vld [vmem:[#allocation7 + $0x2f8] sm:$0xff]
    %v4101 = vld [vmem:[#allocation7 + $0x300] sm:$0xff]
    %v4102 = vld [vmem:[#allocation7 + $0x308] sm:$0xff]
    %v4103 = vld [vmem:[#allocation7 + $0x310] sm:$0xff]
    %v4104 = vld [vmem:[#allocation7 + $0x318] sm:$0xff]
    %v4105 = vld [vmem:[#allocation7 + $0x320] sm:$0xff]
    %v4106 = vld [vmem:[#allocation7 + $0x328] sm:$0xff]
    %v4107 = vld [vmem:[#allocation7 + $0x330] sm:$0xff]
    %v4108 = vld [vmem:[#allocation7 + $0x338] sm:$0xff]
    %v4109 = vld [vmem:[#allocation7 + $0x340] sm:$0xff]
    %v4110 = vld [vmem:[#allocation7 + $0x348] sm:$0xff]
    %v4111 = vld [vmem:[#allocation7 + $0x350] sm:$0xff]
    %v4112 = vld [vmem:[#allocation7 + $0x358] sm:$0xff]
    %v4113 = vld [vmem:[#allocation7 + $0x360] sm:$0xff]
    %v4114 = vld [vmem:[#allocation7 + $0x368] sm:$0xff]
    %v4115 = vld [vmem:[#allocation7 + $0x370] sm:$0xff]
    %v4116 = vld [vmem:[#allocation7 + $0x378] sm:$0xff]
    %v4117 = vld [vmem:[#allocation7 + $0x380] sm:$0xff]
    %v4118 = vld [vmem:[#allocation7 + $0x388] sm:$0xff]
    %v4119 = vld [vmem:[#allocation7 + $0x390] sm:$0xff]
    %v4120 = vld [vmem:[#allocation7 + $0x398] sm:$0xff]
    %v4121 = vld [vmem:[#allocation7 + $0x3a0] sm:$0xff]
    %v4122 = vld [vmem:[#allocation7 + $0x3a8] sm:$0xff]
    %v4123 = vld [vmem:[#allocation7 + $0x3b0] sm:$0xff]
    %v4124 = vld [vmem:[#allocation7 + $0x3b8] sm:$0xff]
    %v4125 = vld [vmem:[#allocation7 + $0x3c0] sm:$0xff]
    %v4126 = vld [vmem:[#allocation7 + $0x3c8] sm:$0xff]
    %v4127 = vld [vmem:[#allocation7 + $0x3d0] sm:$0xff]
    %v4128 = vld [vmem:[#allocation7 + $0x3d8] sm:$0xff]
    %v4129 = vld [vmem:[#allocation7 + $0x3e0] sm:$0xff]
    %v4130 = vld [vmem:[#allocation7 + $0x3e8] sm:$0xff]
    %v4131 = vld [vmem:[#allocation7 + $0x3f0] sm:$0xff]
    %v4132 = vld [vmem:[#allocation7 + $0x3f8] sm:$0xff]
    %v4133 = vld [vmem:[#allocation7 + $0x400] sm:$0xff]
    %v4134 = vld [vmem:[#allocation7 + $0x408] sm:$0xff]
    %v4135 = vld [vmem:[#allocation7 + $0x410] sm:$0xff]
    %v4136 = vld [vmem:[#allocation7 + $0x418] sm:$0xff]
    %v4137 = vld [vmem:[#allocation7 + $0x420] sm:$0xff]
    %v4138 = vld [vmem:[#allocation7 + $0x428] sm:$0xff]
    %v4139 = vld [vmem:[#allocation7 + $0x430] sm:$0xff]
    %v4140 = vld [vmem:[#allocation7 + $0x438] sm:$0xff]
    %v4141 = vld [vmem:[#allocation7 + $0x440] sm:$0xff]
    %v4142 = vld [vmem:[#allocation7 + $0x448] sm:$0xff]
    %v4143 = vld [vmem:[#allocation7 + $0x450] sm:$0xff]
    %v4144 = vld [vmem:[#allocation7 + $0x458] sm:$0xff]
    %v4145 = vld [vmem:[#allocation7 + $0x460] sm:$0xff]
    %v4146 = vld [vmem:[#allocation7 + $0x468] sm:$0xff]
    %v4147 = vld [vmem:[#allocation7 + $0x470] sm:$0xff]
    %v4148 = vld [vmem:[#allocation7 + $0x478] sm:$0xff]
    %v4149 = vld [vmem:[#allocation7 + $0x480] sm:$0xff]
    %v4150 = vld [vmem:[#allocation7 + $0x488] sm:$0xff]
    %v4151 = vld [vmem:[#allocation7 + $0x490] sm:$0xff]
    %v4152 = vld [vmem:[#allocation7 + $0x498] sm:$0xff]
    %v4153 = vld [vmem:[#allocation7 + $0x4a0] sm:$0xff]
    %v4154 = vld [vmem:[#allocation7 + $0x4a8] sm:$0xff]
    %v4155 = vld [vmem:[#allocation7 + $0x4b0] sm:$0xff]
    %v4156 = vld [vmem:[#allocation7 + $0x4b8] sm:$0xff]
    %v4157 = vld [vmem:[#allocation7 + $0x4c0] sm:$0xff]
    %v4158 = vld [vmem:[#allocation7 + $0x4c8] sm:$0xff]
    %v4159 = vld [vmem:[#allocation7 + $0x4d0] sm:$0xff]
    %v4160 = vld [vmem:[#allocation7 + $0x4d8] sm:$0xff]
    %v4161 = vld [vmem:[#allocation7 + $0x4e0] sm:$0xff]
    %v4162 = vld [vmem:[#allocation7 + $0x4e8] sm:$0xff]
    %v4163 = vld [vmem:[#allocation7 + $0x4f0] sm:$0xff]
    %v4164 = vld [vmem:[#allocation7 + $0x4f8] sm:$0xff]
    %v4165 = vld [vmem:[#allocation7 + $0x500] sm:$0xff]
    %v4166 = vld [vmem:[#allocation7 + $0x508] sm:$0xff]
    %v4167 = vld [vmem:[#allocation7 + $0x510] sm:$0xff]
    %v4168 = vld [vmem:[#allocation7 + $0x518] sm:$0xff]
    %v4169 = vld [vmem:[#allocation7 + $0x520] sm:$0xff]
    %v4170 = vld [vmem:[#allocation7 + $0x528] sm:$0xff]
    %v4171 = vld [vmem:[#allocation7 + $0x530] sm:$0xff]
    %v4172 = vld [vmem:[#allocation7 + $0x538] sm:$0xff]
    %v4173 = vld [vmem:[#allocation7 + $0x540] sm:$0xff]
    %v4174 = vld [vmem:[#allocation7 + $0x548] sm:$0xff]
    %v4175 = vld [vmem:[#allocation7 + $0x550] sm:$0xff]
    %v4176 = vld [vmem:[#allocation7 + $0x558] sm:$0xff]
    %v4177 = vld [vmem:[#allocation7 + $0x560] sm:$0xff]
    %v4178 = vld [vmem:[#allocation7 + $0x568] sm:$0xff]
    %v4179 = vld [vmem:[#allocation7 + $0x570] sm:$0xff]
    %v4180 = vld [vmem:[#allocation7 + $0x578] sm:$0xff]
    %v4181 = vld [vmem:[#allocation7 + $0x580] sm:$0xff]
    %v4182 = vld [vmem:[#allocation7 + $0x588] sm:$0xff]
    %v4183 = vld [vmem:[#allocation7 + $0x590] sm:$0xff]
    %v4184 = vld [vmem:[#allocation7 + $0x598] sm:$0xff]
    %v4185 = vld [vmem:[#allocation7 + $0x5a0] sm:$0xff]
    %v4186 = vld [vmem:[#allocation7 + $0x5a8] sm:$0xff]
    %v4187 = vld [vmem:[#allocation7 + $0x5b0] sm:$0xff]
    %v4188 = vld [vmem:[#allocation7 + $0x5b8] sm:$0xff]
    %v4189 = vld [vmem:[#allocation7 + $0x5c0] sm:$0xff]
    %v4190 = vld [vmem:[#allocation7 + $0x5c8] sm:$0xff]
    %v4191 = vld [vmem:[#allocation7 + $0x5d0] sm:$0xff]
    %v4192 = vld [vmem:[#allocation7 + $0x5d8] sm:$0xff]
    %v4193 = vld [vmem:[#allocation7 + $0x5e0] sm:$0xff]
    %v4194 = vld [vmem:[#allocation7 + $0x5e8] sm:$0xff]
    %v4195 = vld [vmem:[#allocation7 + $0x5f0] sm:$0xff]
    %v4196 = vld [vmem:[#allocation7 + $0x5f8] sm:$0xff]
    %v4197 = vld [vmem:[#allocation7 + $0x600] sm:$0xff]
    %v4198 = vld [vmem:[#allocation7 + $0x608] sm:$0xff]
    %v4199 = vld [vmem:[#allocation7 + $0x610] sm:$0xff]
    %v4200 = vld [vmem:[#allocation7 + $0x618] sm:$0xff]
    %v4201 = vld [vmem:[#allocation7 + $0x620] sm:$0xff]
    %v4202 = vld [vmem:[#allocation7 + $0x628] sm:$0xff]
    %v4203 = vld [vmem:[#allocation7 + $0x630] sm:$0xff]
    %v4204 = vld [vmem:[#allocation7 + $0x638] sm:$0xff]
    %v4205 = vld [vmem:[#allocation7 + $0x640] sm:$0xff]
    %v4206 = vld [vmem:[#allocation7 + $0x648] sm:$0xff]
    %v4207 = vld [vmem:[#allocation7 + $0x650] sm:$0xff]
    %v4208 = vld [vmem:[#allocation7 + $0x658] sm:$0xff]
    %v4209 = vld [vmem:[#allocation7 + $0x660] sm:$0xff]
    %v4210 = vld [vmem:[#allocation7 + $0x668] sm:$0xff]
    %v4211 = vld [vmem:[#allocation7 + $0x670] sm:$0xff]
    %v4212 = vld [vmem:[#allocation7 + $0x678] sm:$0xff]
    %v4213 = vld [vmem:[#allocation7 + $0x680] sm:$0xff]
    %v4214 = vld [vmem:[#allocation7 + $0x688] sm:$0xff]
    %v4215 = vld [vmem:[#allocation7 + $0x690] sm:$0xff]
    %v4216 = vld [vmem:[#allocation7 + $0x698] sm:$0xff]
    %v4217 = vld [vmem:[#allocation7 + $0x6a0] sm:$0xff]
    %v4218 = vld [vmem:[#allocation7 + $0x6a8] sm:$0xff]
    %v4219 = vld [vmem:[#allocation7 + $0x6b0] sm:$0xff]
    %v4220 = vld [vmem:[#allocation7 + $0x6b8] sm:$0xff]
    %v4221 = vld [vmem:[#allocation7 + $0x6c0] sm:$0xff]
    %v4222 = vld [vmem:[#allocation7 + $0x6c8] sm:$0xff]
    %v4223 = vld [vmem:[#allocation7 + $0x6d0] sm:$0xff]
    %v4224 = vld [vmem:[#allocation7 + $0x6d8] sm:$0xff]
    %v4225 = vld [vmem:[#allocation7 + $0x6e0] sm:$0xff]
    %v4226 = vld [vmem:[#allocation7 + $0x6e8] sm:$0xff]
    %v4227 = vld [vmem:[#allocation7 + $0x6f0] sm:$0xff]
    %v4228 = vld [vmem:[#allocation7 + $0x6f8] sm:$0xff]
    %v4229 = vld [vmem:[#allocation7 + $0x700] sm:$0xff]
    %v4230 = vld [vmem:[#allocation7 + $0x708] sm:$0xff]
    %v4231 = vld [vmem:[#allocation7 + $0x710] sm:$0xff]
    %v4232 = vld [vmem:[#allocation7 + $0x718] sm:$0xff]
    %v4233 = vld [vmem:[#allocation7 + $0x720] sm:$0xff]
    %v4234 = vld [vmem:[#allocation7 + $0x728] sm:$0xff]
    %v4235 = vld [vmem:[#allocation7 + $0x730] sm:$0xff]
    %v4236 = vld [vmem:[#allocation7 + $0x738] sm:$0xff]
    %v4237 = vld [vmem:[#allocation7 + $0x740] sm:$0xff]
    %v4238 = vld [vmem:[#allocation7 + $0x748] sm:$0xff]
    %v4239 = vld [vmem:[#allocation7 + $0x750] sm:$0xff]
    %v4240 = vld [vmem:[#allocation7 + $0x758] sm:$0xff]
    %v4241 = vld [vmem:[#allocation7 + $0x760] sm:$0xff]
    %v4242 = vld [vmem:[#allocation7 + $0x768] sm:$0xff]
    %v4243 = vld [vmem:[#allocation7 + $0x770] sm:$0xff]
    %v4244 = vld [vmem:[#allocation7 + $0x778] sm:$0xff]
    %v4245 = vld [vmem:[#allocation7 + $0x780] sm:$0xff]
    %v4246 = vld [vmem:[#allocation7 + $0x788] sm:$0xff]
    %v4247 = vld [vmem:[#allocation7 + $0x790] sm:$0xff]
    %v4248 = vld [vmem:[#allocation7 + $0x798] sm:$0xff]
    %v4249 = vld [vmem:[#allocation7 + $0x7a0] sm:$0xff]
    %v4250 = vld [vmem:[#allocation7 + $0x7a8] sm:$0xff]
    %v4251 = vld [vmem:[#allocation7 + $0x7b0] sm:$0xff]
    %v4252 = vld [vmem:[#allocation7 + $0x7b8] sm:$0xff]
    %v4253 = vld [vmem:[#allocation7 + $0x7c0] sm:$0xff]
    %v4254 = vld [vmem:[#allocation7 + $0x7c8] sm:$0xff]
    %v4255 = vld [vmem:[#allocation7 + $0x7d0] sm:$0xff]
    %v4256 = vld [vmem:[#allocation7 + $0x7d8] sm:$0xff]
    %v4257 = vld [vmem:[#allocation7 + $0x7e0] sm:$0xff]
    %v4258 = vld [vmem:[#allocation7 + $0x7e8] sm:$0xff]
    %v4259 = vld [vmem:[#allocation7 + $0x7f0] sm:$0xff]
    %v4260 = vld [vmem:[#allocation7 + $0x7f8] sm:$0xff]
    %v4261 = vld [vmem:[#allocation7 + $0x800] sm:$0xff]
    %v4262 = vld [vmem:[#allocation7 + $0x808] sm:$0xff]
    %v4263 = vld [vmem:[#allocation7 + $0x810] sm:$0xff]
    %v4264 = vld [vmem:[#allocation7 + $0x818] sm:$0xff]
    %v4265 = vld [vmem:[#allocation7 + $0x820] sm:$0xff]
    %v4266 = vld [vmem:[#allocation7 + $0x828] sm:$0xff]
    %v4267 = vld [vmem:[#allocation7 + $0x830] sm:$0xff]
    %v4268 = vld [vmem:[#allocation7 + $0x838] sm:$0xff]
    %v4269 = vld [vmem:[#allocation7 + $0x840] sm:$0xff]
    %v4270 = vld [vmem:[#allocation7 + $0x848] sm:$0xff]
    %v4271 = vld [vmem:[#allocation7 + $0x850] sm:$0xff]
    %v4272 = vld [vmem:[#allocation7 + $0x858] sm:$0xff]
    %v4273 = vld [vmem:[#allocation7 + $0x860] sm:$0xff]
    %v4274 = vld [vmem:[#allocation7 + $0x868] sm:$0xff]
    %v4275 = vld [vmem:[#allocation7 + $0x870] sm:$0xff]
    %v4276 = vld [vmem:[#allocation7 + $0x878] sm:$0xff]
    %v4277 = vld [vmem:[#allocation7 + $0x880] sm:$0xff]
    %v4278 = vld [vmem:[#allocation7 + $0x888] sm:$0xff]
    %v4279 = vld [vmem:[#allocation7 + $0x890] sm:$0xff]
    %v4280 = vld [vmem:[#allocation7 + $0x898] sm:$0xff]
    %v4281 = vld [vmem:[#allocation7 + $0x8a0] sm:$0xff]
    %v4282 = vld [vmem:[#allocation7 + $0x8a8] sm:$0xff]
    %v4283 = vld [vmem:[#allocation7 + $0x8b0] sm:$0xff]
    %v4284 = vld [vmem:[#allocation7 + $0x8b8] sm:$0xff]
    %v4285 = vld [vmem:[#allocation7 + $0x8c0] sm:$0xff]
    %v4286 = vld [vmem:[#allocation7 + $0x8c8] sm:$0xff]
    %v4287 = vld [vmem:[#allocation7 + $0x8d0] sm:$0xff]
    %v4288 = vld [vmem:[#allocation7 + $0x8d8] sm:$0xff]
    %v4289 = vld [vmem:[#allocation7 + $0x8e0] sm:$0xff]
    %v4290 = vld [vmem:[#allocation7 + $0x8e8] sm:$0xff]
    %v4291 = vld [vmem:[#allocation7 + $0x8f0] sm:$0xff]
    %v4292 = vld [vmem:[#allocation7 + $0x8f8] sm:$0xff]
    %v4293 = vld [vmem:[#allocation7 + $0x900] sm:$0xff]
    %v4294 = vld [vmem:[#allocation7 + $0x908] sm:$0xff]
    %v4295 = vld [vmem:[#allocation7 + $0x910] sm:$0xff]
    %v4296 = vld [vmem:[#allocation7 + $0x918] sm:$0xff]
    %v4297 = vld [vmem:[#allocation7 + $0x920] sm:$0xff]
    %v4298 = vld [vmem:[#allocation7 + $0x928] sm:$0xff]
    %v4299 = vld [vmem:[#allocation7 + $0x930] sm:$0xff]
    %v4300 = vld [vmem:[#allocation7 + $0x938] sm:$0xff]
    %v4301 = vld [vmem:[#allocation7 + $0x940] sm:$0xff]
    %v4302 = vld [vmem:[#allocation7 + $0x948] sm:$0xff]
    %v4303 = vld [vmem:[#allocation7 + $0x950] sm:$0xff]
    %v4304 = vld [vmem:[#allocation7 + $0x958] sm:$0xff]
    %v4305 = vld [vmem:[#allocation7 + $0x960] sm:$0xff]
    %v4306 = vld [vmem:[#allocation7 + $0x968] sm:$0xff]
    %v4307 = vld [vmem:[#allocation7 + $0x970] sm:$0xff]
    %v4308 = vld [vmem:[#allocation7 + $0x978] sm:$0xff]
    %v4309 = vld [vmem:[#allocation7 + $0x980] sm:$0xff]
    %v4310 = vld [vmem:[#allocation7 + $0x988] sm:$0xff]
    %v4311 = vld [vmem:[#allocation7 + $0x990] sm:$0xff]
    %v4312 = vld [vmem:[#allocation7 + $0x998] sm:$0xff]
    %v4313 = vld [vmem:[#allocation7 + $0x9a0] sm:$0xff]
    %v4314 = vld [vmem:[#allocation7 + $0x9a8] sm:$0xff]
    %v4315 = vld [vmem:[#allocation7 + $0x9b0] sm:$0xff]
    %v4316 = vld [vmem:[#allocation7 + $0x9b8] sm:$0xff]
    %v4317 = vld [vmem:[#allocation7 + $0x9c0] sm:$0xff]
    %v4318 = vld [vmem:[#allocation7 + $0x9c8] sm:$0xff]
    %v4319 = vld [vmem:[#allocation7 + $0x9d0] sm:$0xff]
    %v4320 = vld [vmem:[#allocation7 + $0x9d8] sm:$0xff]
    %v4321 = vld [vmem:[#allocation7 + $0x9e0] sm:$0xff]
    %v4322 = vld [vmem:[#allocation7 + $0x9e8] sm:$0xff]
    %v4323 = vld [vmem:[#allocation7 + $0x9f0] sm:$0xff]
    %v4324 = vld [vmem:[#allocation7 + $0x9f8] sm:$0xff]
    %v4325 = vld [vmem:[#allocation7 + $0xa00] sm:$0xff]
    %v4326 = vld [vmem:[#allocation7 + $0xa08] sm:$0xff]
    %v4327 = vld [vmem:[#allocation7 + $0xa10] sm:$0xff]
    %v4328 = vld [vmem:[#allocation7 + $0xa18] sm:$0xff]
    %v4329 = vld [vmem:[#allocation7 + $0xa20] sm:$0xff]
    %v4330 = vld [vmem:[#allocation7 + $0xa28] sm:$0xff]
    %v4331 = vld [vmem:[#allocation7 + $0xa30] sm:$0xff]
    %v4332 = vld [vmem:[#allocation7 + $0xa38] sm:$0xff]
    %v4333 = vld [vmem:[#allocation7 + $0xa40] sm:$0xff]
    %v4334 = vld [vmem:[#allocation7 + $0xa48] sm:$0xff]
    %v4335 = vld [vmem:[#allocation7 + $0xa50] sm:$0xff]
    %v4336 = vld [vmem:[#allocation7 + $0xa58] sm:$0xff]
    %v4337 = vld [vmem:[#allocation7 + $0xa60] sm:$0xff]
    %v4338 = vld [vmem:[#allocation7 + $0xa68] sm:$0xff]
    %v4339 = vld [vmem:[#allocation7 + $0xa70] sm:$0xff]
    %v4340 = vld [vmem:[#allocation7 + $0xa78] sm:$0xff]
    %v4341 = vld [vmem:[#allocation7 + $0xa80] sm:$0xff]
    %v4342 = vld [vmem:[#allocation7 + $0xa88] sm:$0xff]
    %v4343 = vld [vmem:[#allocation7 + $0xa90] sm:$0xff]
    %v4344 = vld [vmem:[#allocation7 + $0xa98] sm:$0xff]
    %v4345 = vld [vmem:[#allocation7 + $0xaa0] sm:$0xff]
    %v4346 = vld [vmem:[#allocation7 + $0xaa8] sm:$0xff]
    %v4347 = vld [vmem:[#allocation7 + $0xab0] sm:$0xff]
    %v4348 = vld [vmem:[#allocation7 + $0xab8] sm:$0xff]
    %v4349 = vld [vmem:[#allocation7 + $0xac0] sm:$0xff]
    %v4350 = vld [vmem:[#allocation7 + $0xac8] sm:$0xff]
    %v4351 = vld [vmem:[#allocation7 + $0xad0] sm:$0xff]
    %v4352 = vld [vmem:[#allocation7 + $0xad8] sm:$0xff]
    %v4353 = vld [vmem:[#allocation7 + $0xae0] sm:$0xff]
    %v4354 = vld [vmem:[#allocation7 + $0xae8] sm:$0xff]
    %v4355 = vld [vmem:[#allocation7 + $0xaf0] sm:$0xff]
    %v4356 = vld [vmem:[#allocation7 + $0xaf8] sm:$0xff]
    %v4357 = vld [vmem:[#allocation7 + $0xb00] sm:$0xff]
    %v4358 = vld [vmem:[#allocation7 + $0xb08] sm:$0xff]
    %v4359 = vld [vmem:[#allocation7 + $0xb10] sm:$0xff]
    %v4360 = vld [vmem:[#allocation7 + $0xb18] sm:$0xff]
    %v4361 = vld [vmem:[#allocation7 + $0xb20] sm:$0xff]
    %v4362 = vld [vmem:[#allocation7 + $0xb28] sm:$0xff]
    %v4363 = vld [vmem:[#allocation7 + $0xb30] sm:$0xff]
    %v4364 = vld [vmem:[#allocation7 + $0xb38] sm:$0xff]
    %v4365 = vld [vmem:[#allocation7 + $0xb40] sm:$0xff]
    %v4366 = vld [vmem:[#allocation7 + $0xb48] sm:$0xff]
    %v4367 = vld [vmem:[#allocation7 + $0xb50] sm:$0xff]
    %v4368 = vld [vmem:[#allocation7 + $0xb58] sm:$0xff]
    %v4369 = vld [vmem:[#allocation7 + $0xb60] sm:$0xff]
    %v4370 = vld [vmem:[#allocation7 + $0xb68] sm:$0xff]
    %v4371 = vld [vmem:[#allocation7 + $0xb70] sm:$0xff]
    %v4372 = vld [vmem:[#allocation7 + $0xb78] sm:$0xff]
    %v4373 = vld [vmem:[#allocation7 + $0xb80] sm:$0xff]
    %v4374 = vld [vmem:[#allocation7 + $0xb88] sm:$0xff]
    %v4375 = vld [vmem:[#allocation7 + $0xb90] sm:$0xff]
    %v4376 = vld [vmem:[#allocation7 + $0xb98] sm:$0xff]
    %v4377 = vld [vmem:[#allocation7 + $0xba0] sm:$0xff]
    %v4378 = vld [vmem:[#allocation7 + $0xba8] sm:$0xff]
    %v4379 = vld [vmem:[#allocation7 + $0xbb0] sm:$0xff]
    %v4380 = vld [vmem:[#allocation7 + $0xbb8] sm:$0xff]
    %v4381 = vld [vmem:[#allocation7 + $0xbc0] sm:$0xff]
    %v4382 = vld [vmem:[#allocation7 + $0xbc8] sm:$0xff]
    %v4383 = vld [vmem:[#allocation7 + $0xbd0] sm:$0xff]
    %v4384 = vld [vmem:[#allocation7 + $0xbd8] sm:$0xff]
    %v4385 = vld [vmem:[#allocation7 + $0xbe0] sm:$0xff]
    %v4386 = vld [vmem:[#allocation7 + $0xbe8] sm:$0xff]
    %v4387 = vld [vmem:[#allocation7 + $0xbf0] sm:$0xff]
    %v4388 = vld [vmem:[#allocation7 + $0xbf8] sm:$0xff]
    %v4389 = vld [vmem:[#allocation8] sm:$0x3f]
    %v4391 = vlaneseq
    %v4392 = vshrl.u32 %v4391, 7
    %v4393 = vsub.s32 0, %v4392
    %v4394 = vrot.slane %v4389, %v4393
    %v4395 = vlaneseq
    %v4396 = vshrl.u32 %v4395, 7
    %v4397 = vsub.s32 1, %v4396
    %v4398 = vrot.slane %v4389, %v4397
    %v4399 = vlaneseq
    %v4400 = vshrl.u32 %v4399, 7
    %v4401 = vsub.s32 2, %v4400
    %v4402 = vrot.slane %v4389, %v4401
    %v4403 = vlaneseq
    %v4404 = vshrl.u32 %v4403, 7
    %v4405 = vsub.s32 3, %v4404
    %v4406 = vrot.slane %v4389, %v4405
    %v4407 = vlaneseq
    %v4408 = vshrl.u32 %v4407, 7
    %v4409 = vsub.s32 4, %v4408
    %v4410 = vrot.slane %v4389, %v4409
    %v4411 = vlaneseq
    %v4412 = vshrl.u32 %v4411, 7
    %v4413 = vsub.s32 5, %v4412
    %v4414 = vrot.slane %v4389, %v4413
    %v4805 = vunpack.c.l.b16 %v4005
    %v4806 = vunpack.c.h.b16 %v4005
    %v4807 = vunpack.c.l.b16 %v4006
    %v4808 = vunpack.c.h.b16 %v4006
    %v4809 = vunpack.c.l.b16 %v4007
    %v4810 = vunpack.c.h.b16 %v4007
    %v4811 = vunpack.c.l.b16 %v4008
    %v4812 = vunpack.c.h.b16 %v4008
    %v4813 = vunpack.c.l.b16 %v4009
    %v4814 = vunpack.c.h.b16 %v4009
    %v4815 = vunpack.c.l.b16 %v4010
    %v4816 = vunpack.c.h.b16 %v4010
    %v4817 = vunpack.c.l.b16 %v4011
    %v4818 = vunpack.c.h.b16 %v4011
    %v4819 = vunpack.c.l.b16 %v4012
    %v4820 = vunpack.c.h.b16 %v4012
    %v4821 = vunpack.c.l.b16 %v4013
    %v4822 = vunpack.c.h.b16 %v4013
    %v4823 = vunpack.c.l.b16 %v4014
    %v4824 = vunpack.c.h.b16 %v4014
    %v4825 = vunpack.c.l.b16 %v4015
    %v4826 = vunpack.c.h.b16 %v4015
    %v4827 = vunpack.c.l.b16 %v4016
    %v4828 = vunpack.c.h.b16 %v4016
    %v4829 = vunpack.c.l.b16 %v4017
    %v4830 = vunpack.c.h.b16 %v4017
    %v4831 = vunpack.c.l.b16 %v4018
    %v4832 = vunpack.c.h.b16 %v4018
    %v4833 = vunpack.c.l.b16 %v4019
    %v4834 = vunpack.c.h.b16 %v4019
    %v4835 = vunpack.c.l.b16 %v4020
    %v4836 = vunpack.c.h.b16 %v4020
    %v4837 = vunpack.c.l.b16 %v4021
    %v4838 = vunpack.c.h.b16 %v4021
    %v4839 = vunpack.c.l.b16 %v4022
    %v4840 = vunpack.c.h.b16 %v4022
    %v4841 = vunpack.c.l.b16 %v4023
    %v4842 = vunpack.c.h.b16 %v4023
    %v4843 = vunpack.c.l.b16 %v4024
    %v4844 = vunpack.c.h.b16 %v4024
    %v4845 = vunpack.c.l.b16 %v4025
    %v4846 = vunpack.c.h.b16 %v4025
    %v4847 = vunpack.c.l.b16 %v4026
    %v4848 = vunpack.c.h.b16 %v4026
    %v4849 = vunpack.c.l.b16 %v4027
    %v4850 = vunpack.c.h.b16 %v4027
    %v4851 = vunpack.c.l.b16 %v4028
    %v4852 = vunpack.c.h.b16 %v4028
    %v4853 = vunpack.c.l.b16 %v4029
    %v4854 = vunpack.c.h.b16 %v4029
    %v4855 = vunpack.c.l.b16 %v4030
    %v4856 = vunpack.c.h.b16 %v4030
    %v4857 = vunpack.c.l.b16 %v4031
    %v4858 = vunpack.c.h.b16 %v4031
    %v4859 = vunpack.c.l.b16 %v4032
    %v4860 = vunpack.c.h.b16 %v4032
    %v4861 = vunpack.c.l.b16 %v4033
    %v4862 = vunpack.c.h.b16 %v4033
    %v4863 = vunpack.c.l.b16 %v4034
    %v4864 = vunpack.c.h.b16 %v4034
    %v4865 = vunpack.c.l.b16 %v4035
    %v4866 = vunpack.c.h.b16 %v4035
    %v4867 = vunpack.c.l.b16 %v4036
    %v4868 = vunpack.c.h.b16 %v4036
    %v4869 = vunpack.c.l.b16 %v4037
    %v4870 = vunpack.c.h.b16 %v4037
    %v4871 = vunpack.c.l.b16 %v4038
    %v4872 = vunpack.c.h.b16 %v4038
    %v4873 = vunpack.c.l.b16 %v4039
    %v4874 = vunpack.c.h.b16 %v4039
    %v4875 = vunpack.c.l.b16 %v4040
    %v4876 = vunpack.c.h.b16 %v4040
    %v4877 = vunpack.c.l.b16 %v4041
    %v4878 = vunpack.c.h.b16 %v4041
    %v4879 = vunpack.c.l.b16 %v4042
    %v4880 = vunpack.c.h.b16 %v4042
    %v4881 = vunpack.c.l.b16 %v4043
    %v4882 = vunpack.c.h.b16 %v4043
    %v4883 = vunpack.c.l.b16 %v4044
    %v4884 = vunpack.c.h.b16 %v4044
    %v4885 = vunpack.c.l.b16 %v4045
    %v4886 = vunpack.c.h.b16 %v4045
    %v4887 = vunpack.c.l.b16 %v4046
    %v4888 = vunpack.c.h.b16 %v4046
    %v4889 = vunpack.c.l.b16 %v4047
    %v4890 = vunpack.c.h.b16 %v4047
    %v4891 = vunpack.c.l.b16 %v4048
    %v4892 = vunpack.c.h.b16 %v4048
    %v4893 = vunpack.c.l.b16 %v4049
    %v4894 = vunpack.c.h.b16 %v4049
    %v4895 = vunpack.c.l.b16 %v4050
    %v4896 = vunpack.c.h.b16 %v4050
    %v4897 = vunpack.c.l.b16 %v4051
    %v4898 = vunpack.c.h.b16 %v4051
    %v4899 = vunpack.c.l.b16 %v4052
    %v4900 = vunpack.c.h.b16 %v4052
    %v4901 = vunpack.c.l.b16 %v4053
    %v4902 = vunpack.c.h.b16 %v4053
    %v4903 = vunpack.c.l.b16 %v4054
    %v4904 = vunpack.c.h.b16 %v4054
    %v4905 = vunpack.c.l.b16 %v4055
    %v4906 = vunpack.c.h.b16 %v4055
    %v4907 = vunpack.c.l.b16 %v4056
    %v4908 = vunpack.c.h.b16 %v4056
    %v4909 = vunpack.c.l.b16 %v4057
    %v4910 = vunpack.c.h.b16 %v4057
    %v4911 = vunpack.c.l.b16 %v4058
    %v4912 = vunpack.c.h.b16 %v4058
    %v4913 = vunpack.c.l.b16 %v4059
    %v4914 = vunpack.c.h.b16 %v4059
    %v4915 = vunpack.c.l.b16 %v4060
    %v4916 = vunpack.c.h.b16 %v4060
    %v4917 = vunpack.c.l.b16 %v4061
    %v4918 = vunpack.c.h.b16 %v4061
    %v4919 = vunpack.c.l.b16 %v4062
    %v4920 = vunpack.c.h.b16 %v4062
    %v4921 = vunpack.c.l.b16 %v4063
    %v4922 = vunpack.c.h.b16 %v4063
    %v4923 = vunpack.c.l.b16 %v4064
    %v4924 = vunpack.c.h.b16 %v4064
    %v4925 = vunpack.c.l.b16 %v4065
    %v4926 = vunpack.c.h.b16 %v4065
    %v4927 = vunpack.c.l.b16 %v4066
    %v4928 = vunpack.c.h.b16 %v4066
    %v4929 = vunpack.c.l.b16 %v4067
    %v4930 = vunpack.c.h.b16 %v4067
    %v4931 = vunpack.c.l.b16 %v4068
    %v4932 = vunpack.c.h.b16 %v4068
    %v4933 = vunpack.c.l.b16 %v4069
    %v4934 = vunpack.c.h.b16 %v4069
    %v4935 = vunpack.c.l.b16 %v4070
    %v4936 = vunpack.c.h.b16 %v4070
    %v4937 = vunpack.c.l.b16 %v4071
    %v4938 = vunpack.c.h.b16 %v4071
    %v4939 = vunpack.c.l.b16 %v4072
    %v4940 = vunpack.c.h.b16 %v4072
    %v4941 = vunpack.c.l.b16 %v4073
    %v4942 = vunpack.c.h.b16 %v4073
    %v4943 = vunpack.c.l.b16 %v4074
    %v4944 = vunpack.c.h.b16 %v4074
    %v4945 = vunpack.c.l.b16 %v4075
    %v4946 = vunpack.c.h.b16 %v4075
    %v4947 = vunpack.c.l.b16 %v4076
    %v4948 = vunpack.c.h.b16 %v4076
    %v4949 = vunpack.c.l.b16 %v4077
    %v4950 = vunpack.c.h.b16 %v4077
    %v4951 = vunpack.c.l.b16 %v4078
    %v4952 = vunpack.c.h.b16 %v4078
    %v4953 = vunpack.c.l.b16 %v4079
    %v4954 = vunpack.c.h.b16 %v4079
    %v4955 = vunpack.c.l.b16 %v4080
    %v4956 = vunpack.c.h.b16 %v4080
    %v4957 = vunpack.c.l.b16 %v4081
    %v4958 = vunpack.c.h.b16 %v4081
    %v4959 = vunpack.c.l.b16 %v4082
    %v4960 = vunpack.c.h.b16 %v4082
    %v4961 = vunpack.c.l.b16 %v4083
    %v4962 = vunpack.c.h.b16 %v4083
    %v4963 = vunpack.c.l.b16 %v4084
    %v4964 = vunpack.c.h.b16 %v4084
    %v4965 = vunpack.c.l.b16 %v4085
    %v4966 = vunpack.c.h.b16 %v4085
    %v4967 = vunpack.c.l.b16 %v4086
    %v4968 = vunpack.c.h.b16 %v4086
    %v4969 = vunpack.c.l.b16 %v4087
    %v4970 = vunpack.c.h.b16 %v4087
    %v4971 = vunpack.c.l.b16 %v4088
    %v4972 = vunpack.c.h.b16 %v4088
    %v4973 = vunpack.c.l.b16 %v4089
    %v4974 = vunpack.c.h.b16 %v4089
    %v4975 = vunpack.c.l.b16 %v4090
    %v4976 = vunpack.c.h.b16 %v4090
    %v4977 = vunpack.c.l.b16 %v4091
    %v4978 = vunpack.c.h.b16 %v4091
    %v4979 = vunpack.c.l.b16 %v4092
    %v4980 = vunpack.c.h.b16 %v4092
    %v4981 = vunpack.c.l.b16 %v4093
    %v4982 = vunpack.c.h.b16 %v4093
    %v4983 = vunpack.c.l.b16 %v4094
    %v4984 = vunpack.c.h.b16 %v4094
    %v4985 = vunpack.c.l.b16 %v4095
    %v4986 = vunpack.c.h.b16 %v4095
    %v4987 = vunpack.c.l.b16 %v4096
    %v4988 = vunpack.c.h.b16 %v4096
    %v4989 = vunpack.c.l.b16 %v4097
    %v4990 = vunpack.c.h.b16 %v4097
    %v4991 = vunpack.c.l.b16 %v4098
    %v4992 = vunpack.c.h.b16 %v4098
    %v4993 = vunpack.c.l.b16 %v4099
    %v4994 = vunpack.c.h.b16 %v4099
    %v4995 = vunpack.c.l.b16 %v4100
    %v4996 = vunpack.c.h.b16 %v4100
    %v4997 = vunpack.c.l.b16 %v4101
    %v4998 = vunpack.c.h.b16 %v4101
    %v4999 = vunpack.c.l.b16 %v4102
    %v5000 = vunpack.c.h.b16 %v4102
    %v5001 = vunpack.c.l.b16 %v4103
    %v5002 = vunpack.c.h.b16 %v4103
    %v5003 = vunpack.c.l.b16 %v4104
    %v5004 = vunpack.c.h.b16 %v4104
    %v5005 = vunpack.c.l.b16 %v4105
    %v5006 = vunpack.c.h.b16 %v4105
    %v5007 = vunpack.c.l.b16 %v4106
    %v5008 = vunpack.c.h.b16 %v4106
    %v5009 = vunpack.c.l.b16 %v4107
    %v5010 = vunpack.c.h.b16 %v4107
    %v5011 = vunpack.c.l.b16 %v4108
    %v5012 = vunpack.c.h.b16 %v4108
    %v5013 = vunpack.c.l.b16 %v4109
    %v5014 = vunpack.c.h.b16 %v4109
    %v5015 = vunpack.c.l.b16 %v4110
    %v5016 = vunpack.c.h.b16 %v4110
    %v5017 = vunpack.c.l.b16 %v4111
    %v5018 = vunpack.c.h.b16 %v4111
    %v5019 = vunpack.c.l.b16 %v4112
    %v5020 = vunpack.c.h.b16 %v4112
    %v5021 = vunpack.c.l.b16 %v4113
    %v5022 = vunpack.c.h.b16 %v4113
    %v5023 = vunpack.c.l.b16 %v4114
    %v5024 = vunpack.c.h.b16 %v4114
    %v5025 = vunpack.c.l.b16 %v4115
    %v5026 = vunpack.c.h.b16 %v4115
    %v5027 = vunpack.c.l.b16 %v4116
    %v5028 = vunpack.c.h.b16 %v4116
    %v5029 = vunpack.c.l.b16 %v4117
    %v5030 = vunpack.c.h.b16 %v4117
    %v5031 = vunpack.c.l.b16 %v4118
    %v5032 = vunpack.c.h.b16 %v4118
    %v5033 = vunpack.c.l.b16 %v4119
    %v5034 = vunpack.c.h.b16 %v4119
    %v5035 = vunpack.c.l.b16 %v4120
    %v5036 = vunpack.c.h.b16 %v4120
    %v5037 = vunpack.c.l.b16 %v4121
    %v5038 = vunpack.c.h.b16 %v4121
    %v5039 = vunpack.c.l.b16 %v4122
    %v5040 = vunpack.c.h.b16 %v4122
    %v5041 = vunpack.c.l.b16 %v4123
    %v5042 = vunpack.c.h.b16 %v4123
    %v5043 = vunpack.c.l.b16 %v4124
    %v5044 = vunpack.c.h.b16 %v4124
    %v5045 = vunpack.c.l.b16 %v4125
    %v5046 = vunpack.c.h.b16 %v4125
    %v5047 = vunpack.c.l.b16 %v4126
    %v5048 = vunpack.c.h.b16 %v4126
    %v5049 = vunpack.c.l.b16 %v4127
    %v5050 = vunpack.c.h.b16 %v4127
    %v5051 = vunpack.c.l.b16 %v4128
    %v5052 = vunpack.c.h.b16 %v4128
    %v5053 = vunpack.c.l.b16 %v4129
    %v5054 = vunpack.c.h.b16 %v4129
    %v5055 = vunpack.c.l.b16 %v4130
    %v5056 = vunpack.c.h.b16 %v4130
    %v5057 = vunpack.c.l.b16 %v4131
    %v5058 = vunpack.c.h.b16 %v4131
    %v5059 = vunpack.c.l.b16 %v4132
    %v5060 = vunpack.c.h.b16 %v4132
    %v5061 = vunpack.c.l.b16 %v4133
    %v5062 = vunpack.c.h.b16 %v4133
    %v5063 = vunpack.c.l.b16 %v4134
    %v5064 = vunpack.c.h.b16 %v4134
    %v5065 = vunpack.c.l.b16 %v4135
    %v5066 = vunpack.c.h.b16 %v4135
    %v5067 = vunpack.c.l.b16 %v4136
    %v5068 = vunpack.c.h.b16 %v4136
    %v5069 = vunpack.c.l.b16 %v4137
    %v5070 = vunpack.c.h.b16 %v4137
    %v5071 = vunpack.c.l.b16 %v4138
    %v5072 = vunpack.c.h.b16 %v4138
    %v5073 = vunpack.c.l.b16 %v4139
    %v5074 = vunpack.c.h.b16 %v4139
    %v5075 = vunpack.c.l.b16 %v4140
    %v5076 = vunpack.c.h.b16 %v4140
    %v5077 = vunpack.c.l.b16 %v4141
    %v5078 = vunpack.c.h.b16 %v4141
    %v5079 = vunpack.c.l.b16 %v4142
    %v5080 = vunpack.c.h.b16 %v4142
    %v5081 = vunpack.c.l.b16 %v4143
    %v5082 = vunpack.c.h.b16 %v4143
    %v5083 = vunpack.c.l.b16 %v4144
    %v5084 = vunpack.c.h.b16 %v4144
    %v5085 = vunpack.c.l.b16 %v4145
    %v5086 = vunpack.c.h.b16 %v4145
    %v5087 = vunpack.c.l.b16 %v4146
    %v5088 = vunpack.c.h.b16 %v4146
    %v5089 = vunpack.c.l.b16 %v4147
    %v5090 = vunpack.c.h.b16 %v4147
    %v5091 = vunpack.c.l.b16 %v4148
    %v5092 = vunpack.c.h.b16 %v4148
    %v5093 = vunpack.c.l.b16 %v4149
    %v5094 = vunpack.c.h.b16 %v4149
    %v5095 = vunpack.c.l.b16 %v4150
    %v5096 = vunpack.c.h.b16 %v4150
    %v5097 = vunpack.c.l.b16 %v4151
    %v5098 = vunpack.c.h.b16 %v4151
    %v5099 = vunpack.c.l.b16 %v4152
    %v5100 = vunpack.c.h.b16 %v4152
    %v5101 = vunpack.c.l.b16 %v4153
    %v5102 = vunpack.c.h.b16 %v4153
    %v5103 = vunpack.c.l.b16 %v4154
    %v5104 = vunpack.c.h.b16 %v4154
    %v5105 = vunpack.c.l.b16 %v4155
    %v5106 = vunpack.c.h.b16 %v4155
    %v5107 = vunpack.c.l.b16 %v4156
    %v5108 = vunpack.c.h.b16 %v4156
    %v5109 = vunpack.c.l.b16 %v4157
    %v5110 = vunpack.c.h.b16 %v4157
    %v5111 = vunpack.c.l.b16 %v4158
    %v5112 = vunpack.c.h.b16 %v4158
    %v5113 = vunpack.c.l.b16 %v4159
    %v5114 = vunpack.c.h.b16 %v4159
    %v5115 = vunpack.c.l.b16 %v4160
    %v5116 = vunpack.c.h.b16 %v4160
    %v5117 = vunpack.c.l.b16 %v4161
    %v5118 = vunpack.c.h.b16 %v4161
    %v5119 = vunpack.c.l.b16 %v4162
    %v5120 = vunpack.c.h.b16 %v4162
    %v5121 = vunpack.c.l.b16 %v4163
    %v5122 = vunpack.c.h.b16 %v4163
    %v5123 = vunpack.c.l.b16 %v4164
    %v5124 = vunpack.c.h.b16 %v4164
    %v5125 = vunpack.c.l.b16 %v4165
    %v5126 = vunpack.c.h.b16 %v4165
    %v5127 = vunpack.c.l.b16 %v4166
    %v5128 = vunpack.c.h.b16 %v4166
    %v5129 = vunpack.c.l.b16 %v4167
    %v5130 = vunpack.c.h.b16 %v4167
    %v5131 = vunpack.c.l.b16 %v4168
    %v5132 = vunpack.c.h.b16 %v4168
    %v5133 = vunpack.c.l.b16 %v4169
    %v5134 = vunpack.c.h.b16 %v4169
    %v5135 = vunpack.c.l.b16 %v4170
    %v5136 = vunpack.c.h.b16 %v4170
    %v5137 = vunpack.c.l.b16 %v4171
    %v5138 = vunpack.c.h.b16 %v4171
    %v5139 = vunpack.c.l.b16 %v4172
    %v5140 = vunpack.c.h.b16 %v4172
    %v5141 = vunpack.c.l.b16 %v4173
    %v5142 = vunpack.c.h.b16 %v4173
    %v5143 = vunpack.c.l.b16 %v4174
    %v5144 = vunpack.c.h.b16 %v4174
    %v5145 = vunpack.c.l.b16 %v4175
    %v5146 = vunpack.c.h.b16 %v4175
    %v5147 = vunpack.c.l.b16 %v4176
    %v5148 = vunpack.c.h.b16 %v4176
    %v5149 = vunpack.c.l.b16 %v4177
    %v5150 = vunpack.c.h.b16 %v4177
    %v5151 = vunpack.c.l.b16 %v4178
    %v5152 = vunpack.c.h.b16 %v4178
    %v5153 = vunpack.c.l.b16 %v4179
    %v5154 = vunpack.c.h.b16 %v4179
    %v5155 = vunpack.c.l.b16 %v4180
    %v5156 = vunpack.c.h.b16 %v4180
    %v5157 = vunpack.c.l.b16 %v4181
    %v5158 = vunpack.c.h.b16 %v4181
    %v5159 = vunpack.c.l.b16 %v4182
    %v5160 = vunpack.c.h.b16 %v4182
    %v5161 = vunpack.c.l.b16 %v4183
    %v5162 = vunpack.c.h.b16 %v4183
    %v5163 = vunpack.c.l.b16 %v4184
    %v5164 = vunpack.c.h.b16 %v4184
    %v5165 = vunpack.c.l.b16 %v4185
    %v5166 = vunpack.c.h.b16 %v4185
    %v5167 = vunpack.c.l.b16 %v4186
    %v5168 = vunpack.c.h.b16 %v4186
    %v5169 = vunpack.c.l.b16 %v4187
    %v5170 = vunpack.c.h.b16 %v4187
    %v5171 = vunpack.c.l.b16 %v4188
    %v5172 = vunpack.c.h.b16 %v4188
    %v5173 = vunpack.c.l.b16 %v4189
    %v5174 = vunpack.c.h.b16 %v4189
    %v5175 = vunpack.c.l.b16 %v4190
    %v5176 = vunpack.c.h.b16 %v4190
    %v5177 = vunpack.c.l.b16 %v4191
    %v5178 = vunpack.c.h.b16 %v4191
    %v5179 = vunpack.c.l.b16 %v4192
    %v5180 = vunpack.c.h.b16 %v4192
    %v5181 = vunpack.c.l.b16 %v4193
    %v5182 = vunpack.c.h.b16 %v4193
    %v5183 = vunpack.c.l.b16 %v4194
    %v5184 = vunpack.c.h.b16 %v4194
    %v5185 = vunpack.c.l.b16 %v4195
    %v5186 = vunpack.c.h.b16 %v4195
    %v5187 = vunpack.c.l.b16 %v4196
    %v5188 = vunpack.c.h.b16 %v4196
    %v5189 = vunpack.c.l.b16 %v4197
    %v5190 = vunpack.c.h.b16 %v4197
    %v5191 = vunpack.c.l.b16 %v4198
    %v5192 = vunpack.c.h.b16 %v4198
    %v5193 = vunpack.c.l.b16 %v4199
    %v5194 = vunpack.c.h.b16 %v4199
    %v5195 = vunpack.c.l.b16 %v4200
    %v5196 = vunpack.c.h.b16 %v4200
    %v5197 = vunpack.c.l.b16 %v4201
    %v5198 = vunpack.c.h.b16 %v4201
    %v5199 = vunpack.c.l.b16 %v4202
    %v5200 = vunpack.c.h.b16 %v4202
    %v5201 = vunpack.c.l.b16 %v4203
    %v5202 = vunpack.c.h.b16 %v4203
    %v5203 = vunpack.c.l.b16 %v4204
    %v5204 = vunpack.c.h.b16 %v4204
    %v5205 = vunpack.c.l.b16 %v4205
    %v5206 = vunpack.c.h.b16 %v4205
    %v5207 = vunpack.c.l.b16 %v4206
    %v5208 = vunpack.c.h.b16 %v4206
    %v5209 = vunpack.c.l.b16 %v4207
    %v5210 = vunpack.c.h.b16 %v4207
    %v5211 = vunpack.c.l.b16 %v4208
    %v5212 = vunpack.c.h.b16 %v4208
    %v5213 = vunpack.c.l.b16 %v4209
    %v5214 = vunpack.c.h.b16 %v4209
    %v5215 = vunpack.c.l.b16 %v4210
    %v5216 = vunpack.c.h.b16 %v4210
    %v5217 = vunpack.c.l.b16 %v4211
    %v5218 = vunpack.c.h.b16 %v4211
    %v5219 = vunpack.c.l.b16 %v4212
    %v5220 = vunpack.c.h.b16 %v4212
    %v5221 = vunpack.c.l.b16 %v4213
    %v5222 = vunpack.c.h.b16 %v4213
    %v5223 = vunpack.c.l.b16 %v4214
    %v5224 = vunpack.c.h.b16 %v4214
    %v5225 = vunpack.c.l.b16 %v4215
    %v5226 = vunpack.c.h.b16 %v4215
    %v5227 = vunpack.c.l.b16 %v4216
    %v5228 = vunpack.c.h.b16 %v4216
    %v5229 = vunpack.c.l.b16 %v4217
    %v5230 = vunpack.c.h.b16 %v4217
    %v5231 = vunpack.c.l.b16 %v4218
    %v5232 = vunpack.c.h.b16 %v4218
    %v5233 = vunpack.c.l.b16 %v4219
    %v5234 = vunpack.c.h.b16 %v4219
    %v5235 = vunpack.c.l.b16 %v4220
    %v5236 = vunpack.c.h.b16 %v4220
    %v5237 = vunpack.c.l.b16 %v4221
    %v5238 = vunpack.c.h.b16 %v4221
    %v5239 = vunpack.c.l.b16 %v4222
    %v5240 = vunpack.c.h.b16 %v4222
    %v5241 = vunpack.c.l.b16 %v4223
    %v5242 = vunpack.c.h.b16 %v4223
    %v5243 = vunpack.c.l.b16 %v4224
    %v5244 = vunpack.c.h.b16 %v4224
    %v5245 = vunpack.c.l.b16 %v4225
    %v5246 = vunpack.c.h.b16 %v4225
    %v5247 = vunpack.c.l.b16 %v4226
    %v5248 = vunpack.c.h.b16 %v4226
    %v5249 = vunpack.c.l.b16 %v4227
    %v5250 = vunpack.c.h.b16 %v4227
    %v5251 = vunpack.c.l.b16 %v4228
    %v5252 = vunpack.c.h.b16 %v4228
    %v5253 = vunpack.c.l.b16 %v4229
    %v5254 = vunpack.c.h.b16 %v4229
    %v5255 = vunpack.c.l.b16 %v4230
    %v5256 = vunpack.c.h.b16 %v4230
    %v5257 = vunpack.c.l.b16 %v4231
    %v5258 = vunpack.c.h.b16 %v4231
    %v5259 = vunpack.c.l.b16 %v4232
    %v5260 = vunpack.c.h.b16 %v4232
    %v5261 = vunpack.c.l.b16 %v4233
    %v5262 = vunpack.c.h.b16 %v4233
    %v5263 = vunpack.c.l.b16 %v4234
    %v5264 = vunpack.c.h.b16 %v4234
    %v5265 = vunpack.c.l.b16 %v4235
    %v5266 = vunpack.c.h.b16 %v4235
    %v5267 = vunpack.c.l.b16 %v4236
    %v5268 = vunpack.c.h.b16 %v4236
    %v5269 = vunpack.c.l.b16 %v4237
    %v5270 = vunpack.c.h.b16 %v4237
    %v5271 = vunpack.c.l.b16 %v4238
    %v5272 = vunpack.c.h.b16 %v4238
    %v5273 = vunpack.c.l.b16 %v4239
    %v5274 = vunpack.c.h.b16 %v4239
    %v5275 = vunpack.c.l.b16 %v4240
    %v5276 = vunpack.c.h.b16 %v4240
    %v5277 = vunpack.c.l.b16 %v4241
    %v5278 = vunpack.c.h.b16 %v4241
    %v5279 = vunpack.c.l.b16 %v4242
    %v5280 = vunpack.c.h.b16 %v4242
    %v5281 = vunpack.c.l.b16 %v4243
    %v5282 = vunpack.c.h.b16 %v4243
    %v5283 = vunpack.c.l.b16 %v4244
    %v5284 = vunpack.c.h.b16 %v4244
    %v5285 = vunpack.c.l.b16 %v4245
    %v5286 = vunpack.c.h.b16 %v4245
    %v5287 = vunpack.c.l.b16 %v4246
    %v5288 = vunpack.c.h.b16 %v4246
    %v5289 = vunpack.c.l.b16 %v4247
    %v5290 = vunpack.c.h.b16 %v4247
    %v5291 = vunpack.c.l.b16 %v4248
    %v5292 = vunpack.c.h.b16 %v4248
    %v5293 = vunpack.c.l.b16 %v4249
    %v5294 = vunpack.c.h.b16 %v4249
    %v5295 = vunpack.c.l.b16 %v4250
    %v5296 = vunpack.c.h.b16 %v4250
    %v5297 = vunpack.c.l.b16 %v4251
    %v5298 = vunpack.c.h.b16 %v4251
    %v5299 = vunpack.c.l.b16 %v4252
    %v5300 = vunpack.c.h.b16 %v4252
    %v5301 = vunpack.c.l.b16 %v4253
    %v5302 = vunpack.c.h.b16 %v4253
    %v5303 = vunpack.c.l.b16 %v4254
    %v5304 = vunpack.c.h.b16 %v4254
    %v5305 = vunpack.c.l.b16 %v4255
    %v5306 = vunpack.c.h.b16 %v4255
    %v5307 = vunpack.c.l.b16 %v4256
    %v5308 = vunpack.c.h.b16 %v4256
    %v5309 = vunpack.c.l.b16 %v4257
    %v5310 = vunpack.c.h.b16 %v4257
    %v5311 = vunpack.c.l.b16 %v4258
    %v5312 = vunpack.c.h.b16 %v4258
    %v5313 = vunpack.c.l.b16 %v4259
    %v5314 = vunpack.c.h.b16 %v4259
    %v5315 = vunpack.c.l.b16 %v4260
    %v5316 = vunpack.c.h.b16 %v4260
    %v5317 = vunpack.c.l.b16 %v4261
    %v5318 = vunpack.c.h.b16 %v4261
    %v5319 = vunpack.c.l.b16 %v4262
    %v5320 = vunpack.c.h.b16 %v4262
    %v5321 = vunpack.c.l.b16 %v4263
    %v5322 = vunpack.c.h.b16 %v4263
    %v5323 = vunpack.c.l.b16 %v4264
    %v5324 = vunpack.c.h.b16 %v4264
    %v5325 = vunpack.c.l.b16 %v4265
    %v5326 = vunpack.c.h.b16 %v4265
    %v5327 = vunpack.c.l.b16 %v4266
    %v5328 = vunpack.c.h.b16 %v4266
    %v5329 = vunpack.c.l.b16 %v4267
    %v5330 = vunpack.c.h.b16 %v4267
    %v5331 = vunpack.c.l.b16 %v4268
    %v5332 = vunpack.c.h.b16 %v4268
    %v5333 = vunpack.c.l.b16 %v4269
    %v5334 = vunpack.c.h.b16 %v4269
    %v5335 = vunpack.c.l.b16 %v4270
    %v5336 = vunpack.c.h.b16 %v4270
    %v5337 = vunpack.c.l.b16 %v4271
    %v5338 = vunpack.c.h.b16 %v4271
    %v5339 = vunpack.c.l.b16 %v4272
    %v5340 = vunpack.c.h.b16 %v4272
    %v5341 = vunpack.c.l.b16 %v4273
    %v5342 = vunpack.c.h.b16 %v4273
    %v5343 = vunpack.c.l.b16 %v4274
    %v5344 = vunpack.c.h.b16 %v4274
    %v5345 = vunpack.c.l.b16 %v4275
    %v5346 = vunpack.c.h.b16 %v4275
    %v5347 = vunpack.c.l.b16 %v4276
    %v5348 = vunpack.c.h.b16 %v4276
    %v5349 = vunpack.c.l.b16 %v4277
    %v5350 = vunpack.c.h.b16 %v4277
    %v5351 = vunpack.c.l.b16 %v4278
    %v5352 = vunpack.c.h.b16 %v4278
    %v5353 = vunpack.c.l.b16 %v4279
    %v5354 = vunpack.c.h.b16 %v4279
    %v5355 = vunpack.c.l.b16 %v4280
    %v5356 = vunpack.c.h.b16 %v4280
    %v5357 = vunpack.c.l.b16 %v4281
    %v5358 = vunpack.c.h.b16 %v4281
    %v5359 = vunpack.c.l.b16 %v4282
    %v5360 = vunpack.c.h.b16 %v4282
    %v5361 = vunpack.c.l.b16 %v4283
    %v5362 = vunpack.c.h.b16 %v4283
    %v5363 = vunpack.c.l.b16 %v4284
    %v5364 = vunpack.c.h.b16 %v4284
    %v5365 = vunpack.c.l.b16 %v4285
    %v5366 = vunpack.c.h.b16 %v4285
    %v5367 = vunpack.c.l.b16 %v4286
    %v5368 = vunpack.c.h.b16 %v4286
    %v5369 = vunpack.c.l.b16 %v4287
    %v5370 = vunpack.c.h.b16 %v4287
    %v5371 = vunpack.c.l.b16 %v4288
    %v5372 = vunpack.c.h.b16 %v4288
    %v5373 = vunpack.c.l.b16 %v4289
    %v5374 = vunpack.c.h.b16 %v4289
    %v5375 = vunpack.c.l.b16 %v4290
    %v5376 = vunpack.c.h.b16 %v4290
    %v5377 = vunpack.c.l.b16 %v4291
    %v5378 = vunpack.c.h.b16 %v4291
    %v5379 = vunpack.c.l.b16 %v4292
    %v5380 = vunpack.c.h.b16 %v4292
    %v5381 = vunpack.c.l.b16 %v4293
    %v5382 = vunpack.c.h.b16 %v4293
    %v5383 = vunpack.c.l.b16 %v4294
    %v5384 = vunpack.c.h.b16 %v4294
    %v5385 = vunpack.c.l.b16 %v4295
    %v5386 = vunpack.c.h.b16 %v4295
    %v5387 = vunpack.c.l.b16 %v4296
    %v5388 = vunpack.c.h.b16 %v4296
    %v5389 = vunpack.c.l.b16 %v4297
    %v5390 = vunpack.c.h.b16 %v4297
    %v5391 = vunpack.c.l.b16 %v4298
    %v5392 = vunpack.c.h.b16 %v4298
    %v5393 = vunpack.c.l.b16 %v4299
    %v5394 = vunpack.c.h.b16 %v4299
    %v5395 = vunpack.c.l.b16 %v4300
    %v5396 = vunpack.c.h.b16 %v4300
    %v5397 = vunpack.c.l.b16 %v4301
    %v5398 = vunpack.c.h.b16 %v4301
    %v5399 = vunpack.c.l.b16 %v4302
    %v5400 = vunpack.c.h.b16 %v4302
    %v5401 = vunpack.c.l.b16 %v4303
    %v5402 = vunpack.c.h.b16 %v4303
    %v5403 = vunpack.c.l.b16 %v4304
    %v5404 = vunpack.c.h.b16 %v4304
    %v5405 = vunpack.c.l.b16 %v4305
    %v5406 = vunpack.c.h.b16 %v4305
    %v5407 = vunpack.c.l.b16 %v4306
    %v5408 = vunpack.c.h.b16 %v4306
    %v5409 = vunpack.c.l.b16 %v4307
    %v5410 = vunpack.c.h.b16 %v4307
    %v5411 = vunpack.c.l.b16 %v4308
    %v5412 = vunpack.c.h.b16 %v4308
    %v5413 = vunpack.c.l.b16 %v4309
    %v5414 = vunpack.c.h.b16 %v4309
    %v5415 = vunpack.c.l.b16 %v4310
    %v5416 = vunpack.c.h.b16 %v4310
    %v5417 = vunpack.c.l.b16 %v4311
    %v5418 = vunpack.c.h.b16 %v4311
    %v5419 = vunpack.c.l.b16 %v4312
    %v5420 = vunpack.c.h.b16 %v4312
    %v5421 = vunpack.c.l.b16 %v4313
    %v5422 = vunpack.c.h.b16 %v4313
    %v5423 = vunpack.c.l.b16 %v4314
    %v5424 = vunpack.c.h.b16 %v4314
    %v5425 = vunpack.c.l.b16 %v4315
    %v5426 = vunpack.c.h.b16 %v4315
    %v5427 = vunpack.c.l.b16 %v4316
    %v5428 = vunpack.c.h.b16 %v4316
    %v5429 = vunpack.c.l.b16 %v4317
    %v5430 = vunpack.c.h.b16 %v4317
    %v5431 = vunpack.c.l.b16 %v4318
    %v5432 = vunpack.c.h.b16 %v4318
    %v5433 = vunpack.c.l.b16 %v4319
    %v5434 = vunpack.c.h.b16 %v4319
    %v5435 = vunpack.c.l.b16 %v4320
    %v5436 = vunpack.c.h.b16 %v4320
    %v5437 = vunpack.c.l.b16 %v4321
    %v5438 = vunpack.c.h.b16 %v4321
    %v5439 = vunpack.c.l.b16 %v4322
    %v5440 = vunpack.c.h.b16 %v4322
    %v5441 = vunpack.c.l.b16 %v4323
    %v5442 = vunpack.c.h.b16 %v4323
    %v5443 = vunpack.c.l.b16 %v4324
    %v5444 = vunpack.c.h.b16 %v4324
    %v5445 = vunpack.c.l.b16 %v4325
    %v5446 = vunpack.c.h.b16 %v4325
    %v5447 = vunpack.c.l.b16 %v4326
    %v5448 = vunpack.c.h.b16 %v4326
    %v5449 = vunpack.c.l.b16 %v4327
    %v5450 = vunpack.c.h.b16 %v4327
    %v5451 = vunpack.c.l.b16 %v4328
    %v5452 = vunpack.c.h.b16 %v4328
    %v5453 = vunpack.c.l.b16 %v4329
    %v5454 = vunpack.c.h.b16 %v4329
    %v5455 = vunpack.c.l.b16 %v4330
    %v5456 = vunpack.c.h.b16 %v4330
    %v5457 = vunpack.c.l.b16 %v4331
    %v5458 = vunpack.c.h.b16 %v4331
    %v5459 = vunpack.c.l.b16 %v4332
    %v5460 = vunpack.c.h.b16 %v4332
    %v5461 = vunpack.c.l.b16 %v4333
    %v5462 = vunpack.c.h.b16 %v4333
    %v5463 = vunpack.c.l.b16 %v4334
    %v5464 = vunpack.c.h.b16 %v4334
    %v5465 = vunpack.c.l.b16 %v4335
    %v5466 = vunpack.c.h.b16 %v4335
    %v5467 = vunpack.c.l.b16 %v4336
    %v5468 = vunpack.c.h.b16 %v4336
    %v5469 = vunpack.c.l.b16 %v4337
    %v5470 = vunpack.c.h.b16 %v4337
    %v5471 = vunpack.c.l.b16 %v4338
    %v5472 = vunpack.c.h.b16 %v4338
    %v5473 = vunpack.c.l.b16 %v4339
    %v5474 = vunpack.c.h.b16 %v4339
    %v5475 = vunpack.c.l.b16 %v4340
    %v5476 = vunpack.c.h.b16 %v4340
    %v5477 = vunpack.c.l.b16 %v4341
    %v5478 = vunpack.c.h.b16 %v4341
    %v5479 = vunpack.c.l.b16 %v4342
    %v5480 = vunpack.c.h.b16 %v4342
    %v5481 = vunpack.c.l.b16 %v4343
    %v5482 = vunpack.c.h.b16 %v4343
    %v5483 = vunpack.c.l.b16 %v4344
    %v5484 = vunpack.c.h.b16 %v4344
    %v5485 = vunpack.c.l.b16 %v4345
    %v5486 = vunpack.c.h.b16 %v4345
    %v5487 = vunpack.c.l.b16 %v4346
    %v5488 = vunpack.c.h.b16 %v4346
    %v5489 = vunpack.c.l.b16 %v4347
    %v5490 = vunpack.c.h.b16 %v4347
    %v5491 = vunpack.c.l.b16 %v4348
    %v5492 = vunpack.c.h.b16 %v4348
    %v5493 = vunpack.c.l.b16 %v4349
    %v5494 = vunpack.c.h.b16 %v4349
    %v5495 = vunpack.c.l.b16 %v4350
    %v5496 = vunpack.c.h.b16 %v4350
    %v5497 = vunpack.c.l.b16 %v4351
    %v5498 = vunpack.c.h.b16 %v4351
    %v5499 = vunpack.c.l.b16 %v4352
    %v5500 = vunpack.c.h.b16 %v4352
    %v5501 = vunpack.c.l.b16 %v4353
    %v5502 = vunpack.c.h.b16 %v4353
    %v5503 = vunpack.c.l.b16 %v4354
    %v5504 = vunpack.c.h.b16 %v4354
    %v5505 = vunpack.c.l.b16 %v4355
    %v5506 = vunpack.c.h.b16 %v4355
    %v5507 = vunpack.c.l.b16 %v4356
    %v5508 = vunpack.c.h.b16 %v4356
    %v5509 = vunpack.c.l.b16 %v4357
    %v5510 = vunpack.c.h.b16 %v4357
    %v5511 = vunpack.c.l.b16 %v4358
    %v5512 = vunpack.c.h.b16 %v4358
    %v5513 = vunpack.c.l.b16 %v4359
    %v5514 = vunpack.c.h.b16 %v4359
    %v5515 = vunpack.c.l.b16 %v4360
    %v5516 = vunpack.c.h.b16 %v4360
    %v5517 = vunpack.c.l.b16 %v4361
    %v5518 = vunpack.c.h.b16 %v4361
    %v5519 = vunpack.c.l.b16 %v4362
    %v5520 = vunpack.c.h.b16 %v4362
    %v5521 = vunpack.c.l.b16 %v4363
    %v5522 = vunpack.c.h.b16 %v4363
    %v5523 = vunpack.c.l.b16 %v4364
    %v5524 = vunpack.c.h.b16 %v4364
    %v5525 = vunpack.c.l.b16 %v4365
    %v5526 = vunpack.c.h.b16 %v4365
    %v5527 = vunpack.c.l.b16 %v4366
    %v5528 = vunpack.c.h.b16 %v4366
    %v5529 = vunpack.c.l.b16 %v4367
    %v5530 = vunpack.c.h.b16 %v4367
    %v5531 = vunpack.c.l.b16 %v4368
    %v5532 = vunpack.c.h.b16 %v4368
    %v5533 = vunpack.c.l.b16 %v4369
    %v5534 = vunpack.c.h.b16 %v4369
    %v5535 = vunpack.c.l.b16 %v4370
    %v5536 = vunpack.c.h.b16 %v4370
    %v5537 = vunpack.c.l.b16 %v4371
    %v5538 = vunpack.c.h.b16 %v4371
    %v5539 = vunpack.c.l.b16 %v4372
    %v5540 = vunpack.c.h.b16 %v4372
    %v5541 = vunpack.c.l.b16 %v4373
    %v5542 = vunpack.c.h.b16 %v4373
    %v5543 = vunpack.c.l.b16 %v4374
    %v5544 = vunpack.c.h.b16 %v4374
    %v5545 = vunpack.c.l.b16 %v4375
    %v5546 = vunpack.c.h.b16 %v4375
    %v5547 = vunpack.c.l.b16 %v4376
    %v5548 = vunpack.c.h.b16 %v4376
    %v5549 = vunpack.c.l.b16 %v4377
    %v5550 = vunpack.c.h.b16 %v4377
    %v5551 = vunpack.c.l.b16 %v4378
    %v5552 = vunpack.c.h.b16 %v4378
    %v5553 = vunpack.c.l.b16 %v4379
    %v5554 = vunpack.c.h.b16 %v4379
    %v5555 = vunpack.c.l.b16 %v4380
    %v5556 = vunpack.c.h.b16 %v4380
    %v5557 = vunpack.c.l.b16 %v4381
    %v5558 = vunpack.c.h.b16 %v4381
    %v5559 = vunpack.c.l.b16 %v4382
    %v5560 = vunpack.c.h.b16 %v4382
    %v5561 = vunpack.c.l.b16 %v4383
    %v5562 = vunpack.c.h.b16 %v4383
    %v5563 = vunpack.c.l.b16 %v4384
    %v5564 = vunpack.c.h.b16 %v4384
    %v5565 = vunpack.c.l.b16 %v4385
    %v5566 = vunpack.c.h.b16 %v4385
    %v5567 = vunpack.c.l.b16 %v4386
    %v5568 = vunpack.c.h.b16 %v4386
    %v5569 = vunpack.c.l.b16 %v4387
    %v5570 = vunpack.c.h.b16 %v4387
    %v5571 = vunpack.c.l.b16 %v4388
    %v5572 = vunpack.c.h.b16 %v4388
    %v5573 = vpack.c.b16 %v4811, %v4805
    %v5574 = vpack.c.b16 %v4812, %v4806
    %v5575 = vpack.c.b16 %v4813, %v4807
    %v5576 = vpack.c.b16 %v4814, %v4808
    %v5577 = vpack.c.b16 %v4815, %v4809
    %v5578 = vpack.c.b16 %v4816, %v4810
    %v5579 = vpack.c.b16 %v4823, %v4817
    %v5580 = vpack.c.b16 %v4824, %v4818
    %v5581 = vpack.c.b16 %v4825, %v4819
    %v5582 = vpack.c.b16 %v4826, %v4820
    %v5583 = vpack.c.b16 %v4827, %v4821
    %v5584 = vpack.c.b16 %v4828, %v4822
    %v5585 = vpack.c.b16 %v4835, %v4829
    %v5586 = vpack.c.b16 %v4836, %v4830
    %v5587 = vpack.c.b16 %v4837, %v4831
    %v5588 = vpack.c.b16 %v4838, %v4832
    %v5589 = vpack.c.b16 %v4839, %v4833
    %v5590 = vpack.c.b16 %v4840, %v4834
    %v5591 = vpack.c.b16 %v4847, %v4841
    %v5592 = vpack.c.b16 %v4848, %v4842
    %v5593 = vpack.c.b16 %v4849, %v4843
    %v5594 = vpack.c.b16 %v4850, %v4844
    %v5595 = vpack.c.b16 %v4851, %v4845
    %v5596 = vpack.c.b16 %v4852, %v4846
    %v5597 = vpack.c.b16 %v4859, %v4853
    %v5598 = vpack.c.b16 %v4860, %v4854
    %v5599 = vpack.c.b16 %v4861, %v4855
    %v5600 = vpack.c.b16 %v4862, %v4856
    %v5601 = vpack.c.b16 %v4863, %v4857
    %v5602 = vpack.c.b16 %v4864, %v4858
    %v5603 = vpack.c.b16 %v4871, %v4865
    %v5604 = vpack.c.b16 %v4872, %v4866
    %v5605 = vpack.c.b16 %v4873, %v4867
    %v5606 = vpack.c.b16 %v4874, %v4868
    %v5607 = vpack.c.b16 %v4875, %v4869
    %v5608 = vpack.c.b16 %v4876, %v4870
    %v5609 = vpack.c.b16 %v4883, %v4877
    %v5610 = vpack.c.b16 %v4884, %v4878
    %v5611 = vpack.c.b16 %v4885, %v4879
    %v5612 = vpack.c.b16 %v4886, %v4880
    %v5613 = vpack.c.b16 %v4887, %v4881
    %v5614 = vpack.c.b16 %v4888, %v4882
    %v5615 = vpack.c.b16 %v4895, %v4889
    %v5616 = vpack.c.b16 %v4896, %v4890
    %v5617 = vpack.c.b16 %v4897, %v4891
    %v5618 = vpack.c.b16 %v4898, %v4892
    %v5619 = vpack.c.b16 %v4899, %v4893
    %v5620 = vpack.c.b16 %v4900, %v4894
    %v5621 = vpack.c.b16 %v4907, %v4901
    %v5622 = vpack.c.b16 %v4908, %v4902
    %v5623 = vpack.c.b16 %v4909, %v4903
    %v5624 = vpack.c.b16 %v4910, %v4904
    %v5625 = vpack.c.b16 %v4911, %v4905
    %v5626 = vpack.c.b16 %v4912, %v4906
    %v5627 = vpack.c.b16 %v4919, %v4913
    %v5628 = vpack.c.b16 %v4920, %v4914
    %v5629 = vpack.c.b16 %v4921, %v4915
    %v5630 = vpack.c.b16 %v4922, %v4916
    %v5631 = vpack.c.b16 %v4923, %v4917
    %v5632 = vpack.c.b16 %v4924, %v4918
    %v5633 = vpack.c.b16 %v4931, %v4925
    %v5634 = vpack.c.b16 %v4932, %v4926
    %v5635 = vpack.c.b16 %v4933, %v4927
    %v5636 = vpack.c.b16 %v4934, %v4928
    %v5637 = vpack.c.b16 %v4935, %v4929
    %v5638 = vpack.c.b16 %v4936, %v4930
    %v5639 = vpack.c.b16 %v4943, %v4937
    %v5640 = vpack.c.b16 %v4944, %v4938
    %v5641 = vpack.c.b16 %v4945, %v4939
    %v5642 = vpack.c.b16 %v4946, %v4940
    %v5643 = vpack.c.b16 %v4947, %v4941
    %v5644 = vpack.c.b16 %v4948, %v4942
    %v5645 = vpack.c.b16 %v4955, %v4949
    %v5646 = vpack.c.b16 %v4956, %v4950
    %v5647 = vpack.c.b16 %v4957, %v4951
    %v5648 = vpack.c.b16 %v4958, %v4952
    %v5649 = vpack.c.b16 %v4959, %v4953
    %v5650 = vpack.c.b16 %v4960, %v4954
    %v5651 = vpack.c.b16 %v4967, %v4961
    %v5652 = vpack.c.b16 %v4968, %v4962
    %v5653 = vpack.c.b16 %v4969, %v4963
    %v5654 = vpack.c.b16 %v4970, %v4964
    %v5655 = vpack.c.b16 %v4971, %v4965
    %v5656 = vpack.c.b16 %v4972, %v4966
    %v5657 = vpack.c.b16 %v4979, %v4973
    %v5658 = vpack.c.b16 %v4980, %v4974
    %v5659 = vpack.c.b16 %v4981, %v4975
    %v5660 = vpack.c.b16 %v4982, %v4976
    %v5661 = vpack.c.b16 %v4983, %v4977
    %v5662 = vpack.c.b16 %v4984, %v4978
    %v5663 = vpack.c.b16 %v4991, %v4985
    %v5664 = vpack.c.b16 %v4992, %v4986
    %v5665 = vpack.c.b16 %v4993, %v4987
    %v5666 = vpack.c.b16 %v4994, %v4988
    %v5667 = vpack.c.b16 %v4995, %v4989
    %v5668 = vpack.c.b16 %v4996, %v4990
    %v5669 = vpack.c.b16 %v5003, %v4997
    %v5670 = vpack.c.b16 %v5004, %v4998
    %v5671 = vpack.c.b16 %v5005, %v4999
    %v5672 = vpack.c.b16 %v5006, %v5000
    %v5673 = vpack.c.b16 %v5007, %v5001
    %v5674 = vpack.c.b16 %v5008, %v5002
    %v5675 = vpack.c.b16 %v5015, %v5009
    %v5676 = vpack.c.b16 %v5016, %v5010
    %v5677 = vpack.c.b16 %v5017, %v5011
    %v5678 = vpack.c.b16 %v5018, %v5012
    %v5679 = vpack.c.b16 %v5019, %v5013
    %v5680 = vpack.c.b16 %v5020, %v5014
    %v5681 = vpack.c.b16 %v5027, %v5021
    %v5682 = vpack.c.b16 %v5028, %v5022
    %v5683 = vpack.c.b16 %v5029, %v5023
    %v5684 = vpack.c.b16 %v5030, %v5024
    %v5685 = vpack.c.b16 %v5031, %v5025
    %v5686 = vpack.c.b16 %v5032, %v5026
    %v5687 = vpack.c.b16 %v5039, %v5033
    %v5688 = vpack.c.b16 %v5040, %v5034
    %v5689 = vpack.c.b16 %v5041, %v5035
    %v5690 = vpack.c.b16 %v5042, %v5036
    %v5691 = vpack.c.b16 %v5043, %v5037
    %v5692 = vpack.c.b16 %v5044, %v5038
    %v5693 = vpack.c.b16 %v5051, %v5045
    %v5694 = vpack.c.b16 %v5052, %v5046
    %v5695 = vpack.c.b16 %v5053, %v5047
    %v5696 = vpack.c.b16 %v5054, %v5048
    %v5697 = vpack.c.b16 %v5055, %v5049
    %v5698 = vpack.c.b16 %v5056, %v5050
    %v5699 = vpack.c.b16 %v5063, %v5057
    %v5700 = vpack.c.b16 %v5064, %v5058
    %v5701 = vpack.c.b16 %v5065, %v5059
    %v5702 = vpack.c.b16 %v5066, %v5060
    %v5703 = vpack.c.b16 %v5067, %v5061
    %v5704 = vpack.c.b16 %v5068, %v5062
    %v5705 = vpack.c.b16 %v5075, %v5069
    %v5706 = vpack.c.b16 %v5076, %v5070
    %v5707 = vpack.c.b16 %v5077, %v5071
    %v5708 = vpack.c.b16 %v5078, %v5072
    %v5709 = vpack.c.b16 %v5079, %v5073
    %v5710 = vpack.c.b16 %v5080, %v5074
    %v5711 = vpack.c.b16 %v5087, %v5081
    %v5712 = vpack.c.b16 %v5088, %v5082
    %v5713 = vpack.c.b16 %v5089, %v5083
    %v5714 = vpack.c.b16 %v5090, %v5084
    %v5715 = vpack.c.b16 %v5091, %v5085
    %v5716 = vpack.c.b16 %v5092, %v5086
    %v5717 = vpack.c.b16 %v5099, %v5093
    %v5718 = vpack.c.b16 %v5100, %v5094
    %v5719 = vpack.c.b16 %v5101, %v5095
    %v5720 = vpack.c.b16 %v5102, %v5096
    %v5721 = vpack.c.b16 %v5103, %v5097
    %v5722 = vpack.c.b16 %v5104, %v5098
    %v5723 = vpack.c.b16 %v5111, %v5105
    %v5724 = vpack.c.b16 %v5112, %v5106
    %v5725 = vpack.c.b16 %v5113, %v5107
    %v5726 = vpack.c.b16 %v5114, %v5108
    %v5727 = vpack.c.b16 %v5115, %v5109
    %v5728 = vpack.c.b16 %v5116, %v5110
    %v5729 = vpack.c.b16 %v5123, %v5117
    %v5730 = vpack.c.b16 %v5124, %v5118
    %v5731 = vpack.c.b16 %v5125, %v5119
    %v5732 = vpack.c.b16 %v5126, %v5120
    %v5733 = vpack.c.b16 %v5127, %v5121
    %v5734 = vpack.c.b16 %v5128, %v5122
    %v5735 = vpack.c.b16 %v5135, %v5129
    %v5736 = vpack.c.b16 %v5136, %v5130
    %v5737 = vpack.c.b16 %v5137, %v5131
    %v5738 = vpack.c.b16 %v5138, %v5132
    %v5739 = vpack.c.b16 %v5139, %v5133
    %v5740 = vpack.c.b16 %v5140, %v5134
    %v5741 = vpack.c.b16 %v5147, %v5141
    %v5742 = vpack.c.b16 %v5148, %v5142
    %v5743 = vpack.c.b16 %v5149, %v5143
    %v5744 = vpack.c.b16 %v5150, %v5144
    %v5745 = vpack.c.b16 %v5151, %v5145
    %v5746 = vpack.c.b16 %v5152, %v5146
    %v5747 = vpack.c.b16 %v5159, %v5153
    %v5748 = vpack.c.b16 %v5160, %v5154
    %v5749 = vpack.c.b16 %v5161, %v5155
    %v5750 = vpack.c.b16 %v5162, %v5156
    %v5751 = vpack.c.b16 %v5163, %v5157
    %v5752 = vpack.c.b16 %v5164, %v5158
    %v5753 = vpack.c.b16 %v5171, %v5165
    %v5754 = vpack.c.b16 %v5172, %v5166
    %v5755 = vpack.c.b16 %v5173, %v5167
    %v5756 = vpack.c.b16 %v5174, %v5168
    %v5757 = vpack.c.b16 %v5175, %v5169
    %v5758 = vpack.c.b16 %v5176, %v5170
    %v5759 = vpack.c.b16 %v5183, %v5177
    %v5760 = vpack.c.b16 %v5184, %v5178
    %v5761 = vpack.c.b16 %v5185, %v5179
    %v5762 = vpack.c.b16 %v5186, %v5180
    %v5763 = vpack.c.b16 %v5187, %v5181
    %v5764 = vpack.c.b16 %v5188, %v5182
    %v5765 = vpack.c.b16 %v5195, %v5189
    %v5766 = vpack.c.b16 %v5196, %v5190
    %v5767 = vpack.c.b16 %v5197, %v5191
    %v5768 = vpack.c.b16 %v5198, %v5192
    %v5769 = vpack.c.b16 %v5199, %v5193
    %v5770 = vpack.c.b16 %v5200, %v5194
    %v5771 = vpack.c.b16 %v5207, %v5201
    %v5772 = vpack.c.b16 %v5208, %v5202
    %v5773 = vpack.c.b16 %v5209, %v5203
    %v5774 = vpack.c.b16 %v5210, %v5204
    %v5775 = vpack.c.b16 %v5211, %v5205
    %v5776 = vpack.c.b16 %v5212, %v5206
    %v5777 = vpack.c.b16 %v5219, %v5213
    %v5778 = vpack.c.b16 %v5220, %v5214
    %v5779 = vpack.c.b16 %v5221, %v5215
    %v5780 = vpack.c.b16 %v5222, %v5216
    %v5781 = vpack.c.b16 %v5223, %v5217
    %v5782 = vpack.c.b16 %v5224, %v5218
    %v5783 = vpack.c.b16 %v5231, %v5225
    %v5784 = vpack.c.b16 %v5232, %v5226
    %v5785 = vpack.c.b16 %v5233, %v5227
    %v5786 = vpack.c.b16 %v5234, %v5228
    %v5787 = vpack.c.b16 %v5235, %v5229
    %v5788 = vpack.c.b16 %v5236, %v5230
    %v5789 = vpack.c.b16 %v5243, %v5237
    %v5790 = vpack.c.b16 %v5244, %v5238
    %v5791 = vpack.c.b16 %v5245, %v5239
    %v5792 = vpack.c.b16 %v5246, %v5240
    %v5793 = vpack.c.b16 %v5247, %v5241
    %v5794 = vpack.c.b16 %v5248, %v5242
    %v5795 = vpack.c.b16 %v5255, %v5249
    %v5796 = vpack.c.b16 %v5256, %v5250
    %v5797 = vpack.c.b16 %v5257, %v5251
    %v5798 = vpack.c.b16 %v5258, %v5252
    %v5799 = vpack.c.b16 %v5259, %v5253
    %v5800 = vpack.c.b16 %v5260, %v5254
    %v5801 = vpack.c.b16 %v5267, %v5261
    %v5802 = vpack.c.b16 %v5268, %v5262
    %v5803 = vpack.c.b16 %v5269, %v5263
    %v5804 = vpack.c.b16 %v5270, %v5264
    %v5805 = vpack.c.b16 %v5271, %v5265
    %v5806 = vpack.c.b16 %v5272, %v5266
    %v5807 = vpack.c.b16 %v5279, %v5273
    %v5808 = vpack.c.b16 %v5280, %v5274
    %v5809 = vpack.c.b16 %v5281, %v5275
    %v5810 = vpack.c.b16 %v5282, %v5276
    %v5811 = vpack.c.b16 %v5283, %v5277
    %v5812 = vpack.c.b16 %v5284, %v5278
    %v5813 = vpack.c.b16 %v5291, %v5285
    %v5814 = vpack.c.b16 %v5292, %v5286
    %v5815 = vpack.c.b16 %v5293, %v5287
    %v5816 = vpack.c.b16 %v5294, %v5288
    %v5817 = vpack.c.b16 %v5295, %v5289
    %v5818 = vpack.c.b16 %v5296, %v5290
    %v5819 = vpack.c.b16 %v5303, %v5297
    %v5820 = vpack.c.b16 %v5304, %v5298
    %v5821 = vpack.c.b16 %v5305, %v5299
    %v5822 = vpack.c.b16 %v5306, %v5300
    %v5823 = vpack.c.b16 %v5307, %v5301
    %v5824 = vpack.c.b16 %v5308, %v5302
    %v5825 = vpack.c.b16 %v5315, %v5309
    %v5826 = vpack.c.b16 %v5316, %v5310
    %v5827 = vpack.c.b16 %v5317, %v5311
    %v5828 = vpack.c.b16 %v5318, %v5312
    %v5829 = vpack.c.b16 %v5319, %v5313
    %v5830 = vpack.c.b16 %v5320, %v5314
    %v5831 = vpack.c.b16 %v5327, %v5321
    %v5832 = vpack.c.b16 %v5328, %v5322
    %v5833 = vpack.c.b16 %v5329, %v5323
    %v5834 = vpack.c.b16 %v5330, %v5324
    %v5835 = vpack.c.b16 %v5331, %v5325
    %v5836 = vpack.c.b16 %v5332, %v5326
    %v5837 = vpack.c.b16 %v5339, %v5333
    %v5838 = vpack.c.b16 %v5340, %v5334
    %v5839 = vpack.c.b16 %v5341, %v5335
    %v5840 = vpack.c.b16 %v5342, %v5336
    %v5841 = vpack.c.b16 %v5343, %v5337
    %v5842 = vpack.c.b16 %v5344, %v5338
    %v5843 = vpack.c.b16 %v5351, %v5345
    %v5844 = vpack.c.b16 %v5352, %v5346
    %v5845 = vpack.c.b16 %v5353, %v5347
    %v5846 = vpack.c.b16 %v5354, %v5348
    %v5847 = vpack.c.b16 %v5355, %v5349
    %v5848 = vpack.c.b16 %v5356, %v5350
    %v5849 = vpack.c.b16 %v5363, %v5357
    %v5850 = vpack.c.b16 %v5364, %v5358
    %v5851 = vpack.c.b16 %v5365, %v5359
    %v5852 = vpack.c.b16 %v5366, %v5360
    %v5853 = vpack.c.b16 %v5367, %v5361
    %v5854 = vpack.c.b16 %v5368, %v5362
    %v5855 = vpack.c.b16 %v5375, %v5369
    %v5856 = vpack.c.b16 %v5376, %v5370
    %v5857 = vpack.c.b16 %v5377, %v5371
    %v5858 = vpack.c.b16 %v5378, %v5372
    %v5859 = vpack.c.b16 %v5379, %v5373
    %v5860 = vpack.c.b16 %v5380, %v5374
    %v5861 = vpack.c.b16 %v5387, %v5381
    %v5862 = vpack.c.b16 %v5388, %v5382
    %v5863 = vpack.c.b16 %v5389, %v5383
    %v5864 = vpack.c.b16 %v5390, %v5384
    %v5865 = vpack.c.b16 %v5391, %v5385
    %v5866 = vpack.c.b16 %v5392, %v5386
    %v5867 = vpack.c.b16 %v5399, %v5393
    %v5868 = vpack.c.b16 %v5400, %v5394
    %v5869 = vpack.c.b16 %v5401, %v5395
    %v5870 = vpack.c.b16 %v5402, %v5396
    %v5871 = vpack.c.b16 %v5403, %v5397
    %v5872 = vpack.c.b16 %v5404, %v5398
    %v5873 = vpack.c.b16 %v5411, %v5405
    %v5874 = vpack.c.b16 %v5412, %v5406
    %v5875 = vpack.c.b16 %v5413, %v5407
    %v5876 = vpack.c.b16 %v5414, %v5408
    %v5877 = vpack.c.b16 %v5415, %v5409
    %v5878 = vpack.c.b16 %v5416, %v5410
    %v5879 = vpack.c.b16 %v5423, %v5417
    %v5880 = vpack.c.b16 %v5424, %v5418
    %v5881 = vpack.c.b16 %v5425, %v5419
    %v5882 = vpack.c.b16 %v5426, %v5420
    %v5883 = vpack.c.b16 %v5427, %v5421
    %v5884 = vpack.c.b16 %v5428, %v5422
    %v5885 = vpack.c.b16 %v5435, %v5429
    %v5886 = vpack.c.b16 %v5436, %v5430
    %v5887 = vpack.c.b16 %v5437, %v5431
    %v5888 = vpack.c.b16 %v5438, %v5432
    %v5889 = vpack.c.b16 %v5439, %v5433
    %v5890 = vpack.c.b16 %v5440, %v5434
    %v5891 = vpack.c.b16 %v5447, %v5441
    %v5892 = vpack.c.b16 %v5448, %v5442
    %v5893 = vpack.c.b16 %v5449, %v5443
    %v5894 = vpack.c.b16 %v5450, %v5444
    %v5895 = vpack.c.b16 %v5451, %v5445
    %v5896 = vpack.c.b16 %v5452, %v5446
    %v5897 = vpack.c.b16 %v5459, %v5453
    %v5898 = vpack.c.b16 %v5460, %v5454
    %v5899 = vpack.c.b16 %v5461, %v5455
    %v5900 = vpack.c.b16 %v5462, %v5456
    %v5901 = vpack.c.b16 %v5463, %v5457
    %v5902 = vpack.c.b16 %v5464, %v5458
    %v5903 = vpack.c.b16 %v5471, %v5465
    %v5904 = vpack.c.b16 %v5472, %v5466
    %v5905 = vpack.c.b16 %v5473, %v5467
    %v5906 = vpack.c.b16 %v5474, %v5468
    %v5907 = vpack.c.b16 %v5475, %v5469
    %v5908 = vpack.c.b16 %v5476, %v5470
    %v5909 = vpack.c.b16 %v5483, %v5477
    %v5910 = vpack.c.b16 %v5484, %v5478
    %v5911 = vpack.c.b16 %v5485, %v5479
    %v5912 = vpack.c.b16 %v5486, %v5480
    %v5913 = vpack.c.b16 %v5487, %v5481
    %v5914 = vpack.c.b16 %v5488, %v5482
    %v5915 = vpack.c.b16 %v5495, %v5489
    %v5916 = vpack.c.b16 %v5496, %v5490
    %v5917 = vpack.c.b16 %v5497, %v5491
    %v5918 = vpack.c.b16 %v5498, %v5492
    %v5919 = vpack.c.b16 %v5499, %v5493
    %v5920 = vpack.c.b16 %v5500, %v5494
    %v5921 = vpack.c.b16 %v5507, %v5501
    %v5922 = vpack.c.b16 %v5508, %v5502
    %v5923 = vpack.c.b16 %v5509, %v5503
    %v5924 = vpack.c.b16 %v5510, %v5504
    %v5925 = vpack.c.b16 %v5511, %v5505
    %v5926 = vpack.c.b16 %v5512, %v5506
    %v5927 = vpack.c.b16 %v5519, %v5513
    %v5928 = vpack.c.b16 %v5520, %v5514
    %v5929 = vpack.c.b16 %v5521, %v5515
    %v5930 = vpack.c.b16 %v5522, %v5516
    %v5931 = vpack.c.b16 %v5523, %v5517
    %v5932 = vpack.c.b16 %v5524, %v5518
    %v5933 = vpack.c.b16 %v5531, %v5525
    %v5934 = vpack.c.b16 %v5532, %v5526
    %v5935 = vpack.c.b16 %v5533, %v5527
    %v5936 = vpack.c.b16 %v5534, %v5528
    %v5937 = vpack.c.b16 %v5535, %v5529
    %v5938 = vpack.c.b16 %v5536, %v5530
    %v5939 = vpack.c.b16 %v5543, %v5537
    %v5940 = vpack.c.b16 %v5544, %v5538
    %v5941 = vpack.c.b16 %v5545, %v5539
    %v5942 = vpack.c.b16 %v5546, %v5540
    %v5943 = vpack.c.b16 %v5547, %v5541
    %v5944 = vpack.c.b16 %v5548, %v5542
    %v5945 = vpack.c.b16 %v5555, %v5549
    %v5946 = vpack.c.b16 %v5556, %v5550
    %v5947 = vpack.c.b16 %v5557, %v5551
    %v5948 = vpack.c.b16 %v5558, %v5552
    %v5949 = vpack.c.b16 %v5559, %v5553
    %v5950 = vpack.c.b16 %v5560, %v5554
    %v5951 = vpack.c.b16 %v5567, %v5561
    %v5952 = vpack.c.b16 %v5568, %v5562
    %v5953 = vpack.c.b16 %v5569, %v5563
    %v5954 = vpack.c.b16 %v5570, %v5564
    %v5955 = vpack.c.b16 %v5571, %v5565
    %v5956 = vpack.c.b16 %v5572, %v5566
    %6341 = vmatprep.subr.bf16.mxu0 %v5574
    %6342 = vmatpush1.bf16.msra.mxu0 %v5573
    %6343 = vmatprep.subr.bf16.mxu0 %v5580
    %6344 = vmatpush1.bf16.msra.mxu0 %v5579
    %6345 = vmatprep.subr.bf16.mxu0 %v5586
    %6346 = vmatpush1.bf16.msra.mxu0 %v5585
    %6347 = vmatprep.subr.bf16.mxu0 %v5592
    %6348 = vmatpush1.bf16.msra.mxu0 %v5591
    %6349 = vmatprep.subr.bf16.mxu0 %v5598
    %6350 = vmatpush1.bf16.msra.mxu0 %v5597
    %6351 = vmatprep.subr.bf16.mxu0 %v5604
    %6352 = vmatpush1.bf16.msra.mxu0 %v5603
    %6353 = vmatprep.subr.bf16.mxu0 %v5610
    %6354 = vmatpush1.bf16.msra.mxu0 %v5609
    %6355 = vmatprep.subr.bf16.mxu0 %v5616
    %6356 = vmatpush1.bf16.msra.mxu0 %v5615
    %6357 = vmatprep.subr.bf16.mxu0 %v5622
    %6358 = vmatpush1.bf16.msra.mxu0 %v5621
    %6359 = vmatprep.subr.bf16.mxu0 %v5628
    %6360 = vmatpush1.bf16.msra.mxu0 %v5627
    %6361 = vmatprep.subr.bf16.mxu0 %v5634
    %6362 = vmatpush1.bf16.msra.mxu0 %v5633
    %6363 = vmatprep.subr.bf16.mxu0 %v5640
    %6364 = vmatpush1.bf16.msra.mxu0 %v5639
    %6365 = vmatprep.subr.bf16.mxu0 %v5646
    %6366 = vmatpush1.bf16.msra.mxu0 %v5645
    %6367 = vmatprep.subr.bf16.mxu0 %v5652
    %6368 = vmatpush1.bf16.msra.mxu0 %v5651
    %6369 = vmatprep.subr.bf16.mxu0 %v5658
    %6370 = vmatpush1.bf16.msra.mxu0 %v5657
    %6371 = vmatprep.subr.bf16.mxu0 %v5664
    %6372 = vmatpush1.bf16.msra.mxu0 %v5663
    %6373 = vmatprep.mubr.bf16.mxu0 %v3998
    %6374 = vmatmul.mubr.bf16.gmra.mrb[0].mxu0 %v3997
    %v6375 = vpop.f32.mrb[0].mxu0
    %v6376 = vadd.f32 %v4394, %v6375
    %v6377 = vpop.f32.mrb[0].mxu0
    %v6378 = vadd.f32 %v4398, %v6377
    %v6379 = vpop.f32.mrb[0].mxu0
    %v6380 = vpop.f32.mrb[0].mxu0
    %6381 = vdwg.mxu0
    %6382 = vmatprep.subr.bf16.mxu0 %v5670
    %6383 = vmatpush1.bf16.msra.mxu0 %v5669
    %6384 = vmatprep.subr.bf16.mxu0 %v5676
    %6385 = vmatpush1.bf16.msra.mxu0 %v5675
    %6386 = vmatprep.subr.bf16.mxu0 %v5682
    %6387 = vmatpush1.bf16.msra.mxu0 %v5681
    %6388 = vmatprep.subr.bf16.mxu0 %v5688
    %6389 = vmatpush1.bf16.msra.mxu0 %v5687
    %6390 = vmatprep.subr.bf16.mxu0 %v5694
    %6391 = vmatpush1.bf16.msra.mxu0 %v5693
    %6392 = vmatprep.subr.bf16.mxu0 %v5700
    %6393 = vmatpush1.bf16.msra.mxu0 %v5699
    %6394 = vmatprep.subr.bf16.mxu0 %v5706
    %6395 = vmatpush1.bf16.msra.mxu0 %v5705
    %6396 = vmatprep.subr.bf16.mxu0 %v5712
    %6397 = vmatpush1.bf16.msra.mxu0 %v5711
    %6398 = vmatprep.subr.bf16.mxu0 %v5718
    %6399 = vmatpush1.bf16.msra.mxu0 %v5717
    %6400 = vmatprep.subr.bf16.mxu0 %v5724
    %6401 = vmatpush1.bf16.msra.mxu0 %v5723
    %6402 = vmatprep.subr.bf16.mxu0 %v5730
    %6403 = vmatpush1.bf16.msra.mxu0 %v5729
    %6404 = vmatprep.subr.bf16.mxu0 %v5736
    %6405 = vmatpush1.bf16.msra.mxu0 %v5735
    %6406 = vmatprep.subr.bf16.mxu0 %v5742
    %6407 = vmatpush1.bf16.msra.mxu0 %v5741
    %6408 = vmatprep.subr.bf16.mxu0 %v5748
    %6409 = vmatpush1.bf16.msra.mxu0 %v5747
    %6410 = vmatprep.subr.bf16.mxu0 %v5754
    %6411 = vmatpush1.bf16.msra.mxu0 %v5753
    %6412 = vmatprep.subr.bf16.mxu0 %v5760
    %6413 = vmatpush1.bf16.msra.mxu0 %v5759
    %6414 = vmatprep.mubr.bf16.mxu0 %v4000
    %6415 = vmatmul.mubr.bf16.gmra.mrb[0].mxu0 %v3999
    %v6416 = vpop.f32.mrb[0].mxu0
    %v6417 = vadd.f32 %v6376, %v6416
    %v6418 = vpop.f32.mrb[0].mxu0
    %v6419 = vadd.f32 %v6378, %v6418
    %v6420 = vpop.f32.mrb[0].mxu0
    %v6421 = vpop.f32.mrb[0].mxu0
    %6422 = vdwg.mxu0
    %6423 = vmatprep.subr.bf16.mxu0 %v5766
    %6424 = vmatpush1.bf16.msra.mxu0 %v5765
    %6425 = vmatprep.subr.bf16.mxu0 %v5772
    %6426 = vmatpush1.bf16.msra.mxu0 %v5771
    %6427 = vmatprep.subr.bf16.mxu0 %v5778
    %6428 = vmatpush1.bf16.msra.mxu0 %v5777
    %6429 = vmatprep.subr.bf16.mxu0 %v5784
    %6430 = vmatpush1.bf16.msra.mxu0 %v5783
    %6431 = vmatprep.subr.bf16.mxu0 %v5790
    %6432 = vmatpush1.bf16.msra.mxu0 %v5789
    %6433 = vmatprep.subr.bf16.mxu0 %v5796
    %6434 = vmatpush1.bf16.msra.mxu0 %v5795
    %6435 = vmatprep.subr.bf16.mxu0 %v5802
    %6436 = vmatpush1.bf16.msra.mxu0 %v5801
    %6437 = vmatprep.subr.bf16.mxu0 %v5808
    %6438 = vmatpush1.bf16.msra.mxu0 %v5807
    %6439 = vmatprep.subr.bf16.mxu0 %v5814
    %6440 = vmatpush1.bf16.msra.mxu0 %v5813
    %6441 = vmatprep.subr.bf16.mxu0 %v5820
    %6442 = vmatpush1.bf16.msra.mxu0 %v5819
    %6443 = vmatprep.subr.bf16.mxu0 %v5826
    %6444 = vmatpush1.bf16.msra.mxu0 %v5825
    %6445 = vmatprep.subr.bf16.mxu0 %v5832
    %6446 = vmatpush1.bf16.msra.mxu0 %v5831
    %6447 = vmatprep.subr.bf16.mxu0 %v5838
    %6448 = vmatpush1.bf16.msra.mxu0 %v5837
    %6449 = vmatprep.subr.bf16.mxu0 %v5844
    %6450 = vmatpush1.bf16.msra.mxu0 %v5843
    %6451 = vmatprep.subr.bf16.mxu0 %v5850
    %6452 = vmatpush1.bf16.msra.mxu0 %v5849
    %6453 = vmatprep.subr.bf16.mxu0 %v5856
    %6454 = vmatpush1.bf16.msra.mxu0 %v5855
    %6455 = vmatprep.mubr.bf16.mxu0 %v4002
    %6456 = vmatmul.mubr.bf16.gmra.mrb[0].mxu0 %v4001
    %v6457 = vpop.f32.mrb[0].mxu0
    %v6458 = vadd.f32 %v6417, %v6457
    %v6459 = vpop.f32.mrb[0].mxu0
    %v6460 = vadd.f32 %v6419, %v6459
    %v6461 = vpop.f32.mrb[0].mxu0
    %v6462 = vpop.f32.mrb[0].mxu0
    %6463 = vdwg.mxu0
    %6464 = vmatprep.subr.bf16.mxu0 %v5862
    %6465 = vmatpush1.bf16.msra.mxu0 %v5861
    %6466 = vmatprep.subr.bf16.mxu0 %v5868
    %6467 = vmatpush1.bf16.msra.mxu0 %v5867
    %6468 = vmatprep.subr.bf16.mxu0 %v5874
    %6469 = vmatpush1.bf16.msra.mxu0 %v5873
    %6470 = vmatprep.subr.bf16.mxu0 %v5880
    %6471 = vmatpush1.bf16.msra.mxu0 %v5879
    %6472 = vmatprep.subr.bf16.mxu0 %v5886
    %6473 = vmatpush1.bf16.msra.mxu0 %v5885
    %6474 = vmatprep.subr.bf16.mxu0 %v5892
    %6475 = vmatpush1.bf16.msra.mxu0 %v5891
    %6476 = vmatprep.subr.bf16.mxu0 %v5898
    %6477 = vmatpush1.bf16.msra.mxu0 %v5897
    %6478 = vmatprep.subr.bf16.mxu0 %v5904
    %6479 = vmatpush1.bf16.msra.mxu0 %v5903
    %6480 = vmatprep.subr.bf16.mxu0 %v5910
    %6481 = vmatpush1.bf16.msra.mxu0 %v5909
    %6482 = vmatprep.subr.bf16.mxu0 %v5916
    %6483 = vmatpush1.bf16.msra.mxu0 %v5915
    %6484 = vmatprep.subr.bf16.mxu0 %v5922
    %6485 = vmatpush1.bf16.msra.mxu0 %v5921
    %6486 = vmatprep.subr.bf16.mxu0 %v5928
    %6487 = vmatpush1.bf16.msra.mxu0 %v5927
    %6488 = vmatprep.subr.bf16.mxu0 %v5934
    %6489 = vmatpush1.bf16.msra.mxu0 %v5933
    %6490 = vmatprep.subr.bf16.mxu0 %v5940
    %6491 = vmatpush1.bf16.msra.mxu0 %v5939
    %6492 = vmatprep.subr.bf16.mxu0 %v5946
    %6493 = vmatpush1.bf16.msra.mxu0 %v5945
    %6494 = vmatprep.subr.bf16.mxu0 %v5952
    %6495 = vmatpush1.bf16.msra.mxu0 %v5951
    %6496 = vmatprep.mubr.bf16.mxu0 %v4004
    %6497 = vmatmul.mubr.bf16.gmra.mrb[0].mxu0 %v4003
    %v6498 = vpop.f32.mrb[0].mxu0
    %v6499 = vadd.f32 %v6458, %v6498
    %v6500 = vpop.f32.mrb[0].mxu0
    %v6501 = vadd.f32 %v6460, %v6500
    %v6502 = vpop.f32.mrb[0].mxu0
    %v6503 = vpop.f32.mrb[0].mxu0
    %6504 = vdwg.mxu0
    %6505 = vmatprep.subr.bf16.mxu0 %v5576
    %6506 = vmatpush1.bf16.msra.mxu0 %v5575
    %6507 = vmatprep.subr.bf16.mxu0 %v5582
    %6508 = vmatpush1.bf16.msra.mxu0 %v5581
    %6509 = vmatprep.subr.bf16.mxu0 %v5588
    %6510 = vmatpush1.bf16.msra.mxu0 %v5587
    %6511 = vmatprep.subr.bf16.mxu0 %v5594
    %6512 = vmatpush1.bf16.msra.mxu0 %v5593
    %6513 = vmatprep.subr.bf16.mxu0 %v5600
    %6514 = vmatpush1.bf16.msra.mxu0 %v5599
    %6515 = vmatprep.subr.bf16.mxu0 %v5606
    %6516 = vmatpush1.bf16.msra.mxu0 %v5605
    %6517 = vmatprep.subr.bf16.mxu0 %v5612
    %6518 = vmatpush1.bf16.msra.mxu0 %v5611
    %6519 = vmatprep.subr.bf16.mxu0 %v5618
    %6520 = vmatpush1.bf16.msra.mxu0 %v5617
    %6521 = vmatprep.subr.bf16.mxu0 %v5624
    %6522 = vmatpush1.bf16.msra.mxu0 %v5623
    %6523 = vmatprep.subr.bf16.mxu0 %v5630
    %6524 = vmatpush1.bf16.msra.mxu0 %v5629
    %6525 = vmatprep.subr.bf16.mxu0 %v5636
    %6526 = vmatpush1.bf16.msra.mxu0 %v5635
    %6527 = vmatprep.subr.bf16.mxu0 %v5642
    %6528 = vmatpush1.bf16.msra.mxu0 %v5641
    %6529 = vmatprep.subr.bf16.mxu0 %v5648
    %6530 = vmatpush1.bf16.msra.mxu0 %v5647
    %6531 = vmatprep.subr.bf16.mxu0 %v5654
    %6532 = vmatpush1.bf16.msra.mxu0 %v5653
    %6533 = vmatprep.subr.bf16.mxu0 %v5660
    %6534 = vmatpush1.bf16.msra.mxu0 %v5659
    %6535 = vmatprep.subr.bf16.mxu0 %v5666
    %6536 = vmatpush1.bf16.msra.mxu0 %v5665
    %6537 = vmatprep.mubr.bf16.mxu0 %v3998
    %6538 = vmatmul.mubr.bf16.gmra.mrb[0].mxu0 %v3997
    %v6539 = vpop.f32.mrb[0].mxu0
    %v6540 = vadd.f32 %v4402, %v6539
    %v6541 = vpop.f32.mrb[0].mxu0
    %v6542 = vadd.f32 %v4406, %v6541
    %v6543 = vpop.f32.mrb[0].mxu0
    %v6544 = vpop.f32.mrb[0].mxu0
    %6545 = vdwg.mxu0
    %6546 = vmatprep.subr.bf16.mxu0 %v5672
    %6547 = vmatpush1.bf16.msra.mxu0 %v5671
    %6548 = vmatprep.subr.bf16.mxu0 %v5678
    %6549 = vmatpush1.bf16.msra.mxu0 %v5677
    %6550 = vmatprep.subr.bf16.mxu0 %v5684
    %6551 = vmatpush1.bf16.msra.mxu0 %v5683
    %6552 = vmatprep.subr.bf16.mxu0 %v5690
    %6553 = vmatpush1.bf16.msra.mxu0 %v5689
    %6554 = vmatprep.subr.bf16.mxu0 %v5696
    %6555 = vmatpush1.bf16.msra.mxu0 %v5695
    %6556 = vmatprep.subr.bf16.mxu0 %v5702
    %6557 = vmatpush1.bf16.msra.mxu0 %v5701
    %6558 = vmatprep.subr.bf16.mxu0 %v5708
    %6559 = vmatpush1.bf16.msra.mxu0 %v5707
    %6560 = vmatprep.subr.bf16.mxu0 %v5714
    %6561 = vmatpush1.bf16.msra.mxu0 %v5713
    %6562 = vmatprep.subr.bf16.mxu0 %v5720
    %6563 = vmatpush1.bf16.msra.mxu0 %v5719
    %6564 = vmatprep.subr.bf16.mxu0 %v5726
    %6565 = vmatpush1.bf16.msra.mxu0 %v5725
    %6566 = vmatprep.subr.bf16.mxu0 %v5732
    %6567 = vmatpush1.bf16.msra.mxu0 %v5731
    %6568 = vmatprep.subr.bf16.mxu0 %v5738
    %6569 = vmatpush1.bf16.msra.mxu0 %v5737
    %6570 = vmatprep.subr.bf16.mxu0 %v5744
    %6571 = vmatpush1.bf16.msra.mxu0 %v5743
    %6572 = vmatprep.subr.bf16.mxu0 %v5750
    %6573 = vmatpush1.bf16.msra.mxu0 %v5749
    %6574 = vmatprep.subr.bf16.mxu0 %v5756
    %6575 = vmatpush1.bf16.msra.mxu0 %v5755
    %6576 = vmatprep.subr.bf16.mxu0 %v5762
    %6577 = vmatpush1.bf16.msra.mxu0 %v5761
    %6578 = vmatprep.mubr.bf16.mxu0 %v4000
    %6579 = vmatmul.mubr.bf16.gmra.mrb[0].mxu0 %v3999
    %v6580 = vpop.f32.mrb[0].mxu0
    %v6581 = vadd.f32 %v6540, %v6580
    %v6582 = vpop.f32.mrb[0].mxu0
    %v6583 = vadd.f32 %v6542, %v6582
    %v6584 = vpop.f32.mrb[0].mxu0
    %v6585 = vpop.f32.mrb[0].mxu0
    %6586 = vdwg.mxu0
    %6587 = vmatprep.subr.bf16.mxu0 %v5768
    %6588 = vmatpush1.bf16.msra.mxu0 %v5767
    %6589 = vmatprep.subr.bf16.mxu0 %v5774
    %6590 = vmatpush1.bf16.msra.mxu0 %v5773
    %6591 = vmatprep.subr.bf16.mxu0 %v5780
    %6592 = vmatpush1.bf16.msra.mxu0 %v5779
    %6593 = vmatprep.subr.bf16.mxu0 %v5786
    %6594 = vmatpush1.bf16.msra.mxu0 %v5785
    %6595 = vmatprep.subr.bf16.mxu0 %v5792
    %6596 = vmatpush1.bf16.msra.mxu0 %v5791
    %6597 = vmatprep.subr.bf16.mxu0 %v5798
    %6598 = vmatpush1.bf16.msra.mxu0 %v5797
    %6599 = vmatprep.subr.bf16.mxu0 %v5804
    %6600 = vmatpush1.bf16.msra.mxu0 %v5803
    %6601 = vmatprep.subr.bf16.mxu0 %v5810
    %6602 = vmatpush1.bf16.msra.mxu0 %v5809
    %6603 = vmatprep.subr.bf16.mxu0 %v5816
    %6604 = vmatpush1.bf16.msra.mxu0 %v5815
    %6605 = vmatprep.subr.bf16.mxu0 %v5822
    %6606 = vmatpush1.bf16.msra.mxu0 %v5821
    %6607 = vmatprep.subr.bf16.mxu0 %v5828
    %6608 = vmatpush1.bf16.msra.mxu0 %v5827
    %6609 = vmatprep.subr.bf16.mxu0 %v5834
    %6610 = vmatpush1.bf16.msra.mxu0 %v5833
    %6611 = vmatprep.subr.bf16.mxu0 %v5840
    %6612 = vmatpush1.bf16.msra.mxu0 %v5839
    %6613 = vmatprep.subr.bf16.mxu0 %v5846
    %6614 = vmatpush1.bf16.msra.mxu0 %v5845
    %6615 = vmatprep.subr.bf16.mxu0 %v5852
    %6616 = vmatpush1.bf16.msra.mxu0 %v5851
    %6617 = vmatprep.subr.bf16.mxu0 %v5858
    %6618 = vmatpush1.bf16.msra.mxu0 %v5857
    %6619 = vmatprep.mubr.bf16.mxu0 %v4002
    %6620 = vmatmul.mubr.bf16.gmra.mrb[0].mxu0 %v4001
    %v6621 = vpop.f32.mrb[0].mxu0
    %v6622 = vadd.f32 %v6581, %v6621
    %v6623 = vpop.f32.mrb[0].mxu0
    %v6624 = vadd.f32 %v6583, %v6623
    %v6625 = vpop.f32.mrb[0].mxu0
    %v6626 = vpop.f32.mrb[0].mxu0
    %6627 = vdwg.mxu0
    %6628 = vmatprep.subr.bf16.mxu0 %v5864
    %6629 = vmatpush1.bf16.msra.mxu0 %v5863
    %6630 = vmatprep.subr.bf16.mxu0 %v5870
    %6631 = vmatpush1.bf16.msra.mxu0 %v5869
    %6632 = vmatprep.subr.bf16.mxu0 %v5876
    %6633 = vmatpush1.bf16.msra.mxu0 %v5875
    %6634 = vmatprep.subr.bf16.mxu0 %v5882
    %6635 = vmatpush1.bf16.msra.mxu0 %v5881
    %6636 = vmatprep.subr.bf16.mxu0 %v5888
    %6637 = vmatpush1.bf16.msra.mxu0 %v5887
    %6638 = vmatprep.subr.bf16.mxu0 %v5894
    %6639 = vmatpush1.bf16.msra.mxu0 %v5893
    %6640 = vmatprep.subr.bf16.mxu0 %v5900
    %6641 = vmatpush1.bf16.msra.mxu0 %v5899
    %6642 = vmatprep.subr.bf16.mxu0 %v5906
    %6643 = vmatpush1.bf16.msra.mxu0 %v5905
    %6644 = vmatprep.subr.bf16.mxu0 %v5912
    %6645 = vmatpush1.bf16.msra.mxu0 %v5911
    %6646 = vmatprep.subr.bf16.mxu0 %v5918
    %6647 = vmatpush1.bf16.msra.mxu0 %v5917
    %6648 = vmatprep.subr.bf16.mxu0 %v5924
    %6649 = vmatpush1.bf16.msra.mxu0 %v5923
    %6650 = vmatprep.subr.bf16.mxu0 %v5930
    %6651 = vmatpush1.bf16.msra.mxu0 %v5929
    %6652 = vmatprep.subr.bf16.mxu0 %v5936
    %6653 = vmatpush1.bf16.msra.mxu0 %v5935
    %6654 = vmatprep.subr.bf16.mxu0 %v5942
    %6655 = vmatpush1.bf16.msra.mxu0 %v5941
    %6656 = vmatprep.subr.bf16.mxu0 %v5948
    %6657 = vmatpush1.bf16.msra.mxu0 %v5947
    %6658 = vmatprep.subr.bf16.mxu0 %v5954
    %6659 = vmatpush1.bf16.msra.mxu0 %v5953
    %6660 = vmatprep.mubr.bf16.mxu0 %v4004
    %6661 = vmatmul.mubr.bf16.gmra.mrb[0].mxu0 %v4003
    %v6662 = vpop.f32.mrb[0].mxu0
    %v6663 = vadd.f32 %v6622, %v6662
    %v6664 = vpop.f32.mrb[0].mxu0
    %v6665 = vadd.f32 %v6624, %v6664
    %v6666 = vpop.f32.mrb[0].mxu0
    %v6667 = vpop.f32.mrb[0].mxu0
    %6668 = vdwg.mxu0
    %6669 = vmatprep.subr.bf16.mxu0 %v5578
    %6670 = vmatpush1.bf16.msra.mxu0 %v5577
    %6671 = vmatprep.subr.bf16.mxu0 %v5584
    %6672 = vmatpush1.bf16.msra.mxu0 %v5583
    %6673 = vmatprep.subr.bf16.mxu0 %v5590
    %6674 = vmatpush1.bf16.msra.mxu0 %v5589
    %6675 = vmatprep.subr.bf16.mxu0 %v5596
    %6676 = vmatpush1.bf16.msra.mxu0 %v5595
    %6677 = vmatprep.subr.bf16.mxu0 %v5602
    %6678 = vmatpush1.bf16.msra.mxu0 %v5601
    %6679 = vmatprep.subr.bf16.mxu0 %v5608
    %6680 = vmatpush1.bf16.msra.mxu0 %v5607
    %6681 = vmatprep.subr.bf16.mxu0 %v5614
    %6682 = vmatpush1.bf16.msra.mxu0 %v5613
    %6683 = vmatprep.subr.bf16.mxu0 %v5620
    %6684 = vmatpush1.bf16.msra.mxu0 %v5619
    %6685 = vmatprep.subr.bf16.mxu0 %v5626
    %6686 = vmatpush1.bf16.msra.mxu0 %v5625
    %6687 = vmatprep.subr.bf16.mxu0 %v5632
    %6688 = vmatpush1.bf16.msra.mxu0 %v5631
    %6689 = vmatprep.subr.bf16.mxu0 %v5638
    %6690 = vmatpush1.bf16.msra.mxu0 %v5637
    %6691 = vmatprep.subr.bf16.mxu0 %v5644
    %6692 = vmatpush1.bf16.msra.mxu0 %v5643
    %6693 = vmatprep.subr.bf16.mxu0 %v5650
    %6694 = vmatpush1.bf16.msra.mxu0 %v5649
    %6695 = vmatprep.subr.bf16.mxu0 %v5656
    %6696 = vmatpush1.bf16.msra.mxu0 %v5655
    %6697 = vmatprep.subr.bf16.mxu0 %v5662
    %6698 = vmatpush1.bf16.msra.mxu0 %v5661
    %6699 = vmatprep.subr.bf16.mxu0 %v5668
    %6700 = vmatpush1.bf16.msra.mxu0 %v5667
    %6701 = vmatprep.mubr.bf16.mxu0 %v3998
    %6702 = vmatmul.mubr.bf16.gmra.mrb[0].mxu0 %v3997
    %v6703 = vpop.f32.mrb[0].mxu0
    %v6704 = vadd.f32 %v4410, %v6703
    %v6705 = vpop.f32.mrb[0].mxu0
    %v6706 = vadd.f32 %v4414, %v6705
    %v6707 = vpop.f32.mrb[0].mxu0
    %v6708 = vpop.f32.mrb[0].mxu0
    %6709 = vdwg.mxu0
    %6710 = vmatprep.subr.bf16.mxu0 %v5674
    %6711 = vmatpush1.bf16.msra.mxu0 %v5673
    %6712 = vmatprep.subr.bf16.mxu0 %v5680
    %6713 = vmatpush1.bf16.msra.mxu0 %v5679
    %6714 = vmatprep.subr.bf16.mxu0 %v5686
    %6715 = vmatpush1.bf16.msra.mxu0 %v5685
    %6716 = vmatprep.subr.bf16.mxu0 %v5692
    %6717 = vmatpush1.bf16.msra.mxu0 %v5691
    %6718 = vmatprep.subr.bf16.mxu0 %v5698
    %6719 = vmatpush1.bf16.msra.mxu0 %v5697
    %6720 = vmatprep.subr.bf16.mxu0 %v5704
    %6721 = vmatpush1.bf16.msra.mxu0 %v5703
    %6722 = vmatprep.subr.bf16.mxu0 %v5710
    %6723 = vmatpush1.bf16.msra.mxu0 %v5709
    %6724 = vmatprep.subr.bf16.mxu0 %v5716
    %6725 = vmatpush1.bf16.msra.mxu0 %v5715
    %6726 = vmatprep.subr.bf16.mxu0 %v5722
    %6727 = vmatpush1.bf16.msra.mxu0 %v5721
    %6728 = vmatprep.subr.bf16.mxu0 %v5728
    %6729 = vmatpush1.bf16.msra.mxu0 %v5727
    %6730 = vmatprep.subr.bf16.mxu0 %v5734
    %6731 = vmatpush1.bf16.msra.mxu0 %v5733
    %6732 = vmatprep.subr.bf16.mxu0 %v5740
    %6733 = vmatpush1.bf16.msra.mxu0 %v5739
    %6734 = vmatprep.subr.bf16.mxu0 %v5746
    %6735 = vmatpush1.bf16.msra.mxu0 %v5745
    %6736 = vmatprep.subr.bf16.mxu0 %v5752
    %6737 = vmatpush1.bf16.msra.mxu0 %v5751
    %6738 = vmatprep.subr.bf16.mxu0 %v5758
    %6739 = vmatpush1.bf16.msra.mxu0 %v5757
    %6740 = vmatprep.subr.bf16.mxu0 %v5764
    %6741 = vmatpush1.bf16.msra.mxu0 %v5763
    %6742 = vmatprep.mubr.bf16.mxu0 %v4000
    %6743 = vmatmul.mubr.bf16.gmra.mrb[0].mxu0 %v3999
    %v6744 = vpop.f32.mrb[0].mxu0
    %v6745 = vadd.f32 %v6704, %v6744
    %v6746 = vpop.f32.mrb[0].mxu0
    %v6747 = vadd.f32 %v6706, %v6746
    %v6748 = vpop.f32.mrb[0].mxu0
    %v6749 = vpop.f32.mrb[0].mxu0
    %6750 = vdwg.mxu0
    %6751 = vmatprep.subr.bf16.mxu0 %v5770
    %6752 = vmatpush1.bf16.msra.mxu0 %v5769
    %6753 = vmatprep.subr.bf16.mxu0 %v5776
    %6754 = vmatpush1.bf16.msra.mxu0 %v5775
    %6755 = vmatprep.subr.bf16.mxu0 %v5782
    %6756 = vmatpush1.bf16.msra.mxu0 %v5781
    %6757 = vmatprep.subr.bf16.mxu0 %v5788
    %6758 = vmatpush1.bf16.msra.mxu0 %v5787
    %6759 = vmatprep.subr.bf16.mxu0 %v5794
    %6760 = vmatpush1.bf16.msra.mxu0 %v5793
    %6761 = vmatprep.subr.bf16.mxu0 %v5800
    %6762 = vmatpush1.bf16.msra.mxu0 %v5799
    %6763 = vmatprep.subr.bf16.mxu0 %v5806
    %6764 = vmatpush1.bf16.msra.mxu0 %v5805
    %6765 = vmatprep.subr.bf16.mxu0 %v5812
    %6766 = vmatpush1.bf16.msra.mxu0 %v5811
    %6767 = vmatprep.subr.bf16.mxu0 %v5818
    %6768 = vmatpush1.bf16.msra.mxu0 %v5817
    %6769 = vmatprep.subr.bf16.mxu0 %v5824
    %6770 = vmatpush1.bf16.msra.mxu0 %v5823
    %6771 = vmatprep.subr.bf16.mxu0 %v5830
    %6772 = vmatpush1.bf16.msra.mxu0 %v5829
    %6773 = vmatprep.subr.bf16.mxu0 %v5836
    %6774 = vmatpush1.bf16.msra.mxu0 %v5835
    %6775 = vmatprep.subr.bf16.mxu0 %v5842
    %6776 = vmatpush1.bf16.msra.mxu0 %v5841
    %6777 = vmatprep.subr.bf16.mxu0 %v5848
    %6778 = vmatpush1.bf16.msra.mxu0 %v5847
    %6779 = vmatprep.subr.bf16.mxu0 %v5854
    %6780 = vmatpush1.bf16.msra.mxu0 %v5853
    %6781 = vmatprep.subr.bf16.mxu0 %v5860
    %6782 = vmatpush1.bf16.msra.mxu0 %v5859
    %6783 = vmatprep.mubr.bf16.mxu0 %v4002
    %6784 = vmatmul.mubr.bf16.gmra.mrb[0].mxu0 %v4001
    %v6785 = vpop.f32.mrb[0].mxu0
    %v6786 = vadd.f32 %v6745, %v6785
    %v6787 = vpop.f32.mrb[0].mxu0
    %v6788 = vadd.f32 %v6747, %v6787
    %v6789 = vpop.f32.mrb[0].mxu0
    %v6790 = vpop.f32.mrb[0].mxu0
    %6791 = vdwg.mxu0
    %6792 = vmatprep.subr.bf16.mxu0 %v5866
    %6793 = vmatpush1.bf16.msra.mxu0 %v5865
    %6794 = vmatprep.subr.bf16.mxu0 %v5872
    %6795 = vmatpush1.bf16.msra.mxu0 %v5871
    %6796 = vmatprep.subr.bf16.mxu0 %v5878
    %6797 = vmatpush1.bf16.msra.mxu0 %v5877
    %6798 = vmatprep.subr.bf16.mxu0 %v5884
    %6799 = vmatpush1.bf16.msra.mxu0 %v5883
    %6800 = vmatprep.subr.bf16.mxu0 %v5890
    %6801 = vmatpush1.bf16.msra.mxu0 %v5889
    %6802 = vmatprep.subr.bf16.mxu0 %v5896
    %6803 = vmatpush1.bf16.msra.mxu0 %v5895
    %6804 = vmatprep.subr.bf16.mxu0 %v5902
    %6805 = vmatpush1.bf16.msra.mxu0 %v5901
    %6806 = vmatprep.subr.bf16.mxu0 %v5908
    %6807 = vmatpush1.bf16.msra.mxu0 %v5907
    %6808 = vmatprep.subr.bf16.mxu0 %v5914
    %6809 = vmatpush1.bf16.msra.mxu0 %v5913
    %6810 = vmatprep.subr.bf16.mxu0 %v5920
    %6811 = vmatpush1.bf16.msra.mxu0 %v5919
    %6812 = vmatprep.subr.bf16.mxu0 %v5926
    %6813 = vmatpush1.bf16.msra.mxu0 %v5925
    %6814 = vmatprep.subr.bf16.mxu0 %v5932
    %6815 = vmatpush1.bf16.msra.mxu0 %v5931
    %6816 = vmatprep.subr.bf16.mxu0 %v5938
    %6817 = vmatpush1.bf16.msra.mxu0 %v5937
    %6818 = vmatprep.subr.bf16.mxu0 %v5944
    %6819 = vmatpush1.bf16.msra.mxu0 %v5943
    %6820 = vmatprep.subr.bf16.mxu0 %v5950
    %6821 = vmatpush1.bf16.msra.mxu0 %v5949
    %6822 = vmatprep.subr.bf16.mxu0 %v5956
    %6823 = vmatpush1.bf16.msra.mxu0 %v5955
    %6824 = vmatprep.mubr.bf16.mxu0 %v4004
    %6825 = vmatmul.mubr.bf16.gmra.mrb[0].mxu0 %v4003
    %v6826 = vpop.f32.mrb[0].mxu0
    %v6827 = vadd.f32 %v6786, %v6826
    %v6828 = vpop.f32.mrb[0].mxu0
    %v6829 = vadd.f32 %v6788, %v6828
    %v6830 = vpop.f32.mrb[0].mxu0
    %v6831 = vpop.f32.mrb[0].mxu0
    %6832 = vdwg.mxu0
    %6833 = vst [vmem:[#allocation10] sm:$0xff] %v6499
    %6834 = vst [vmem:[#allocation10 + $0x8] sm:$0xff] %v6501
    %6835 = vst [vmem:[#allocation10 + $0x10] sm:$0xff] %v6663
    %6836 = vst [vmem:[#allocation10 + $0x18] sm:$0xff] %v6665
    %6837 = vst [vmem:[#allocation10 + $0x20] sm:$0xff] %v6827
    %6838 = vst [vmem:[#allocation10 + $0x28] sm:$0xff] %v6829
    // Predicated region
    $region34: #{tpu_custom_call.1} parent=1 // pred_check
      _
    $region35: #{tpu_custom_call.1} parent=1 // pred_check_branch
      %6840 = sbr.rel (0) target = $region37
    $region36: #{tpu_custom_call.1} parent=1 // pred_region
      %s6842 = ssub.s32 768, 768
      %6843 = vsyncadd [#allocation4], %s6842
      %s6845 = sshll.u32 [#allocation10], 4
      %s6846 = int_to_ptr.vmem [resolvable:$true] %s6845
      %6848 = dma.vmem_to_hbm [thread:$0]  %s6846, 768, %s4, [#allocation4]
    $region37: #{tpu_custom_call.1} parent=1 // pred_fallthru
      _
    // Predicated region
    $region38: #{tpu_custom_call.1} parent=1 // pred_check
      _
    $region39: #{tpu_custom_call.1} parent=1 // pred_check_branch
      %6850 = sbr.rel (0) target = $region41
    $region40: #{tpu_custom_call.1} parent=1 // pred_region
      %6851 = dma.done [#allocation4], 768
    $region41: #{tpu_custom_call.1} parent=1 // pred_fallthru
      _
    %6852 = vsyncpa [#allocation3], 1
    %6853 = vsyncpa [#allocation6], 1
    %6854 = vsyncpa [#allocation9], 1
    %6855 = vsyncpa [#allocation4], 1

</llo_original>
